<compile_context>
chip_gen: v5e
topology: v5e:2x2
jax: 0.10.0
libtpu: 0.0.40
codegen_flags: <defaults>
</compile_context>

<pallas_src>
import jax
import jax.numpy as jnp
from jax.experimental import pallas as pl
from jax.experimental.pallas import tpu as pltpu

IN_FEATURES = 3 * 32 * 32  # 3072, a multiple of 128 (lane-dense LHS)
HIDDEN_DIMS = (256, 512, 1024, 512)
N_PAD = 128                # lane-dense padding of the final (num_classes) dim


def _round_up(x, m):
    return ((x + m - 1) // m) * m


def fused_mlp_kernel(x_ref,
                     w1_ref, b1_ref,
                     w2_ref, b2_ref,
                     w3_ref, b3_ref,
                     w4_ref, b4_ref,
                     w5_ref, b5_ref,
                     o_ref):
    """One batch tile through the full 5x (Linear+ReLU) stack, all in VMEM."""

    def layer(h, w_ref, b_ref):
        y = jnp.dot(h, w_ref[...], preferred_element_type=jnp.float32)
        return jnp.maximum(y + b_ref[...], 0.0)

    h = layer(x_ref[...], w1_ref, b1_ref)
    h = layer(h, w2_ref, b2_ref)
    h = layer(h, w3_ref, b3_ref)
    h = layer(h, w4_ref, b4_ref)
    h = layer(h, w5_ref, b5_ref)          # fc5 also ends in ReLU (per spec)
    o_ref[...] = h.astype(o_ref.dtype)


def simple_neural_networks_forward(x_nchw, params, num_classes=10, tb_max=256):
    """Forward pass: flatten, then the whole 5-layer MLP in one Pallas kernel.

    tb_max: max batch-tile size. 256 is safe for v7x (64 MiB VMEM/TC); v5e/v6e
    (128 MiB) can use 512-1024 to amortize per-step overhead at large batch.
    """
    B = x_nchw.shape[0]
    x = x_nchw.reshape(B, -1).astype(jnp.float32)   # nn.Flatten -> (B, 3072)
    assert x.shape[1] == IN_FEATURES, x.shape

    # Final layer padded to a lane-dense 128-wide output (done in init_params;
    # fall back here only if caller passed unpadded weights).
    w5, b5 = params[4]
    if w5.shape[1] != N_PAD:
        nc = w5.shape[1]
        w5 = jnp.zeros((w5.shape[0], N_PAD), w5.dtype).at[:, :nc].set(w5)
        b5 = jnp.zeros((N_PAD,), b5.dtype).at[:nc].set(b5)
    layer_params = list(params[:4]) + [(w5, b5)]

    # Batch tiling: pad B up to a multiple of 8 sublanes (and of the tile).
    TB = min(tb_max, _round_up(B, 8))
    Bp = _round_up(B, TB)
    if Bp != B:
        x = jnp.pad(x, ((0, Bp - B), (0, 0)))
    grid = (Bp // TB,)

    flat_args = [x]
    in_specs = [pl.BlockSpec((TB, IN_FEATURES), lambda i: (i, 0))]
    for w, b in layer_params:
        flat_args.append(w)
        in_specs.append(pl.BlockSpec(w.shape, lambda i: (0, 0)))       # resident
        b2 = b.reshape(1, -1)                                          # 2D bias
        flat_args.append(b2)
        in_specs.append(pl.BlockSpec(b2.shape, lambda i: (0, 0)))      # resident
    out_spec = pl.BlockSpec((TB, N_PAD), lambda i: (i, 0))

    # Cost / VMEM accounting.
    dims = [IN_FEATURES, *HIDDEN_DIMS, N_PAD]
    flops = 2 * Bp * sum(dims[i] * dims[i + 1] for i in range(len(dims) - 1))
    weight_bytes = sum(int(w.size) * 4 + int(b.size) * 4 for w, b in layer_params)
    bytes_accessed = weight_bytes + Bp * IN_FEATURES * 4 + Bp * N_PAD * 4
    vmem_limit = (2 * weight_bytes                       # (possibly) 2x-buffered weights
                  + 2 * TB * (IN_FEATURES + N_PAD) * 4   # double-buffered in/out tiles
                  + TB * sum(HIDDEN_DIMS) * 4            # chained intermediates
                  + (8 << 20))                           # headroom

    out_padded = pl.pallas_call(
        fused_mlp_kernel,
        out_shape=jax.ShapeDtypeStruct((Bp, N_PAD), jnp.float32),
        grid=grid,
        in_specs=in_specs,
        out_specs=out_spec,
        compiler_params=pltpu.CompilerParams(
            dimension_semantics=("parallel",),
            vmem_limit_bytes=int(vmem_limit),
        ),
        cost_estimate=pl.CostEstimate(
            flops=int(flops),
            transcendentals=0,
            bytes_accessed=int(bytes_accessed),
        ),
    )(*flat_args)
    return out_padded[:B, :num_classes]


def init_params(key, num_classes=10):
    """Deterministic init matching the module's layer shapes.

    Weights are stored (in_features, out_features) — transpose of PyTorch's
    nn.Linear layout — so the kernel computes x @ W directly. The final layer
    is stored pre-padded to N_PAD output columns (zeros beyond num_classes).
    """
    dims = [IN_FEATURES, *HIDDEN_DIMS, num_classes]
    params = []
    for i in range(len(dims) - 1):
        key, kw, kb = jax.random.split(key, 3)
        fan_in = dims[i]
        bound = 1.0 / jnp.sqrt(fan_in)
        w = jax.random.uniform(
            kw, (dims[i], dims[i + 1]), jnp.float32, minval=-bound, maxval=bound
        )
        b = jax.random.uniform(
            kb, (dims[i + 1],), jnp.float32, minval=-bound, maxval=bound
        )
        if i == len(dims) - 2:  # pad classifier layer once, lane-dense output
            w = jnp.zeros((dims[i], N_PAD), jnp.float32).at[:, :num_classes].set(w)
            b = jnp.zeros((N_PAD,), jnp.float32).at[:num_classes].set(b)
        params.append((w, b))
    return params


if __name__ == "__main__":
    key = jax.random.PRNGKey(0)
    key, kx = jax.random.split(key)

    # Feature dims are fixed by the module (3*32*32 input features); small batch.
    num_classes = 10
    x = jax.random.normal(kx, (4, 3, 32, 32), dtype=jnp.float32)
    params = init_params(key, num_classes=num_classes)

    out = simple_neural_networks_forward(x, params, num_classes=num_classes)
    out = jax.block_until_ready(out)

    # Reference check in plain JAX (padded classifier cols are zero -> slice).
    h = x.reshape(x.shape[0], -1)
    for w, b in params:
        h = jnp.maximum(h @ w + b, 0.0)
    ref = h[:, :num_classes]

    assert out.shape == (4, num_classes), out.shape
    assert jnp.allclose(out, ref, atol=1e-4, rtol=1e-4), "mismatch vs reference"

    print("KERNEL_OK")
</pallas_src>

<mosaic_0001>
module attributes {stable_mosaic.version = 11 : i64} {
  func.func @fused_mlp_kernel(%arg0: i32, %arg1: memref<8x3072xf32, #tpu.memory_space<vmem>>, %arg2: memref<3072x256xf32, #tpu.memory_space<vmem>>, %arg3: memref<1x256xf32, #tpu.memory_space<vmem>>, %arg4: memref<256x512xf32, #tpu.memory_space<vmem>>, %arg5: memref<1x512xf32, #tpu.memory_space<vmem>>, %arg6: memref<512x1024xf32, #tpu.memory_space<vmem>>, %arg7: memref<1x1024xf32, #tpu.memory_space<vmem>>, %arg8: memref<1024x512xf32, #tpu.memory_space<vmem>>, %arg9: memref<1x512xf32, #tpu.memory_space<vmem>>, %arg10: memref<512x128xf32, #tpu.memory_space<vmem>>, %arg11: memref<1x128xf32, #tpu.memory_space<vmem>>, %arg12: memref<8x128xf32, #tpu.memory_space<vmem>>) attributes {dimension_semantics = [#tpu.dimension_semantics<parallel>], iteration_bounds = array<i64: 1>, scalar_prefetch = 0 : i64, scratch_operands = 0 : i64, tpu.core_type = #tpu.core_type<tc>, window_params = [{transform_indices = @transform_0, window_bounds = array<i64: 8, 3072>}, {pipeline_mode = #tpu.pipeline_mode<synchronous>, transform_indices = @transform_1, window_bounds = array<i64: 3072, 256>}, {pipeline_mode = #tpu.pipeline_mode<synchronous>, transform_indices = @transform_2, window_bounds = array<i64: 1, 256>}, {pipeline_mode = #tpu.pipeline_mode<synchronous>, transform_indices = @transform_3, window_bounds = array<i64: 256, 512>}, {pipeline_mode = #tpu.pipeline_mode<synchronous>, transform_indices = @transform_4, window_bounds = array<i64: 1, 512>}, {pipeline_mode = #tpu.pipeline_mode<synchronous>, transform_indices = @transform_5, window_bounds = array<i64: 512, 1024>}, {pipeline_mode = #tpu.pipeline_mode<synchronous>, transform_indices = @transform_6, window_bounds = array<i64: 1, 1024>}, {pipeline_mode = #tpu.pipeline_mode<synchronous>, transform_indices = @transform_7, window_bounds = array<i64: 1024, 512>}, {pipeline_mode = #tpu.pipeline_mode<synchronous>, transform_indices = @transform_8, window_bounds = array<i64: 1, 512>}, {pipeline_mode = #tpu.pipeline_mode<synchronous>, transform_indices = @transform_9, window_bounds = array<i64: 512, 128>}, {pipeline_mode = #tpu.pipeline_mode<synchronous>, transform_indices = @transform_10, window_bounds = array<i64: 1, 128>}, {transform_indices = @transform_11, window_bounds = array<i64: 8, 128>}]} {
    %c0 = arith.constant 0 : index
    %c0_0 = arith.constant 0 : index
    %0 = vector.load %arg1[%c0, %c0_0] : memref<8x3072xf32, #tpu.memory_space<vmem>>, vector<8x3072xf32>
    %c0_1 = arith.constant 0 : index
    %c0_2 = arith.constant 0 : index
    %1 = vector.load %arg2[%c0_1, %c0_2] : memref<3072x256xf32, #tpu.memory_space<vmem>>, vector<3072x256xf32>
    %cst = arith.constant dense<0.000000e+00> : vector<8x256xf32>
    %2 = tpu.matmul %0, %1, %cst {dimension_numbers = #tpu.dot_dimension_numbers<[1], [0], [0], [1], [0, 0, 1, 1], [], []>} : vector<8x3072xf32>, vector<3072x256xf32>, vector<8x256xf32> -> vector<8x256xf32>
    %c0_3 = arith.constant 0 : index
    %c0_4 = arith.constant 0 : index
    %3 = vector.load %arg3[%c0_3, %c0_4] : memref<1x256xf32, #tpu.memory_space<vmem>>, vector<1x256xf32>
    %4 = vector.broadcast %3 : vector<1x256xf32> to vector<8x256xf32>
    %5 = arith.addf %2, %4 : vector<8x256xf32>
    %cst_5 = arith.constant 0.000000e+00 : f32
    %6 = vector.broadcast %cst_5 : f32 to vector<8x256xf32>
    %7 = arith.maximumf %5, %6 : vector<8x256xf32>
    %c0_6 = arith.constant 0 : index
    %c0_7 = arith.constant 0 : index
    %8 = vector.load %arg4[%c0_6, %c0_7] : memref<256x512xf32, #tpu.memory_space<vmem>>, vector<256x512xf32>
    %cst_8 = arith.constant dense<0.000000e+00> : vector<8x512xf32>
    %9 = tpu.matmul %7, %8, %cst_8 {dimension_numbers = #tpu.dot_dimension_numbers<[1], [0], [0], [1], [0, 0, 1, 1], [], []>} : vector<8x256xf32>, vector<256x512xf32>, vector<8x512xf32> -> vector<8x512xf32>
    %c0_9 = arith.constant 0 : index
    %c0_10 = arith.constant 0 : index
    %10 = vector.load %arg5[%c0_9, %c0_10] : memref<1x512xf32, #tpu.memory_space<vmem>>, vector<1x512xf32>
    %11 = vector.broadcast %10 : vector<1x512xf32> to vector<8x512xf32>
    %12 = arith.addf %9, %11 : vector<8x512xf32>
    %cst_11 = arith.constant 0.000000e+00 : f32
    %13 = vector.broadcast %cst_11 : f32 to vector<8x512xf32>
    %14 = arith.maximumf %12, %13 : vector<8x512xf32>
    %c0_12 = arith.constant 0 : index
    %c0_13 = arith.constant 0 : index
    %15 = vector.load %arg6[%c0_12, %c0_13] : memref<512x1024xf32, #tpu.memory_space<vmem>>, vector<512x1024xf32>
    %cst_14 = arith.constant dense<0.000000e+00> : vector<8x1024xf32>
    %16 = tpu.matmul %14, %15, %cst_14 {dimension_numbers = #tpu.dot_dimension_numbers<[1], [0], [0], [1], [0, 0, 1, 1], [], []>} : vector<8x512xf32>, vector<512x1024xf32>, vector<8x1024xf32> -> vector<8x1024xf32>
    %c0_15 = arith.constant 0 : index
    %c0_16 = arith.constant 0 : index
    %17 = vector.load %arg7[%c0_15, %c0_16] : memref<1x1024xf32, #tpu.memory_space<vmem>>, vector<1x1024xf32>
    %18 = vector.broadcast %17 : vector<1x1024xf32> to vector<8x1024xf32>
    %19 = arith.addf %16, %18 : vector<8x1024xf32>
    %cst_17 = arith.constant 0.000000e+00 : f32
    %20 = vector.broadcast %cst_17 : f32 to vector<8x1024xf32>
    %21 = arith.maximumf %19, %20 : vector<8x1024xf32>
    %c0_18 = arith.constant 0 : index
    %c0_19 = arith.constant 0 : index
    %22 = vector.load %arg8[%c0_18, %c0_19] : memref<1024x512xf32, #tpu.memory_space<vmem>>, vector<1024x512xf32>
    %cst_20 = arith.constant dense<0.000000e+00> : vector<8x512xf32>
    %23 = tpu.matmul %21, %22, %cst_20 {dimension_numbers = #tpu.dot_dimension_numbers<[1], [0], [0], [1], [0, 0, 1, 1], [], []>} : vector<8x1024xf32>, vector<1024x512xf32>, vector<8x512xf32> -> vector<8x512xf32>
    %c0_21 = arith.constant 0 : index
    %c0_22 = arith.constant 0 : index
    %24 = vector.load %arg9[%c0_21, %c0_22] : memref<1x512xf32, #tpu.memory_space<vmem>>, vector<1x512xf32>
    %25 = vector.broadcast %24 : vector<1x512xf32> to vector<8x512xf32>
    %26 = arith.addf %23, %25 : vector<8x512xf32>
    %cst_23 = arith.constant 0.000000e+00 : f32
    %27 = vector.broadcast %cst_23 : f32 to vector<8x512xf32>
    %28 = arith.maximumf %26, %27 : vector<8x512xf32>
    %c0_24 = arith.constant 0 : index
    %c0_25 = arith.constant 0 : index
    %29 = vector.load %arg10[%c0_24, %c0_25] : memref<512x128xf32, #tpu.memory_space<vmem>>, vector<512x128xf32>
    %cst_26 = arith.constant dense<0.000000e+00> : vector<8x128xf32>
    %30 = tpu.matmul %28, %29, %cst_26 {dimension_numbers = #tpu.dot_dimension_numbers<[1], [0], [0], [1], [0, 0, 1, 1], [], []>} : vector<8x512xf32>, vector<512x128xf32>, vector<8x128xf32> -> vector<8x128xf32>
    %c0_27 = arith.constant 0 : index
    %c0_28 = arith.constant 0 : index
    %31 = vector.load %arg11[%c0_27, %c0_28] : memref<1x128xf32, #tpu.memory_space<vmem>>, vector<1x128xf32>
    %32 = vector.broadcast %31 : vector<1x128xf32> to vector<8x128xf32>
    %33 = arith.addf %30, %32 : vector<8x128xf32>
    %cst_29 = arith.constant 0.000000e+00 : f32
    %34 = vector.broadcast %cst_29 : f32 to vector<8x128xf32>
    %35 = arith.maximumf %33, %34 : vector<8x128xf32>
    %c0_30 = arith.constant 0 : index
    %c0_31 = arith.constant 0 : index
    %36 = vector.load %arg12[%c0_30, %c0_31] : memref<8x128xf32, #tpu.memory_space<vmem>>, vector<8x128xf32>
    tpu.vector_store %arg12[%c0_30, %c0_31], %35 {strides = array<i32>} : memref<8x128xf32, #tpu.memory_space<vmem>>, vector<8x128xf32>,
    return
  }
  func.func @transform_0(%arg0: i32) -> (i32, i32) {
    %c0_i32 = arith.constant 0 : i32
    %c0_i32_0 = arith.constant 0 : i32
    return %arg0, %c0_i32 : i32, i32
  }
  func.func @transform_1(%arg0: i32) -> (i32, i32) {
    %c0_i32 = arith.constant 0 : i32
    %c0_i32_0 = arith.constant 0 : i32
    %c0_i32_1 = arith.constant 0 : i32
    return %c0_i32, %c0_i32_0 : i32, i32
  }
  func.func @transform_2(%arg0: i32) -> (i32, i32) {
    %c0_i32 = arith.constant 0 : i32
    %c0_i32_0 = arith.constant 0 : i32
    %c0_i32_1 = arith.constant 0 : i32
    return %c0_i32, %c0_i32_0 : i32, i32
  }
  func.func @transform_3(%arg0: i32) -> (i32, i32) {
    %c0_i32 = arith.constant 0 : i32
    %c0_i32_0 = arith.constant 0 : i32
    %c0_i32_1 = arith.constant 0 : i32
    return %c0_i32, %c0_i32_0 : i32, i32
  }
  func.func @transform_4(%arg0: i32) -> (i32, i32) {
    %c0_i32 = arith.constant 0 : i32
    %c0_i32_0 = arith.constant 0 : i32
    %c0_i32_1 = arith.constant 0 : i32
    return %c0_i32, %c0_i32_0 : i32, i32
  }
  func.func @transform_5(%arg0: i32) -> (i32, i32) {
    %c0_i32 = arith.constant 0 : i32
    %c0_i32_0 = arith.constant 0 : i32
    %c0_i32_1 = arith.constant 0 : i32
    return %c0_i32, %c0_i32_0 : i32, i32
  }
  func.func @transform_6(%arg0: i32) -> (i32, i32) {
    %c0_i32 = arith.constant 0 : i32
    %c0_i32_0 = arith.constant 0 : i32
    %c0_i32_1 = arith.constant 0 : i32
    return %c0_i32, %c0_i32_0 : i32, i32
  }
  func.func @transform_7(%arg0: i32) -> (i32, i32) {
    %c0_i32 = arith.constant 0 : i32
    %c0_i32_0 = arith.constant 0 : i32
    %c0_i32_1 = arith.constant 0 : i32
    return %c0_i32, %c0_i32_0 : i32, i32
  }
  func.func @transform_8(%arg0: i32) -> (i32, i32) {
    %c0_i32 = arith.constant 0 : i32
    %c0_i32_0 = arith.constant 0 : i32
    %c0_i32_1 = arith.constant 0 : i32
    return %c0_i32, %c0_i32_0 : i32, i32
  }
  func.func @transform_9(%arg0: i32) -> (i32, i32) {
    %c0_i32 = arith.constant 0 : i32
    %c0_i32_0 = arith.constant 0 : i32
    %c0_i32_1 = arith.constant 0 : i32
    return %c0_i32, %c0_i32_0 : i32, i32
  }
  func.func @transform_10(%arg0: i32) -> (i32, i32) {
    %c0_i32 = arith.constant 0 : i32
    %c0_i32_0 = arith.constant 0 : i32
    %c0_i32_1 = arith.constant 0 : i32
    return %c0_i32, %c0_i32_0 : i32, i32
  }
  func.func @transform_11(%arg0: i32) -> (i32, i32) {
    %c0_i32 = arith.constant 0 : i32
    %c0_i32_0 = arith.constant 0 : i32
    return %arg0, %c0_i32 : i32, i32
  }
}

</mosaic_0001>

<llo_original>
// kernel: tpu_custom_call.1
$region0: #{tpu_custom_call.1}
  #allocation0 [shape = 'u32[]', space=smem, size = 0x4, offset = 0x4, fixed_abs, tag = 'smem constant byte address 0x4 - core index']
  #allocation1 [shape = 'u32[72,128]{1,0:T(1,128)}', space=vmem, size = 0x9000, scoped, tag = 'internal scratch']
  %s0 = inlined_call_operand.hbm [shape: f32[8,3072], index: 0, kind: input, shape index: {}]
  %s1 = inlined_call_operand.hbm [shape: f32[3072,256], index: 1, kind: input, shape index: {}]
  %s2 = inlined_call_operand.hbm [shape: f32[1,256], index: 2, kind: input, shape index: {}]
  %s3 = inlined_call_operand.hbm [shape: f32[256,512], index: 3, kind: input, shape index: {}]
  %s4 = inlined_call_operand.hbm [shape: f32[1,512], index: 4, kind: input, shape index: {}]
  %s5 = inlined_call_operand.hbm [shape: f32[512,1024], index: 5, kind: input, shape index: {}]
  %s6 = inlined_call_operand.hbm [shape: f32[1,1024], index: 6, kind: input, shape index: {}]
  %s7 = inlined_call_operand.hbm [shape: f32[1024,512], index: 7, kind: input, shape index: {}]
  %s8 = inlined_call_operand.hbm [shape: f32[1,512], index: 8, kind: input, shape index: {}]
  %s9 = inlined_call_operand.hbm [shape: f32[512,128], index: 9, kind: input, shape index: {}]
  %s10 = inlined_call_operand.hbm [shape: f32[1,128], index: 10, kind: input, shape index: {}]
  %s11 = inlined_call_operand.hbm [shape: f32[8,128], index: 11, kind: output, shape index: {}]
  %s12 = sld [smem:[#allocation0]]
  $region98: #{tpu_custom_call.1} parent=0
    _
  %s14 = ssub.s32 1, %s12
  %s15 = scalar_select 0, %s14, %s12
  $region1: #{tpu_custom_call.1} parent=0
    #allocation2 [shape = 'u8[98304]{0}', space=vmem, size = 0x18000, scoped, tag = 'input window, operand 0, single buffered']
    #allocation3 [shape = 's32[1]{0}', space=sflag, size = 0x4, scoped, tag = 'scoped memory for tpu_custom_call.1']
    #allocation4 [shape = 's32[1]{0}', space=sflag, size = 0x4, scoped, tag = 'scoped memory for tpu_custom_call.1']
    #allocation5 [shape = 'u8[3145728]{0}', space=vmem, size = 0x300000, scoped, tag = 'input window, operand 1, single buffered']
    #allocation6 [shape = 's32[1]{0}', space=sflag, size = 0x4, scoped, tag = 'scoped memory for tpu_custom_call.1']
    #allocation7 [shape = 'u8[1024]{0}', space=vmem, size = 0x400, scoped, tag = 'input window, operand 2, single buffered']
    #allocation8 [shape = 'u8[524288]{0}', space=vmem, size = 0x80000, scoped, tag = 'input window, operand 3, single buffered']
    #allocation9 [shape = 's32[1]{0}', space=sflag, size = 0x4, scoped, tag = 'scoped memory for tpu_custom_call.1']
    #allocation10 [shape = 'u8[2048]{0}', space=vmem, size = 0x800, scoped, tag = 'input window, operand 4, single buffered']
    #allocation11 [shape = 'u8[2097152]{0}', space=vmem, size = 0x200000, scoped, tag = 'input window, operand 5, single buffered']
    #allocation12 [shape = 's32[1]{0}', space=sflag, size = 0x4, scoped, tag = 'scoped memory for tpu_custom_call.1']
    #allocation13 [shape = 'u8[4096]{0}', space=vmem, size = 0x1000, scoped, tag = 'input window, operand 6, single buffered']
    #allocation14 [shape = 'u8[2097152]{0}', space=vmem, size = 0x200000, scoped, tag = 'input window, operand 7, single buffered']
    #allocation15 [shape = 's32[1]{0}', space=sflag, size = 0x4, scoped, tag = 'scoped memory for tpu_custom_call.1']
    #allocation16 [shape = 'u8[2048]{0}', space=vmem, size = 0x800, scoped, tag = 'input window, operand 8, single buffered']
    #allocation17 [shape = 'u8[262144]{0}', space=vmem, size = 0x40000, scoped, tag = 'input window, operand 9, single buffered']
    #allocation18 [shape = 's32[1]{0}', space=sflag, size = 0x4, scoped, tag = 'scoped memory for tpu_custom_call.1']
    #allocation19 [shape = 'u8[512]{0}', space=vmem, size = 0x400, scoped, tag = 'input window, operand 10, single buffered']
    #allocation20 [shape = 'u8[4096]{0}', space=vmem, size = 0x1000, scoped, tag = 'output window, operand 0, single buffered']
    %16 = vsyncpa [#allocation3], 0
    %17 = vsyncpa [#allocation6], 0
    %18 = vsyncpa [#allocation9], 0
    %19 = vsyncpa [#allocation12], 0
    %20 = vsyncpa [#allocation15], 0
    %21 = vsyncpa [#allocation18], 0
    %22 = vsyncpa [#allocation4], 0
    // Predicated region
    $region2: #{tpu_custom_call.1} parent=1 // pred_check
      _
    $region3: #{tpu_custom_call.1} parent=1 // pred_check_branch
      %24 = sbr.rel (0) target = $region5
    $region4: #{tpu_custom_call.1} parent=1 // pred_region
      %26 = vsyncadd [#allocation3], 0
      %s28 = sshll.u32 %s0, 4
      %s29 = int_to_ptr.hbm [resolvable:$true] %s28
      %s30 = sshll.u32 [#allocation2], 4
      %s31 = int_to_ptr.vmem [resolvable:$true] %s30
      %33 = dma.hbm_to_vmem [thread:$0]  %s29, 3072, %s31, [#allocation3]
    $region5: #{tpu_custom_call.1} parent=1 // pred_fallthru
      _
    // Predicated region
    $region6: #{tpu_custom_call.1} parent=1 // pred_check
      _
    $region7: #{tpu_custom_call.1} parent=1 // pred_check_branch
      %35 = sbr.rel (0) target = $region9
    $region8: #{tpu_custom_call.1} parent=1 // pred_region
      %37 = vsyncadd [#allocation6], 0
      %s38 = sshll.u32 %s1, 4
      %s39 = int_to_ptr.hbm [resolvable:$true] %s38
      %s40 = sshll.u32 [#allocation5], 4
      %s41 = int_to_ptr.vmem [resolvable:$true] %s40
      %46 = dma.hbm_to_vmem [thread:$0]  %s39, 98304, %s41, [#allocation6], 256, 256, 16
    $region9: #{tpu_custom_call.1} parent=1 // pred_fallthru
      _
    // Predicated region
    $region10: #{tpu_custom_call.1} parent=1 // pred_check
      _
    $region11: #{tpu_custom_call.1} parent=1 // pred_check_branch
      %48 = sbr.rel (0) target = $region13
    $region12: #{tpu_custom_call.1} parent=1 // pred_region
      %50 = vsyncadd [#allocation6], 0
      %s52 = sshll.u32 %s2, 4
      %s53 = int_to_ptr.hbm [resolvable:$true] %s52
      %s54 = sshll.u32 [#allocation7], 4
      %s55 = int_to_ptr.vmem [resolvable:$true] %s54
      %57 = dma.hbm_to_vmem [thread:$0]  %s53, 32, %s55, [#allocation6]
    $region13: #{tpu_custom_call.1} parent=1 // pred_fallthru
      _
    // Predicated region
    $region14: #{tpu_custom_call.1} parent=1 // pred_check
      _
    $region15: #{tpu_custom_call.1} parent=1 // pred_check_branch
      %59 = sbr.rel (0) target = $region17
    $region16: #{tpu_custom_call.1} parent=1 // pred_region
      %61 = vsyncadd [#allocation9], 0
      %s62 = sshll.u32 %s3, 4
      %s63 = int_to_ptr.hbm [resolvable:$true] %s62
      %s64 = sshll.u32 [#allocation8], 4
      %s65 = int_to_ptr.vmem [resolvable:$true] %s64
      %70 = dma.hbm_to_vmem [thread:$0]  %s63, 16384, %s65, [#allocation9], 512, 512, 32
    $region17: #{tpu_custom_call.1} parent=1 // pred_fallthru
      _
    // Predicated region
    $region18: #{tpu_custom_call.1} parent=1 // pred_check
      _
    $region19: #{tpu_custom_call.1} parent=1 // pred_check_branch
      %72 = sbr.rel (0) target = $region21
    $region20: #{tpu_custom_call.1} parent=1 // pred_region
      %74 = vsyncadd [#allocation9], 0
      %s76 = sshll.u32 %s4, 4
      %s77 = int_to_ptr.hbm [resolvable:$true] %s76
      %s78 = sshll.u32 [#allocation10], 4
      %s79 = int_to_ptr.vmem [resolvable:$true] %s78
      %81 = dma.hbm_to_vmem [thread:$0]  %s77, 64, %s79, [#allocation9]
    $region21: #{tpu_custom_call.1} parent=1 // pred_fallthru
      _
    // Predicated region
    $region22: #{tpu_custom_call.1} parent=1 // pred_check
      _
    $region23: #{tpu_custom_call.1} parent=1 // pred_check_branch
      %83 = sbr.rel (0) target = $region25
    $region24: #{tpu_custom_call.1} parent=1 // pred_region
      %85 = vsyncadd [#allocation12], 0
      %s86 = sshll.u32 %s5, 4
      %s87 = int_to_ptr.hbm [resolvable:$true] %s86
      %s88 = sshll.u32 [#allocation11], 4
      %s89 = int_to_ptr.vmem [resolvable:$true] %s88
      %94 = dma.hbm_to_vmem [thread:$0]  %s87, 65536, %s89, [#allocation12], 1024, 1024, 64
    $region25: #{tpu_custom_call.1} parent=1 // pred_fallthru
      _
    // Predicated region
    $region26: #{tpu_custom_call.1} parent=1 // pred_check
      _
    $region27: #{tpu_custom_call.1} parent=1 // pred_check_branch
      %96 = sbr.rel (0) target = $region29
    $region28: #{tpu_custom_call.1} parent=1 // pred_region
      %98 = vsyncadd [#allocation12], 0
      %s100 = sshll.u32 %s6, 4
      %s101 = int_to_ptr.hbm [resolvable:$true] %s100
      %s102 = sshll.u32 [#allocation13], 4
      %s103 = int_to_ptr.vmem [resolvable:$true] %s102
      %105 = dma.hbm_to_vmem [thread:$0]  %s101, 128, %s103, [#allocation12]
    $region29: #{tpu_custom_call.1} parent=1 // pred_fallthru
      _
    // Predicated region
    $region30: #{tpu_custom_call.1} parent=1 // pred_check
      _
    $region31: #{tpu_custom_call.1} parent=1 // pred_check_branch
      %107 = sbr.rel (0) target = $region33
    $region32: #{tpu_custom_call.1} parent=1 // pred_region
      %109 = vsyncadd [#allocation15], 0
      %s110 = sshll.u32 %s7, 4
      %s111 = int_to_ptr.hbm [resolvable:$true] %s110
      %s112 = sshll.u32 [#allocation14], 4
      %s113 = int_to_ptr.vmem [resolvable:$true] %s112
      %118 = dma.hbm_to_vmem [thread:$0]  %s111, 65536, %s113, [#allocation15], 512, 512, 32
    $region33: #{tpu_custom_call.1} parent=1 // pred_fallthru
      _
    // Predicated region
    $region34: #{tpu_custom_call.1} parent=1 // pred_check
      _
    $region35: #{tpu_custom_call.1} parent=1 // pred_check_branch
      %120 = sbr.rel (0) target = $region37
    $region36: #{tpu_custom_call.1} parent=1 // pred_region
      %122 = vsyncadd [#allocation15], 0
      %s124 = sshll.u32 %s8, 4
      %s125 = int_to_ptr.hbm [resolvable:$true] %s124
      %s126 = sshll.u32 [#allocation16], 4
      %s127 = int_to_ptr.vmem [resolvable:$true] %s126
      %129 = dma.hbm_to_vmem [thread:$0]  %s125, 64, %s127, [#allocation15]
    $region37: #{tpu_custom_call.1} parent=1 // pred_fallthru
      _
    // Predicated region
    $region38: #{tpu_custom_call.1} parent=1 // pred_check
      _
    $region39: #{tpu_custom_call.1} parent=1 // pred_check_branch
      %131 = sbr.rel (0) target = $region41
    $region40: #{tpu_custom_call.1} parent=1 // pred_region
      %133 = vsyncadd [#allocation18], 0
      %s134 = sshll.u32 %s9, 4
      %s135 = int_to_ptr.hbm [resolvable:$true] %s134
      %s136 = sshll.u32 [#allocation17], 4
      %s137 = int_to_ptr.vmem [resolvable:$true] %s136
      %142 = dma.hbm_to_vmem [thread:$0]  %s135, 8192, %s137, [#allocation18], 128, 128, 8
    $region41: #{tpu_custom_call.1} parent=1 // pred_fallthru
      _
    // Predicated region
    $region42: #{tpu_custom_call.1} parent=1 // pred_check
      _
    $region43: #{tpu_custom_call.1} parent=1 // pred_check_branch
      %144 = sbr.rel (0) target = $region45
    $region44: #{tpu_custom_call.1} parent=1 // pred_region
      %146 = vsyncadd [#allocation18], 0
      %s148 = sshll.u32 %s10, 4
      %s149 = int_to_ptr.hbm [resolvable:$true] %s148
      %s150 = sshll.u32 [#allocation19], 4
      %s151 = int_to_ptr.vmem [resolvable:$true] %s150
      %153 = dma.hbm_to_vmem [thread:$0]  %s149, 16, %s151, [#allocation18]
    $region45: #{tpu_custom_call.1} parent=1 // pred_fallthru
      _
    // Predicated region
    $region46: #{tpu_custom_call.1} parent=1 // pred_check
      _
    $region47: #{tpu_custom_call.1} parent=1 // pred_check_branch
      %155 = sbr.rel (0) target = $region49
    $region48: #{tpu_custom_call.1} parent=1 // pred_region
      %157 = dma.done [#allocation3], 3072
    $region49: #{tpu_custom_call.1} parent=1 // pred_fallthru
      _
    // Predicated region
    $region50: #{tpu_custom_call.1} parent=1 // pred_check
      _
    $region51: #{tpu_custom_call.1} parent=1 // pred_check_branch
      %159 = sbr.rel (0) target = $region53
    $region52: #{tpu_custom_call.1} parent=1 // pred_region
      %161 = dma.done [#allocation6], 98304
    $region53: #{tpu_custom_call.1} parent=1 // pred_fallthru
      _
    // Predicated region
    $region54: #{tpu_custom_call.1} parent=1 // pred_check
      _
    $region55: #{tpu_custom_call.1} parent=1 // pred_check_branch
      %163 = sbr.rel (0) target = $region57
    $region56: #{tpu_custom_call.1} parent=1 // pred_region
      %165 = dma.done [#allocation6], 32
    $region57: #{tpu_custom_call.1} parent=1 // pred_fallthru
      _
    // Predicated region
    $region58: #{tpu_custom_call.1} parent=1 // pred_check
      _
    $region59: #{tpu_custom_call.1} parent=1 // pred_check_branch
      %167 = sbr.rel (0) target = $region61
    $region60: #{tpu_custom_call.1} parent=1 // pred_region
      %169 = dma.done [#allocation9], 16384
    $region61: #{tpu_custom_call.1} parent=1 // pred_fallthru
      _
    // Predicated region
    $region62: #{tpu_custom_call.1} parent=1 // pred_check
      _
    $region63: #{tpu_custom_call.1} parent=1 // pred_check_branch
      %171 = sbr.rel (0) target = $region65
    $region64: #{tpu_custom_call.1} parent=1 // pred_region
      %173 = dma.done [#allocation9], 64
    $region65: #{tpu_custom_call.1} parent=1 // pred_fallthru
      _
    // Predicated region
    $region66: #{tpu_custom_call.1} parent=1 // pred_check
      _
    $region67: #{tpu_custom_call.1} parent=1 // pred_check_branch
      %175 = sbr.rel (0) target = $region69
    $region68: #{tpu_custom_call.1} parent=1 // pred_region
      %177 = dma.done [#allocation12], 65536
    $region69: #{tpu_custom_call.1} parent=1 // pred_fallthru
      _
    // Predicated region
    $region70: #{tpu_custom_call.1} parent=1 // pred_check
      _
    $region71: #{tpu_custom_call.1} parent=1 // pred_check_branch
      %179 = sbr.rel (0) target = $region73
    $region72: #{tpu_custom_call.1} parent=1 // pred_region
      %181 = dma.done [#allocation12], 128
    $region73: #{tpu_custom_call.1} parent=1 // pred_fallthru
      _
    // Predicated region
    $region74: #{tpu_custom_call.1} parent=1 // pred_check
      _
    $region75: #{tpu_custom_call.1} parent=1 // pred_check_branch
      %183 = sbr.rel (0) target = $region77
    $region76: #{tpu_custom_call.1} parent=1 // pred_region
      %185 = dma.done [#allocation15], 65536
    $region77: #{tpu_custom_call.1} parent=1 // pred_fallthru
      _
    // Predicated region
    $region78: #{tpu_custom_call.1} parent=1 // pred_check
      _
    $region79: #{tpu_custom_call.1} parent=1 // pred_check_branch
      %187 = sbr.rel (0) target = $region81
    $region80: #{tpu_custom_call.1} parent=1 // pred_region
      %189 = dma.done [#allocation15], 64
    $region81: #{tpu_custom_call.1} parent=1 // pred_fallthru
      _
    // Predicated region
    $region82: #{tpu_custom_call.1} parent=1 // pred_check
      _
    $region83: #{tpu_custom_call.1} parent=1 // pred_check_branch
      %191 = sbr.rel (0) target = $region85
    $region84: #{tpu_custom_call.1} parent=1 // pred_region
      %193 = dma.done [#allocation18], 8192
    $region85: #{tpu_custom_call.1} parent=1 // pred_fallthru
      _
    // Predicated region
    $region86: #{tpu_custom_call.1} parent=1 // pred_check
      _
    $region87: #{tpu_custom_call.1} parent=1 // pred_check_branch
      %195 = sbr.rel (0) target = $region89
    $region88: #{tpu_custom_call.1} parent=1 // pred_region
      %197 = dma.done [#allocation18], 16
    $region89: #{tpu_custom_call.1} parent=1 // pred_fallthru
      _
    %v198 = vld [vmem:[#allocation2] sm:$0xff]
    %v199 = vld [vmem:[#allocation2 + $0x8] sm:$0xff]
    %v200 = vld [vmem:[#allocation2 + $0x10] sm:$0xff]
    %v201 = vld [vmem:[#allocation2 + $0x18] sm:$0xff]
    %v202 = vld [vmem:[#allocation2 + $0x20] sm:$0xff]
    %v203 = vld [vmem:[#allocation2 + $0x28] sm:$0xff]
    %v204 = vld [vmem:[#allocation2 + $0x30] sm:$0xff]
    %v205 = vld [vmem:[#allocation2 + $0x38] sm:$0xff]
    %v206 = vld [vmem:[#allocation2 + $0x40] sm:$0xff]
    %v207 = vld [vmem:[#allocation2 + $0x48] sm:$0xff]
    %v208 = vld [vmem:[#allocation2 + $0x50] sm:$0xff]
    %v209 = vld [vmem:[#allocation2 + $0x58] sm:$0xff]
    %v210 = vld [vmem:[#allocation2 + $0x60] sm:$0xff]
    %v211 = vld [vmem:[#allocation2 + $0x68] sm:$0xff]
    %v212 = vld [vmem:[#allocation2 + $0x70] sm:$0xff]
    %v213 = vld [vmem:[#allocation2 + $0x78] sm:$0xff]
    %v214 = vld [vmem:[#allocation2 + $0x80] sm:$0xff]
    %v215 = vld [vmem:[#allocation2 + $0x88] sm:$0xff]
    %v216 = vld [vmem:[#allocation2 + $0x90] sm:$0xff]
    %v217 = vld [vmem:[#allocation2 + $0x98] sm:$0xff]
    %v218 = vld [vmem:[#allocation2 + $0xa0] sm:$0xff]
    %v219 = vld [vmem:[#allocation2 + $0xa8] sm:$0xff]
    %v220 = vld [vmem:[#allocation2 + $0xb0] sm:$0xff]
    %v221 = vld [vmem:[#allocation2 + $0xb8] sm:$0xff]
    %v222 = vld [vmem:[#allocation5] sm:$0xff]
    %v223 = vld [vmem:[#allocation5 + $0x8] sm:$0xff]
    %v224 = vld [vmem:[#allocation5 + $0x10] sm:$0xff]
    %v225 = vld [vmem:[#allocation5 + $0x18] sm:$0xff]
    %v226 = vld [vmem:[#allocation5 + $0x20] sm:$0xff]
    %v227 = vld [vmem:[#allocation5 + $0x28] sm:$0xff]
    %v228 = vld [vmem:[#allocation5 + $0x30] sm:$0xff]
    %v229 = vld [vmem:[#allocation5 + $0x38] sm:$0xff]
    %v230 = vld [vmem:[#allocation5 + $0x40] sm:$0xff]
    %v231 = vld [vmem:[#allocation5 + $0x48] sm:$0xff]
    %v232 = vld [vmem:[#allocation5 + $0x50] sm:$0xff]
    %v233 = vld [vmem:[#allocation5 + $0x58] sm:$0xff]
    %v234 = vld [vmem:[#allocation5 + $0x60] sm:$0xff]
    %v235 = vld [vmem:[#allocation5 + $0x68] sm:$0xff]
    %v236 = vld [vmem:[#allocation5 + $0x70] sm:$0xff]
    %v237 = vld [vmem:[#allocation5 + $0x78] sm:$0xff]
    %v238 = vld [vmem:[#allocation5 + $0x80] sm:$0xff]
    %v239 = vld [vmem:[#allocation5 + $0x88] sm:$0xff]
    %v240 = vld [vmem:[#allocation5 + $0x90] sm:$0xff]
    %v241 = vld [vmem:[#allocation5 + $0x98] sm:$0xff]
    %v242 = vld [vmem:[#allocation5 + $0xa0] sm:$0xff]
    %v243 = vld [vmem:[#allocation5 + $0xa8] sm:$0xff]
    %v244 = vld [vmem:[#allocation5 + $0xb0] sm:$0xff]
    %v245 = vld [vmem:[#allocation5 + $0xb8] sm:$0xff]
    %v246 = vld [vmem:[#allocation5 + $0xc0] sm:$0xff]
    %v247 = vld [vmem:[#allocation5 + $0xc8] sm:$0xff]
    %v248 = vld [vmem:[#allocation5 + $0xd0] sm:$0xff]
    %v249 = vld [vmem:[#allocation5 + $0xd8] sm:$0xff]
    %v250 = vld [vmem:[#allocation5 + $0xe0] sm:$0xff]
    %v251 = vld [vmem:[#allocation5 + $0xe8] sm:$0xff]
    %v252 = vld [vmem:[#allocation5 + $0xf0] sm:$0xff]
    %v253 = vld [vmem:[#allocation5 + $0xf8] sm:$0xff]
    %v254 = vld [vmem:[#allocation5 + $0x100] sm:$0xff]
    %v255 = vld [vmem:[#allocation5 + $0x108] sm:$0xff]
    %v256 = vld [vmem:[#allocation5 + $0x110] sm:$0xff]
    %v257 = vld [vmem:[#allocation5 + $0x118] sm:$0xff]
    %v258 = vld [vmem:[#allocation5 + $0x120] sm:$0xff]
    %v259 = vld [vmem:[#allocation5 + $0x128] sm:$0xff]
    %v260 = vld [vmem:[#allocation5 + $0x130] sm:$0xff]
    %v261 = vld [vmem:[#allocation5 + $0x138] sm:$0xff]
    %v262 = vld [vmem:[#allocation5 + $0x140] sm:$0xff]
    %v263 = vld [vmem:[#allocation5 + $0x148] sm:$0xff]
    %v264 = vld [vmem:[#allocation5 + $0x150] sm:$0xff]
    %v265 = vld [vmem:[#allocation5 + $0x158] sm:$0xff]
    %v266 = vld [vmem:[#allocation5 + $0x160] sm:$0xff]
    %v267 = vld [vmem:[#allocation5 + $0x168] sm:$0xff]
    %v268 = vld [vmem:[#allocation5 + $0x170] sm:$0xff]
    %v269 = vld [vmem:[#allocation5 + $0x178] sm:$0xff]
    %v270 = vld [vmem:[#allocation5 + $0x180] sm:$0xff]
    %v271 = vld [vmem:[#allocation5 + $0x188] sm:$0xff]
    %v272 = vld [vmem:[#allocation5 + $0x190] sm:$0xff]
    %v273 = vld [vmem:[#allocation5 + $0x198] sm:$0xff]
    %v274 = vld [vmem:[#allocation5 + $0x1a0] sm:$0xff]
    %v275 = vld [vmem:[#allocation5 + $0x1a8] sm:$0xff]
    %v276 = vld [vmem:[#allocation5 + $0x1b0] sm:$0xff]
    %v277 = vld [vmem:[#allocation5 + $0x1b8] sm:$0xff]
    %v278 = vld [vmem:[#allocation5 + $0x1c0] sm:$0xff]
    %v279 = vld [vmem:[#allocation5 + $0x1c8] sm:$0xff]
    %v280 = vld [vmem:[#allocation5 + $0x1d0] sm:$0xff]
    %v281 = vld [vmem:[#allocation5 + $0x1d8] sm:$0xff]
    %v282 = vld [vmem:[#allocation5 + $0x1e0] sm:$0xff]
    %v283 = vld [vmem:[#allocation5 + $0x1e8] sm:$0xff]
    %v284 = vld [vmem:[#allocation5 + $0x1f0] sm:$0xff]
    %v285 = vld [vmem:[#allocation5 + $0x1f8] sm:$0xff]
    %v286 = vld [vmem:[#allocation5 + $0x200] sm:$0xff]
    %v287 = vld [vmem:[#allocation5 + $0x208] sm:$0xff]
    %v288 = vld [vmem:[#allocation5 + $0x210] sm:$0xff]
    %v289 = vld [vmem:[#allocation5 + $0x218] sm:$0xff]
    %v290 = vld [vmem:[#allocation5 + $0x220] sm:$0xff]
    %v291 = vld [vmem:[#allocation5 + $0x228] sm:$0xff]
    %v292 = vld [vmem:[#allocation5 + $0x230] sm:$0xff]
    %v293 = vld [vmem:[#allocation5 + $0x238] sm:$0xff]
    %v294 = vld [vmem:[#allocation5 + $0x240] sm:$0xff]
    %v295 = vld [vmem:[#allocation5 + $0x248] sm:$0xff]
    %v296 = vld [vmem:[#allocation5 + $0x250] sm:$0xff]
    %v297 = vld [vmem:[#allocation5 + $0x258] sm:$0xff]
    %v298 = vld [vmem:[#allocation5 + $0x260] sm:$0xff]
    %v299 = vld [vmem:[#allocation5 + $0x268] sm:$0xff]
    %v300 = vld [vmem:[#allocation5 + $0x270] sm:$0xff]
    %v301 = vld [vmem:[#allocation5 + $0x278] sm:$0xff]
    %v302 = vld [vmem:[#allocation5 + $0x280] sm:$0xff]
    %v303 = vld [vmem:[#allocation5 + $0x288] sm:$0xff]
    %v304 = vld [vmem:[#allocation5 + $0x290] sm:$0xff]
    %v305 = vld [vmem:[#allocation5 + $0x298] sm:$0xff]
    %v306 = vld [vmem:[#allocation5 + $0x2a0] sm:$0xff]
    %v307 = vld [vmem:[#allocation5 + $0x2a8] sm:$0xff]
    %v308 = vld [vmem:[#allocation5 + $0x2b0] sm:$0xff]
    %v309 = vld [vmem:[#allocation5 + $0x2b8] sm:$0xff]
    %v310 = vld [vmem:[#allocation5 + $0x2c0] sm:$0xff]
    %v311 = vld [vmem:[#allocation5 + $0x2c8] sm:$0xff]
    %v312 = vld [vmem:[#allocation5 + $0x2d0] sm:$0xff]
    %v313 = vld [vmem:[#allocation5 + $0x2d8] sm:$0xff]
    %v314 = vld [vmem:[#allocation5 + $0x2e0] sm:$0xff]
    %v315 = vld [vmem:[#allocation5 + $0x2e8] sm:$0xff]
    %v316 = vld [vmem:[#allocation5 + $0x2f0] sm:$0xff]
    %v317 = vld [vmem:[#allocation5 + $0x2f8] sm:$0xff]
    %v318 = vld [vmem:[#allocation5 + $0x300] sm:$0xff]
    %v319 = vld [vmem:[#allocation5 + $0x308] sm:$0xff]
    %v320 = vld [vmem:[#allocation5 + $0x310] sm:$0xff]
    %v321 = vld [vmem:[#allocation5 + $0x318] sm:$0xff]
    %v322 = vld [vmem:[#allocation5 + $0x320] sm:$0xff]
    %v323 = vld [vmem:[#allocation5 + $0x328] sm:$0xff]
    %v324 = vld [vmem:[#allocation5 + $0x330] sm:$0xff]
    %v325 = vld [vmem:[#allocation5 + $0x338] sm:$0xff]
    %v326 = vld [vmem:[#allocation5 + $0x340] sm:$0xff]
    %v327 = vld [vmem:[#allocation5 + $0x348] sm:$0xff]
    %v328 = vld [vmem:[#allocation5 + $0x350] sm:$0xff]
    %v329 = vld [vmem:[#allocation5 + $0x358] sm:$0xff]
    %v330 = vld [vmem:[#allocation5 + $0x360] sm:$0xff]
    %v331 = vld [vmem:[#allocation5 + $0x368] sm:$0xff]
    %v332 = vld [vmem:[#allocation5 + $0x370] sm:$0xff]
    %v333 = vld [vmem:[#allocation5 + $0x378] sm:$0xff]
    %v334 = vld [vmem:[#allocation5 + $0x380] sm:$0xff]
    %v335 = vld [vmem:[#allocation5 + $0x388] sm:$0xff]
    %v336 = vld [vmem:[#allocation5 + $0x390] sm:$0xff]
    %v337 = vld [vmem:[#allocation5 + $0x398] sm:$0xff]
    %v338 = vld [vmem:[#allocation5 + $0x3a0] sm:$0xff]
    %v339 = vld [vmem:[#allocation5 + $0x3a8] sm:$0xff]
    %v340 = vld [vmem:[#allocation5 + $0x3b0] sm:$0xff]
    %v341 = vld [vmem:[#allocation5 + $0x3b8] sm:$0xff]
    %v342 = vld [vmem:[#allocation5 + $0x3c0] sm:$0xff]
    %v343 = vld [vmem:[#allocation5 + $0x3c8] sm:$0xff]
    %v344 = vld [vmem:[#allocation5 + $0x3d0] sm:$0xff]
    %v345 = vld [vmem:[#allocation5 + $0x3d8] sm:$0xff]
    %v346 = vld [vmem:[#allocation5 + $0x3e0] sm:$0xff]
    %v347 = vld [vmem:[#allocation5 + $0x3e8] sm:$0xff]
    %v348 = vld [vmem:[#allocation5 + $0x3f0] sm:$0xff]
    %v349 = vld [vmem:[#allocation5 + $0x3f8] sm:$0xff]
    %v350 = vld [vmem:[#allocation5 + $0x400] sm:$0xff]
    %v351 = vld [vmem:[#allocation5 + $0x408] sm:$0xff]
    %v352 = vld [vmem:[#allocation5 + $0x410] sm:$0xff]
    %v353 = vld [vmem:[#allocation5 + $0x418] sm:$0xff]
    %v354 = vld [vmem:[#allocation5 + $0x420] sm:$0xff]
    %v355 = vld [vmem:[#allocation5 + $0x428] sm:$0xff]
    %v356 = vld [vmem:[#allocation5 + $0x430] sm:$0xff]
    %v357 = vld [vmem:[#allocation5 + $0x438] sm:$0xff]
    %v358 = vld [vmem:[#allocation5 + $0x440] sm:$0xff]
    %v359 = vld [vmem:[#allocation5 + $0x448] sm:$0xff]
    %v360 = vld [vmem:[#allocation5 + $0x450] sm:$0xff]
    %v361 = vld [vmem:[#allocation5 + $0x458] sm:$0xff]
    %v362 = vld [vmem:[#allocation5 + $0x460] sm:$0xff]
    %v363 = vld [vmem:[#allocation5 + $0x468] sm:$0xff]
    %v364 = vld [vmem:[#allocation5 + $0x470] sm:$0xff]
    %v365 = vld [vmem:[#allocation5 + $0x478] sm:$0xff]
    %v366 = vld [vmem:[#allocation5 + $0x480] sm:$0xff]
    %v367 = vld [vmem:[#allocation5 + $0x488] sm:$0xff]
    %v368 = vld [vmem:[#allocation5 + $0x490] sm:$0xff]
    %v369 = vld [vmem:[#allocation5 + $0x498] sm:$0xff]
    %v370 = vld [vmem:[#allocation5 + $0x4a0] sm:$0xff]
    %v371 = vld [vmem:[#allocation5 + $0x4a8] sm:$0xff]
    %v372 = vld [vmem:[#allocation5 + $0x4b0] sm:$0xff]
    %v373 = vld [vmem:[#allocation5 + $0x4b8] sm:$0xff]
    %v374 = vld [vmem:[#allocation5 + $0x4c0] sm:$0xff]
    %v375 = vld [vmem:[#allocation5 + $0x4c8] sm:$0xff]
    %v376 = vld [vmem:[#allocation5 + $0x4d0] sm:$0xff]
    %v377 = vld [vmem:[#allocation5 + $0x4d8] sm:$0xff]
    %v378 = vld [vmem:[#allocation5 + $0x4e0] sm:$0xff]
    %v379 = vld [vmem:[#allocation5 + $0x4e8] sm:$0xff]
    %v380 = vld [vmem:[#allocation5 + $0x4f0] sm:$0xff]
    %v381 = vld [vmem:[#allocation5 + $0x4f8] sm:$0xff]
    %v382 = vld [vmem:[#allocation5 + $0x500] sm:$0xff]
    %v383 = vld [vmem:[#allocation5 + $0x508] sm:$0xff]
    %v384 = vld [vmem:[#allocation5 + $0x510] sm:$0xff]
    %v385 = vld [vmem:[#allocation5 + $0x518] sm:$0xff]
    %v386 = vld [vmem:[#allocation5 + $0x520] sm:$0xff]
    %v387 = vld [vmem:[#allocation5 + $0x528] sm:$0xff]
    %v388 = vld [vmem:[#allocation5 + $0x530] sm:$0xff]
    %v389 = vld [vmem:[#allocation5 + $0x538] sm:$0xff]
    %v390 = vld [vmem:[#allocation5 + $0x540] sm:$0xff]
    %v391 = vld [vmem:[#allocation5 + $0x548] sm:$0xff]
    %v392 = vld [vmem:[#allocation5 + $0x550] sm:$0xff]
    %v393 = vld [vmem:[#allocation5 + $0x558] sm:$0xff]
    %v394 = vld [vmem:[#allocation5 + $0x560] sm:$0xff]
    %v395 = vld [vmem:[#allocation5 + $0x568] sm:$0xff]
    %v396 = vld [vmem:[#allocation5 + $0x570] sm:$0xff]
    %v397 = vld [vmem:[#allocation5 + $0x578] sm:$0xff]
    %v398 = vld [vmem:[#allocation5 + $0x580] sm:$0xff]
    %v399 = vld [vmem:[#allocation5 + $0x588] sm:$0xff]
    %v400 = vld [vmem:[#allocation5 + $0x590] sm:$0xff]
    %v401 = vld [vmem:[#allocation5 + $0x598] sm:$0xff]
    %v402 = vld [vmem:[#allocation5 + $0x5a0] sm:$0xff]
    %v403 = vld [vmem:[#allocation5 + $0x5a8] sm:$0xff]
    %v404 = vld [vmem:[#allocation5 + $0x5b0] sm:$0xff]
    %v405 = vld [vmem:[#allocation5 + $0x5b8] sm:$0xff]
    %v406 = vld [vmem:[#allocation5 + $0x5c0] sm:$0xff]
    %v407 = vld [vmem:[#allocation5 + $0x5c8] sm:$0xff]
    %v408 = vld [vmem:[#allocation5 + $0x5d0] sm:$0xff]
    %v409 = vld [vmem:[#allocation5 + $0x5d8] sm:$0xff]
    %v410 = vld [vmem:[#allocation5 + $0x5e0] sm:$0xff]
    %v411 = vld [vmem:[#allocation5 + $0x5e8] sm:$0xff]
    %v412 = vld [vmem:[#allocation5 + $0x5f0] sm:$0xff]
    %v413 = vld [vmem:[#allocation5 + $0x5f8] sm:$0xff]
    %v414 = vld [vmem:[#allocation5 + $0x600] sm:$0xff]
    %v415 = vld [vmem:[#allocation5 + $0x608] sm:$0xff]
    %v416 = vld [vmem:[#allocation5 + $0x610] sm:$0xff]
    %v417 = vld [vmem:[#allocation5 + $0x618] sm:$0xff]
    %v418 = vld [vmem:[#allocation5 + $0x620] sm:$0xff]
    %v419 = vld [vmem:[#allocation5 + $0x628] sm:$0xff]
    %v420 = vld [vmem:[#allocation5 + $0x630] sm:$0xff]
    %v421 = vld [vmem:[#allocation5 + $0x638] sm:$0xff]
    %v422 = vld [vmem:[#allocation5 + $0x640] sm:$0xff]
    %v423 = vld [vmem:[#allocation5 + $0x648] sm:$0xff]
    %v424 = vld [vmem:[#allocation5 + $0x650] sm:$0xff]
    %v425 = vld [vmem:[#allocation5 + $0x658] sm:$0xff]
    %v426 = vld [vmem:[#allocation5 + $0x660] sm:$0xff]
    %v427 = vld [vmem:[#allocation5 + $0x668] sm:$0xff]
    %v428 = vld [vmem:[#allocation5 + $0x670] sm:$0xff]
    %v429 = vld [vmem:[#allocation5 + $0x678] sm:$0xff]
    %v430 = vld [vmem:[#allocation5 + $0x680] sm:$0xff]
    %v431 = vld [vmem:[#allocation5 + $0x688] sm:$0xff]
    %v432 = vld [vmem:[#allocation5 + $0x690] sm:$0xff]
    %v433 = vld [vmem:[#allocation5 + $0x698] sm:$0xff]
    %v434 = vld [vmem:[#allocation5 + $0x6a0] sm:$0xff]
    %v435 = vld [vmem:[#allocation5 + $0x6a8] sm:$0xff]
    %v436 = vld [vmem:[#allocation5 + $0x6b0] sm:$0xff]
    %v437 = vld [vmem:[#allocation5 + $0x6b8] sm:$0xff]
    %v438 = vld [vmem:[#allocation5 + $0x6c0] sm:$0xff]
    %v439 = vld [vmem:[#allocation5 + $0x6c8] sm:$0xff]
    %v440 = vld [vmem:[#allocation5 + $0x6d0] sm:$0xff]
    %v441 = vld [vmem:[#allocation5 + $0x6d8] sm:$0xff]
    %v442 = vld [vmem:[#allocation5 + $0x6e0] sm:$0xff]
    %v443 = vld [vmem:[#allocation5 + $0x6e8] sm:$0xff]
    %v444 = vld [vmem:[#allocation5 + $0x6f0] sm:$0xff]
    %v445 = vld [vmem:[#allocation5 + $0x6f8] sm:$0xff]
    %v446 = vld [vmem:[#allocation5 + $0x700] sm:$0xff]
    %v447 = vld [vmem:[#allocation5 + $0x708] sm:$0xff]
    %v448 = vld [vmem:[#allocation5 + $0x710] sm:$0xff]
    %v449 = vld [vmem:[#allocation5 + $0x718] sm:$0xff]
    %v450 = vld [vmem:[#allocation5 + $0x720] sm:$0xff]
    %v451 = vld [vmem:[#allocation5 + $0x728] sm:$0xff]
    %v452 = vld [vmem:[#allocation5 + $0x730] sm:$0xff]
    %v453 = vld [vmem:[#allocation5 + $0x738] sm:$0xff]
    %v454 = vld [vmem:[#allocation5 + $0x740] sm:$0xff]
    %v455 = vld [vmem:[#allocation5 + $0x748] sm:$0xff]
    %v456 = vld [vmem:[#allocation5 + $0x750] sm:$0xff]
    %v457 = vld [vmem:[#allocation5 + $0x758] sm:$0xff]
    %v458 = vld [vmem:[#allocation5 + $0x760] sm:$0xff]
    %v459 = vld [vmem:[#allocation5 + $0x768] sm:$0xff]
    %v460 = vld [vmem:[#allocation5 + $0x770] sm:$0xff]
    %v461 = vld [vmem:[#allocation5 + $0x778] sm:$0xff]
    %v462 = vld [vmem:[#allocation5 + $0x780] sm:$0xff]
    %v463 = vld [vmem:[#allocation5 + $0x788] sm:$0xff]
    %v464 = vld [vmem:[#allocation5 + $0x790] sm:$0xff]
    %v465 = vld [vmem:[#allocation5 + $0x798] sm:$0xff]
    %v466 = vld [vmem:[#allocation5 + $0x7a0] sm:$0xff]
    %v467 = vld [vmem:[#allocation5 + $0x7a8] sm:$0xff]
    %v468 = vld [vmem:[#allocation5 + $0x7b0] sm:$0xff]
    %v469 = vld [vmem:[#allocation5 + $0x7b8] sm:$0xff]
    %v470 = vld [vmem:[#allocation5 + $0x7c0] sm:$0xff]
    %v471 = vld [vmem:[#allocation5 + $0x7c8] sm:$0xff]
    %v472 = vld [vmem:[#allocation5 + $0x7d0] sm:$0xff]
    %v473 = vld [vmem:[#allocation5 + $0x7d8] sm:$0xff]
    %v474 = vld [vmem:[#allocation5 + $0x7e0] sm:$0xff]
    %v475 = vld [vmem:[#allocation5 + $0x7e8] sm:$0xff]
    %v476 = vld [vmem:[#allocation5 + $0x7f0] sm:$0xff]
    %v477 = vld [vmem:[#allocation5 + $0x7f8] sm:$0xff]
    %v478 = vld [vmem:[#allocation5 + $0x800] sm:$0xff]
    %v479 = vld [vmem:[#allocation5 + $0x808] sm:$0xff]
    %v480 = vld [vmem:[#allocation5 + $0x810] sm:$0xff]
    %v481 = vld [vmem:[#allocation5 + $0x818] sm:$0xff]
    %v482 = vld [vmem:[#allocation5 + $0x820] sm:$0xff]
    %v483 = vld [vmem:[#allocation5 + $0x828] sm:$0xff]
    %v484 = vld [vmem:[#allocation5 + $0x830] sm:$0xff]
    %v485 = vld [vmem:[#allocation5 + $0x838] sm:$0xff]
    %v486 = vld [vmem:[#allocation5 + $0x840] sm:$0xff]
    %v487 = vld [vmem:[#allocation5 + $0x848] sm:$0xff]
    %v488 = vld [vmem:[#allocation5 + $0x850] sm:$0xff]
    %v489 = vld [vmem:[#allocation5 + $0x858] sm:$0xff]
    %v490 = vld [vmem:[#allocation5 + $0x860] sm:$0xff]
    %v491 = vld [vmem:[#allocation5 + $0x868] sm:$0xff]
    %v492 = vld [vmem:[#allocation5 + $0x870] sm:$0xff]
    %v493 = vld [vmem:[#allocation5 + $0x878] sm:$0xff]
    %v494 = vld [vmem:[#allocation5 + $0x880] sm:$0xff]
    %v495 = vld [vmem:[#allocation5 + $0x888] sm:$0xff]
    %v496 = vld [vmem:[#allocation5 + $0x890] sm:$0xff]
    %v497 = vld [vmem:[#allocation5 + $0x898] sm:$0xff]
    %v498 = vld [vmem:[#allocation5 + $0x8a0] sm:$0xff]
    %v499 = vld [vmem:[#allocation5 + $0x8a8] sm:$0xff]
    %v500 = vld [vmem:[#allocation5 + $0x8b0] sm:$0xff]
    %v501 = vld [vmem:[#allocation5 + $0x8b8] sm:$0xff]
    %v502 = vld [vmem:[#allocation5 + $0x8c0] sm:$0xff]
    %v503 = vld [vmem:[#allocation5 + $0x8c8] sm:$0xff]
    %v504 = vld [vmem:[#allocation5 + $0x8d0] sm:$0xff]
    %v505 = vld [vmem:[#allocation5 + $0x8d8] sm:$0xff]
    %v506 = vld [vmem:[#allocation5 + $0x8e0] sm:$0xff]
    %v507 = vld [vmem:[#allocation5 + $0x8e8] sm:$0xff]
    %v508 = vld [vmem:[#allocation5 + $0x8f0] sm:$0xff]
    %v509 = vld [vmem:[#allocation5 + $0x8f8] sm:$0xff]
    %v510 = vld [vmem:[#allocation5 + $0x900] sm:$0xff]
    %v511 = vld [vmem:[#allocation5 + $0x908] sm:$0xff]
    %v512 = vld [vmem:[#allocation5 + $0x910] sm:$0xff]
    %v513 = vld [vmem:[#allocation5 + $0x918] sm:$0xff]
    %v514 = vld [vmem:[#allocation5 + $0x920] sm:$0xff]
    %v515 = vld [vmem:[#allocation5 + $0x928] sm:$0xff]
    %v516 = vld [vmem:[#allocation5 + $0x930] sm:$0xff]
    %v517 = vld [vmem:[#allocation5 + $0x938] sm:$0xff]
    %v518 = vld [vmem:[#allocation5 + $0x940] sm:$0xff]
    %v519 = vld [vmem:[#allocation5 + $0x948] sm:$0xff]
    %v520 = vld [vmem:[#allocation5 + $0x950] sm:$0xff]
    %v521 = vld [vmem:[#allocation5 + $0x958] sm:$0xff]
    %v522 = vld [vmem:[#allocation5 + $0x960] sm:$0xff]
    %v523 = vld [vmem:[#allocation5 + $0x968] sm:$0xff]
    %v524 = vld [vmem:[#allocation5 + $0x970] sm:$0xff]
    %v525 = vld [vmem:[#allocation5 + $0x978] sm:$0xff]
    %v526 = vld [vmem:[#allocation5 + $0x980] sm:$0xff]
    %v527 = vld [vmem:[#allocation5 + $0x988] sm:$0xff]
    %v528 = vld [vmem:[#allocation5 + $0x990] sm:$0xff]
    %v529 = vld [vmem:[#allocation5 + $0x998] sm:$0xff]
    %v530 = vld [vmem:[#allocation5 + $0x9a0] sm:$0xff]
    %v531 = vld [vmem:[#allocation5 + $0x9a8] sm:$0xff]
    %v532 = vld [vmem:[#allocation5 + $0x9b0] sm:$0xff]
    %v533 = vld [vmem:[#allocation5 + $0x9b8] sm:$0xff]
    %v534 = vld [vmem:[#allocation5 + $0x9c0] sm:$0xff]
    %v535 = vld [vmem:[#allocation5 + $0x9c8] sm:$0xff]
    %v536 = vld [vmem:[#allocation5 + $0x9d0] sm:$0xff]
    %v537 = vld [vmem:[#allocation5 + $0x9d8] sm:$0xff]
    %v538 = vld [vmem:[#allocation5 + $0x9e0] sm:$0xff]
    %v539 = vld [vmem:[#allocation5 + $0x9e8] sm:$0xff]
    %v540 = vld [vmem:[#allocation5 + $0x9f0] sm:$0xff]
    %v541 = vld [vmem:[#allocation5 + $0x9f8] sm:$0xff]
    %v542 = vld [vmem:[#allocation5 + $0xa00] sm:$0xff]
    %v543 = vld [vmem:[#allocation5 + $0xa08] sm:$0xff]
    %v544 = vld [vmem:[#allocation5 + $0xa10] sm:$0xff]
    %v545 = vld [vmem:[#allocation5 + $0xa18] sm:$0xff]
    %v546 = vld [vmem:[#allocation5 + $0xa20] sm:$0xff]
    %v547 = vld [vmem:[#allocation5 + $0xa28] sm:$0xff]
    %v548 = vld [vmem:[#allocation5 + $0xa30] sm:$0xff]
    %v549 = vld [vmem:[#allocation5 + $0xa38] sm:$0xff]
    %v550 = vld [vmem:[#allocation5 + $0xa40] sm:$0xff]
    %v551 = vld [vmem:[#allocation5 + $0xa48] sm:$0xff]
    %v552 = vld [vmem:[#allocation5 + $0xa50] sm:$0xff]
    %v553 = vld [vmem:[#allocation5 + $0xa58] sm:$0xff]
    %v554 = vld [vmem:[#allocation5 + $0xa60] sm:$0xff]
    %v555 = vld [vmem:[#allocation5 + $0xa68] sm:$0xff]
    %v556 = vld [vmem:[#allocation5 + $0xa70] sm:$0xff]
    %v557 = vld [vmem:[#allocation5 + $0xa78] sm:$0xff]
    %v558 = vld [vmem:[#allocation5 + $0xa80] sm:$0xff]
    %v559 = vld [vmem:[#allocation5 + $0xa88] sm:$0xff]
    %v560 = vld [vmem:[#allocation5 + $0xa90] sm:$0xff]
    %v561 = vld [vmem:[#allocation5 + $0xa98] sm:$0xff]
    %v562 = vld [vmem:[#allocation5 + $0xaa0] sm:$0xff]
    %v563 = vld [vmem:[#allocation5 + $0xaa8] sm:$0xff]
    %v564 = vld [vmem:[#allocation5 + $0xab0] sm:$0xff]
    %v565 = vld [vmem:[#allocation5 + $0xab8] sm:$0xff]
    %v566 = vld [vmem:[#allocation5 + $0xac0] sm:$0xff]
    %v567 = vld [vmem:[#allocation5 + $0xac8] sm:$0xff]
    %v568 = vld [vmem:[#allocation5 + $0xad0] sm:$0xff]
    %v569 = vld [vmem:[#allocation5 + $0xad8] sm:$0xff]
    %v570 = vld [vmem:[#allocation5 + $0xae0] sm:$0xff]
    %v571 = vld [vmem:[#allocation5 + $0xae8] sm:$0xff]
    %v572 = vld [vmem:[#allocation5 + $0xaf0] sm:$0xff]
    %v573 = vld [vmem:[#allocation5 + $0xaf8] sm:$0xff]
    %v574 = vld [vmem:[#allocation5 + $0xb00] sm:$0xff]
    %v575 = vld [vmem:[#allocation5 + $0xb08] sm:$0xff]
    %v576 = vld [vmem:[#allocation5 + $0xb10] sm:$0xff]
    %v577 = vld [vmem:[#allocation5 + $0xb18] sm:$0xff]
    %v578 = vld [vmem:[#allocation5 + $0xb20] sm:$0xff]
    %v579 = vld [vmem:[#allocation5 + $0xb28] sm:$0xff]
    %v580 = vld [vmem:[#allocation5 + $0xb30] sm:$0xff]
    %v581 = vld [vmem:[#allocation5 + $0xb38] sm:$0xff]
    %v582 = vld [vmem:[#allocation5 + $0xb40] sm:$0xff]
    %v583 = vld [vmem:[#allocation5 + $0xb48] sm:$0xff]
    %v584 = vld [vmem:[#allocation5 + $0xb50] sm:$0xff]
    %v585 = vld [vmem:[#allocation5 + $0xb58] sm:$0xff]
    %v586 = vld [vmem:[#allocation5 + $0xb60] sm:$0xff]
    %v587 = vld [vmem:[#allocation5 + $0xb68] sm:$0xff]
    %v588 = vld [vmem:[#allocation5 + $0xb70] sm:$0xff]
    %v589 = vld [vmem:[#allocation5 + $0xb78] sm:$0xff]
    %v590 = vld [vmem:[#allocation5 + $0xb80] sm:$0xff]
    %v591 = vld [vmem:[#allocation5 + $0xb88] sm:$0xff]
    %v592 = vld [vmem:[#allocation5 + $0xb90] sm:$0xff]
    %v593 = vld [vmem:[#allocation5 + $0xb98] sm:$0xff]
    %v594 = vld [vmem:[#allocation5 + $0xba0] sm:$0xff]
    %v595 = vld [vmem:[#allocation5 + $0xba8] sm:$0xff]
    %v596 = vld [vmem:[#allocation5 + $0xbb0] sm:$0xff]
    %v597 = vld [vmem:[#allocation5 + $0xbb8] sm:$0xff]
    %v598 = vld [vmem:[#allocation5 + $0xbc0] sm:$0xff]
    %v599 = vld [vmem:[#allocation5 + $0xbc8] sm:$0xff]
    %v600 = vld [vmem:[#allocation5 + $0xbd0] sm:$0xff]
    %v601 = vld [vmem:[#allocation5 + $0xbd8] sm:$0xff]
    %v602 = vld [vmem:[#allocation5 + $0xbe0] sm:$0xff]
    %v603 = vld [vmem:[#allocation5 + $0xbe8] sm:$0xff]
    %v604 = vld [vmem:[#allocation5 + $0xbf0] sm:$0xff]
    %v605 = vld [vmem:[#allocation5 + $0xbf8] sm:$0xff]
    %v606 = vld [vmem:[#allocation5 + $0xc00] sm:$0xff]
    %v607 = vld [vmem:[#allocation5 + $0xc08] sm:$0xff]
    %v608 = vld [vmem:[#allocation5 + $0xc10] sm:$0xff]
    %v609 = vld [vmem:[#allocation5 + $0xc18] sm:$0xff]
    %v610 = vld [vmem:[#allocation5 + $0xc20] sm:$0xff]
    %v611 = vld [vmem:[#allocation5 + $0xc28] sm:$0xff]
    %v612 = vld [vmem:[#allocation5 + $0xc30] sm:$0xff]
    %v613 = vld [vmem:[#allocation5 + $0xc38] sm:$0xff]
    %v614 = vld [vmem:[#allocation5 + $0xc40] sm:$0xff]
    %v615 = vld [vmem:[#allocation5 + $0xc48] sm:$0xff]
    %v616 = vld [vmem:[#allocation5 + $0xc50] sm:$0xff]
    %v617 = vld [vmem:[#allocation5 + $0xc58] sm:$0xff]
    %v618 = vld [vmem:[#allocation5 + $0xc60] sm:$0xff]
    %v619 = vld [vmem:[#allocation5 + $0xc68] sm:$0xff]
    %v620 = vld [vmem:[#allocation5 + $0xc70] sm:$0xff]
    %v621 = vld [vmem:[#allocation5 + $0xc78] sm:$0xff]
    %v622 = vld [vmem:[#allocation5 + $0xc80] sm:$0xff]
    %v623 = vld [vmem:[#allocation5 + $0xc88] sm:$0xff]
    %v624 = vld [vmem:[#allocation5 + $0xc90] sm:$0xff]
    %v625 = vld [vmem:[#allocation5 + $0xc98] sm:$0xff]
    %v626 = vld [vmem:[#allocation5 + $0xca0] sm:$0xff]
    %v627 = vld [vmem:[#allocation5 + $0xca8] sm:$0xff]
    %v628 = vld [vmem:[#allocation5 + $0xcb0] sm:$0xff]
    %v629 = vld [vmem:[#allocation5 + $0xcb8] sm:$0xff]
    %v630 = vld [vmem:[#allocation5 + $0xcc0] sm:$0xff]
    %v631 = vld [vmem:[#allocation5 + $0xcc8] sm:$0xff]
    %v632 = vld [vmem:[#allocation5 + $0xcd0] sm:$0xff]
    %v633 = vld [vmem:[#allocation5 + $0xcd8] sm:$0xff]
    %v634 = vld [vmem:[#allocation5 + $0xce0] sm:$0xff]
    %v635 = vld [vmem:[#allocation5 + $0xce8] sm:$0xff]
    %v636 = vld [vmem:[#allocation5 + $0xcf0] sm:$0xff]
    %v637 = vld [vmem:[#allocation5 + $0xcf8] sm:$0xff]
    %v638 = vld [vmem:[#allocation5 + $0xd00] sm:$0xff]
    %v639 = vld [vmem:[#allocation5 + $0xd08] sm:$0xff]
    %v640 = vld [vmem:[#allocation5 + $0xd10] sm:$0xff]
    %v641 = vld [vmem:[#allocation5 + $0xd18] sm:$0xff]
    %v642 = vld [vmem:[#allocation5 + $0xd20] sm:$0xff]
    %v643 = vld [vmem:[#allocation5 + $0xd28] sm:$0xff]
    %v644 = vld [vmem:[#allocation5 + $0xd30] sm:$0xff]
    %v645 = vld [vmem:[#allocation5 + $0xd38] sm:$0xff]
    %v646 = vld [vmem:[#allocation5 + $0xd40] sm:$0xff]
    %v647 = vld [vmem:[#allocation5 + $0xd48] sm:$0xff]
    %v648 = vld [vmem:[#allocation5 + $0xd50] sm:$0xff]
    %v649 = vld [vmem:[#allocation5 + $0xd58] sm:$0xff]
    %v650 = vld [vmem:[#allocation5 + $0xd60] sm:$0xff]
    %v651 = vld [vmem:[#allocation5 + $0xd68] sm:$0xff]
    %v652 = vld [vmem:[#allocation5 + $0xd70] sm:$0xff]
    %v653 = vld [vmem:[#allocation5 + $0xd78] sm:$0xff]
    %v654 = vld [vmem:[#allocation5 + $0xd80] sm:$0xff]
    %v655 = vld [vmem:[#allocation5 + $0xd88] sm:$0xff]
    %v656 = vld [vmem:[#allocation5 + $0xd90] sm:$0xff]
    %v657 = vld [vmem:[#allocation5 + $0xd98] sm:$0xff]
    %v658 = vld [vmem:[#allocation5 + $0xda0] sm:$0xff]
    %v659 = vld [vmem:[#allocation5 + $0xda8] sm:$0xff]
    %v660 = vld [vmem:[#allocation5 + $0xdb0] sm:$0xff]
    %v661 = vld [vmem:[#allocation5 + $0xdb8] sm:$0xff]
    %v662 = vld [vmem:[#allocation5 + $0xdc0] sm:$0xff]
    %v663 = vld [vmem:[#allocation5 + $0xdc8] sm:$0xff]
    %v664 = vld [vmem:[#allocation5 + $0xdd0] sm:$0xff]
    %v665 = vld [vmem:[#allocation5 + $0xdd8] sm:$0xff]
    %v666 = vld [vmem:[#allocation5 + $0xde0] sm:$0xff]
    %v667 = vld [vmem:[#allocation5 + $0xde8] sm:$0xff]
    %v668 = vld [vmem:[#allocation5 + $0xdf0] sm:$0xff]
    %v669 = vld [vmem:[#allocation5 + $0xdf8] sm:$0xff]
    %v670 = vld [vmem:[#allocation5 + $0xe00] sm:$0xff]
    %v671 = vld [vmem:[#allocation5 + $0xe08] sm:$0xff]
    %v672 = vld [vmem:[#allocation5 + $0xe10] sm:$0xff]
    %v673 = vld [vmem:[#allocation5 + $0xe18] sm:$0xff]
    %v674 = vld [vmem:[#allocation5 + $0xe20] sm:$0xff]
    %v675 = vld [vmem:[#allocation5 + $0xe28] sm:$0xff]
    %v676 = vld [vmem:[#allocation5 + $0xe30] sm:$0xff]
    %v677 = vld [vmem:[#allocation5 + $0xe38] sm:$0xff]
    %v678 = vld [vmem:[#allocation5 + $0xe40] sm:$0xff]
    %v679 = vld [vmem:[#allocation5 + $0xe48] sm:$0xff]
    %v680 = vld [vmem:[#allocation5 + $0xe50] sm:$0xff]
    %v681 = vld [vmem:[#allocation5 + $0xe58] sm:$0xff]
    %v682 = vld [vmem:[#allocation5 + $0xe60] sm:$0xff]
    %v683 = vld [vmem:[#allocation5 + $0xe68] sm:$0xff]
    %v684 = vld [vmem:[#allocation5 + $0xe70] sm:$0xff]
    %v685 = vld [vmem:[#allocation5 + $0xe78] sm:$0xff]
    %v686 = vld [vmem:[#allocation5 + $0xe80] sm:$0xff]
    %v687 = vld [vmem:[#allocation5 + $0xe88] sm:$0xff]
    %v688 = vld [vmem:[#allocation5 + $0xe90] sm:$0xff]
    %v689 = vld [vmem:[#allocation5 + $0xe98] sm:$0xff]
    %v690 = vld [vmem:[#allocation5 + $0xea0] sm:$0xff]
    %v691 = vld [vmem:[#allocation5 + $0xea8] sm:$0xff]
    %v692 = vld [vmem:[#allocation5 + $0xeb0] sm:$0xff]
    %v693 = vld [vmem:[#allocation5 + $0xeb8] sm:$0xff]
    %v694 = vld [vmem:[#allocation5 + $0xec0] sm:$0xff]
    %v695 = vld [vmem:[#allocation5 + $0xec8] sm:$0xff]
    %v696 = vld [vmem:[#allocation5 + $0xed0] sm:$0xff]
    %v697 = vld [vmem:[#allocation5 + $0xed8] sm:$0xff]
    %v698 = vld [vmem:[#allocation5 + $0xee0] sm:$0xff]
    %v699 = vld [vmem:[#allocation5 + $0xee8] sm:$0xff]
    %v700 = vld [vmem:[#allocation5 + $0xef0] sm:$0xff]
    %v701 = vld [vmem:[#allocation5 + $0xef8] sm:$0xff]
    %v702 = vld [vmem:[#allocation5 + $0xf00] sm:$0xff]
    %v703 = vld [vmem:[#allocation5 + $0xf08] sm:$0xff]
    %v704 = vld [vmem:[#allocation5 + $0xf10] sm:$0xff]
    %v705 = vld [vmem:[#allocation5 + $0xf18] sm:$0xff]
    %v706 = vld [vmem:[#allocation5 + $0xf20] sm:$0xff]
    %v707 = vld [vmem:[#allocation5 + $0xf28] sm:$0xff]
    %v708 = vld [vmem:[#allocation5 + $0xf30] sm:$0xff]
    %v709 = vld [vmem:[#allocation5 + $0xf38] sm:$0xff]
    %v710 = vld [vmem:[#allocation5 + $0xf40] sm:$0xff]
    %v711 = vld [vmem:[#allocation5 + $0xf48] sm:$0xff]
    %v712 = vld [vmem:[#allocation5 + $0xf50] sm:$0xff]
    %v713 = vld [vmem:[#allocation5 + $0xf58] sm:$0xff]
    %v714 = vld [vmem:[#allocation5 + $0xf60] sm:$0xff]
    %v715 = vld [vmem:[#allocation5 + $0xf68] sm:$0xff]
    %v716 = vld [vmem:[#allocation5 + $0xf70] sm:$0xff]
    %v717 = vld [vmem:[#allocation5 + $0xf78] sm:$0xff]
    %v718 = vld [vmem:[#allocation5 + $0xf80] sm:$0xff]
    %v719 = vld [vmem:[#allocation5 + $0xf88] sm:$0xff]
    %v720 = vld [vmem:[#allocation5 + $0xf90] sm:$0xff]
    %v721 = vld [vmem:[#allocation5 + $0xf98] sm:$0xff]
    %v722 = vld [vmem:[#allocation5 + $0xfa0] sm:$0xff]
    %v723 = vld [vmem:[#allocation5 + $0xfa8] sm:$0xff]
    %v724 = vld [vmem:[#allocation5 + $0xfb0] sm:$0xff]
    %v725 = vld [vmem:[#allocation5 + $0xfb8] sm:$0xff]
    %v726 = vld [vmem:[#allocation5 + $0xfc0] sm:$0xff]
    %v727 = vld [vmem:[#allocation5 + $0xfc8] sm:$0xff]
    %v728 = vld [vmem:[#allocation5 + $0xfd0] sm:$0xff]
    %v729 = vld [vmem:[#allocation5 + $0xfd8] sm:$0xff]
    %v730 = vld [vmem:[#allocation5 + $0xfe0] sm:$0xff]
    %v731 = vld [vmem:[#allocation5 + $0xfe8] sm:$0xff]
    %v732 = vld [vmem:[#allocation5 + $0xff0] sm:$0xff]
    %v733 = vld [vmem:[#allocation5 + $0xff8] sm:$0xff]
    %v734 = vld [vmem:[#allocation5 + $0x1000] sm:$0xff]
    %v735 = vld [vmem:[#allocation5 + $0x1008] sm:$0xff]
    %v736 = vld [vmem:[#allocation5 + $0x1010] sm:$0xff]
    %v737 = vld [vmem:[#allocation5 + $0x1018] sm:$0xff]
    %v738 = vld [vmem:[#allocation5 + $0x1020] sm:$0xff]
    %v739 = vld [vmem:[#allocation5 + $0x1028] sm:$0xff]
    %v740 = vld [vmem:[#allocation5 + $0x1030] sm:$0xff]
    %v741 = vld [vmem:[#allocation5 + $0x1038] sm:$0xff]
    %v742 = vld [vmem:[#allocation5 + $0x1040] sm:$0xff]
    %v743 = vld [vmem:[#allocation5 + $0x1048] sm:$0xff]
    %v744 = vld [vmem:[#allocation5 + $0x1050] sm:$0xff]
    %v745 = vld [vmem:[#allocation5 + $0x1058] sm:$0xff]
    %v746 = vld [vmem:[#allocation5 + $0x1060] sm:$0xff]
    %v747 = vld [vmem:[#allocation5 + $0x1068] sm:$0xff]
    %v748 = vld [vmem:[#allocation5 + $0x1070] sm:$0xff]
    %v749 = vld [vmem:[#allocation5 + $0x1078] sm:$0xff]
    %v750 = vld [vmem:[#allocation5 + $0x1080] sm:$0xff]
    %v751 = vld [vmem:[#allocation5 + $0x1088] sm:$0xff]
    %v752 = vld [vmem:[#allocation5 + $0x1090] sm:$0xff]
    %v753 = vld [vmem:[#allocation5 + $0x1098] sm:$0xff]
    %v754 = vld [vmem:[#allocation5 + $0x10a0] sm:$0xff]
    %v755 = vld [vmem:[#allocation5 + $0x10a8] sm:$0xff]
    %v756 = vld [vmem:[#allocation5 + $0x10b0] sm:$0xff]
    %v757 = vld [vmem:[#allocation5 + $0x10b8] sm:$0xff]
    %v758 = vld [vmem:[#allocation5 + $0x10c0] sm:$0xff]
    %v759 = vld [vmem:[#allocation5 + $0x10c8] sm:$0xff]
    %v760 = vld [vmem:[#allocation5 + $0x10d0] sm:$0xff]
    %v761 = vld [vmem:[#allocation5 + $0x10d8] sm:$0xff]
    %v762 = vld [vmem:[#allocation5 + $0x10e0] sm:$0xff]
    %v763 = vld [vmem:[#allocation5 + $0x10e8] sm:$0xff]
    %v764 = vld [vmem:[#allocation5 + $0x10f0] sm:$0xff]
    %v765 = vld [vmem:[#allocation5 + $0x10f8] sm:$0xff]
    %v766 = vld [vmem:[#allocation5 + $0x1100] sm:$0xff]
    %v767 = vld [vmem:[#allocation5 + $0x1108] sm:$0xff]
    %v768 = vld [vmem:[#allocation5 + $0x1110] sm:$0xff]
    %v769 = vld [vmem:[#allocation5 + $0x1118] sm:$0xff]
    %v770 = vld [vmem:[#allocation5 + $0x1120] sm:$0xff]
    %v771 = vld [vmem:[#allocation5 + $0x1128] sm:$0xff]
    %v772 = vld [vmem:[#allocation5 + $0x1130] sm:$0xff]
    %v773 = vld [vmem:[#allocation5 + $0x1138] sm:$0xff]
    %v774 = vld [vmem:[#allocation5 + $0x1140] sm:$0xff]
    %v775 = vld [vmem:[#allocation5 + $0x1148] sm:$0xff]
    %v776 = vld [vmem:[#allocation5 + $0x1150] sm:$0xff]
    %v777 = vld [vmem:[#allocation5 + $0x1158] sm:$0xff]
    %v778 = vld [vmem:[#allocation5 + $0x1160] sm:$0xff]
    %v779 = vld [vmem:[#allocation5 + $0x1168] sm:$0xff]
    %v780 = vld [vmem:[#allocation5 + $0x1170] sm:$0xff]
    %v781 = vld [vmem:[#allocation5 + $0x1178] sm:$0xff]
    %v782 = vld [vmem:[#allocation5 + $0x1180] sm:$0xff]
    %v783 = vld [vmem:[#allocation5 + $0x1188] sm:$0xff]
    %v784 = vld [vmem:[#allocation5 + $0x1190] sm:$0xff]
    %v785 = vld [vmem:[#allocation5 + $0x1198] sm:$0xff]
    %v786 = vld [vmem:[#allocation5 + $0x11a0] sm:$0xff]
    %v787 = vld [vmem:[#allocation5 + $0x11a8] sm:$0xff]
    %v788 = vld [vmem:[#allocation5 + $0x11b0] sm:$0xff]
    %v789 = vld [vmem:[#allocation5 + $0x11b8] sm:$0xff]
    %v790 = vld [vmem:[#allocation5 + $0x11c0] sm:$0xff]
    %v791 = vld [vmem:[#allocation5 + $0x11c8] sm:$0xff]
    %v792 = vld [vmem:[#allocation5 + $0x11d0] sm:$0xff]
    %v793 = vld [vmem:[#allocation5 + $0x11d8] sm:$0xff]
    %v794 = vld [vmem:[#allocation5 + $0x11e0] sm:$0xff]
    %v795 = vld [vmem:[#allocation5 + $0x11e8] sm:$0xff]
    %v796 = vld [vmem:[#allocation5 + $0x11f0] sm:$0xff]
    %v797 = vld [vmem:[#allocation5 + $0x11f8] sm:$0xff]
    %v798 = vld [vmem:[#allocation5 + $0x1200] sm:$0xff]
    %v799 = vld [vmem:[#allocation5 + $0x1208] sm:$0xff]
    %v800 = vld [vmem:[#allocation5 + $0x1210] sm:$0xff]
    %v801 = vld [vmem:[#allocation5 + $0x1218] sm:$0xff]
    %v802 = vld [vmem:[#allocation5 + $0x1220] sm:$0xff]
    %v803 = vld [vmem:[#allocation5 + $0x1228] sm:$0xff]
    %v804 = vld [vmem:[#allocation5 + $0x1230] sm:$0xff]
    %v805 = vld [vmem:[#allocation5 + $0x1238] sm:$0xff]
    %v806 = vld [vmem:[#allocation5 + $0x1240] sm:$0xff]
    %v807 = vld [vmem:[#allocation5 + $0x1248] sm:$0xff]
    %v808 = vld [vmem:[#allocation5 + $0x1250] sm:$0xff]
    %v809 = vld [vmem:[#allocation5 + $0x1258] sm:$0xff]
    %v810 = vld [vmem:[#allocation5 + $0x1260] sm:$0xff]
    %v811 = vld [vmem:[#allocation5 + $0x1268] sm:$0xff]
    %v812 = vld [vmem:[#allocation5 + $0x1270] sm:$0xff]
    %v813 = vld [vmem:[#allocation5 + $0x1278] sm:$0xff]
    %v814 = vld [vmem:[#allocation5 + $0x1280] sm:$0xff]
    %v815 = vld [vmem:[#allocation5 + $0x1288] sm:$0xff]
    %v816 = vld [vmem:[#allocation5 + $0x1290] sm:$0xff]
    %v817 = vld [vmem:[#allocation5 + $0x1298] sm:$0xff]
    %v818 = vld [vmem:[#allocation5 + $0x12a0] sm:$0xff]
    %v819 = vld [vmem:[#allocation5 + $0x12a8] sm:$0xff]
    %v820 = vld [vmem:[#allocation5 + $0x12b0] sm:$0xff]
    %v821 = vld [vmem:[#allocation5 + $0x12b8] sm:$0xff]
    %v822 = vld [vmem:[#allocation5 + $0x12c0] sm:$0xff]
    %v823 = vld [vmem:[#allocation5 + $0x12c8] sm:$0xff]
    %v824 = vld [vmem:[#allocation5 + $0x12d0] sm:$0xff]
    %v825 = vld [vmem:[#allocation5 + $0x12d8] sm:$0xff]
    %v826 = vld [vmem:[#allocation5 + $0x12e0] sm:$0xff]
    %v827 = vld [vmem:[#allocation5 + $0x12e8] sm:$0xff]
    %v828 = vld [vmem:[#allocation5 + $0x12f0] sm:$0xff]
    %v829 = vld [vmem:[#allocation5 + $0x12f8] sm:$0xff]
    %v830 = vld [vmem:[#allocation5 + $0x1300] sm:$0xff]
    %v831 = vld [vmem:[#allocation5 + $0x1308] sm:$0xff]
    %v832 = vld [vmem:[#allocation5 + $0x1310] sm:$0xff]
    %v833 = vld [vmem:[#allocation5 + $0x1318] sm:$0xff]
    %v834 = vld [vmem:[#allocation5 + $0x1320] sm:$0xff]
    %v835 = vld [vmem:[#allocation5 + $0x1328] sm:$0xff]
    %v836 = vld [vmem:[#allocation5 + $0x1330] sm:$0xff]
    %v837 = vld [vmem:[#allocation5 + $0x1338] sm:$0xff]
    %v838 = vld [vmem:[#allocation5 + $0x1340] sm:$0xff]
    %v839 = vld [vmem:[#allocation5 + $0x1348] sm:$0xff]
    %v840 = vld [vmem:[#allocation5 + $0x1350] sm:$0xff]
    %v841 = vld [vmem:[#allocation5 + $0x1358] sm:$0xff]
    %v842 = vld [vmem:[#allocation5 + $0x1360] sm:$0xff]
    %v843 = vld [vmem:[#allocation5 + $0x1368] sm:$0xff]
    %v844 = vld [vmem:[#allocation5 + $0x1370] sm:$0xff]
    %v845 = vld [vmem:[#allocation5 + $0x1378] sm:$0xff]
    %v846 = vld [vmem:[#allocation5 + $0x1380] sm:$0xff]
    %v847 = vld [vmem:[#allocation5 + $0x1388] sm:$0xff]
    %v848 = vld [vmem:[#allocation5 + $0x1390] sm:$0xff]
    %v849 = vld [vmem:[#allocation5 + $0x1398] sm:$0xff]
    %v850 = vld [vmem:[#allocation5 + $0x13a0] sm:$0xff]
    %v851 = vld [vmem:[#allocation5 + $0x13a8] sm:$0xff]
    %v852 = vld [vmem:[#allocation5 + $0x13b0] sm:$0xff]
    %v853 = vld [vmem:[#allocation5 + $0x13b8] sm:$0xff]
    %v854 = vld [vmem:[#allocation5 + $0x13c0] sm:$0xff]
    %v855 = vld [vmem:[#allocation5 + $0x13c8] sm:$0xff]
    %v856 = vld [vmem:[#allocation5 + $0x13d0] sm:$0xff]
    %v857 = vld [vmem:[#allocation5 + $0x13d8] sm:$0xff]
    %v858 = vld [vmem:[#allocation5 + $0x13e0] sm:$0xff]
    %v859 = vld [vmem:[#allocation5 + $0x13e8] sm:$0xff]
    %v860 = vld [vmem:[#allocation5 + $0x13f0] sm:$0xff]
    %v861 = vld [vmem:[#allocation5 + $0x13f8] sm:$0xff]
    %v862 = vld [vmem:[#allocation5 + $0x1400] sm:$0xff]
    %v863 = vld [vmem:[#allocation5 + $0x1408] sm:$0xff]
    %v864 = vld [vmem:[#allocation5 + $0x1410] sm:$0xff]
    %v865 = vld [vmem:[#allocation5 + $0x1418] sm:$0xff]
    %v866 = vld [vmem:[#allocation5 + $0x1420] sm:$0xff]
    %v867 = vld [vmem:[#allocation5 + $0x1428] sm:$0xff]
    %v868 = vld [vmem:[#allocation5 + $0x1430] sm:$0xff]
    %v869 = vld [vmem:[#allocation5 + $0x1438] sm:$0xff]
    %v870 = vld [vmem:[#allocation5 + $0x1440] sm:$0xff]
    %v871 = vld [vmem:[#allocation5 + $0x1448] sm:$0xff]
    %v872 = vld [vmem:[#allocation5 + $0x1450] sm:$0xff]
    %v873 = vld [vmem:[#allocation5 + $0x1458] sm:$0xff]
    %v874 = vld [vmem:[#allocation5 + $0x1460] sm:$0xff]
    %v875 = vld [vmem:[#allocation5 + $0x1468] sm:$0xff]
    %v876 = vld [vmem:[#allocation5 + $0x1470] sm:$0xff]
    %v877 = vld [vmem:[#allocation5 + $0x1478] sm:$0xff]
    %v878 = vld [vmem:[#allocation5 + $0x1480] sm:$0xff]
    %v879 = vld [vmem:[#allocation5 + $0x1488] sm:$0xff]
    %v880 = vld [vmem:[#allocation5 + $0x1490] sm:$0xff]
    %v881 = vld [vmem:[#allocation5 + $0x1498] sm:$0xff]
    %v882 = vld [vmem:[#allocation5 + $0x14a0] sm:$0xff]
    %v883 = vld [vmem:[#allocation5 + $0x14a8] sm:$0xff]
    %v884 = vld [vmem:[#allocation5 + $0x14b0] sm:$0xff]
    %v885 = vld [vmem:[#allocation5 + $0x14b8] sm:$0xff]
    %v886 = vld [vmem:[#allocation5 + $0x14c0] sm:$0xff]
    %v887 = vld [vmem:[#allocation5 + $0x14c8] sm:$0xff]
    %v888 = vld [vmem:[#allocation5 + $0x14d0] sm:$0xff]
    %v889 = vld [vmem:[#allocation5 + $0x14d8] sm:$0xff]
    %v890 = vld [vmem:[#allocation5 + $0x14e0] sm:$0xff]
    %v891 = vld [vmem:[#allocation5 + $0x14e8] sm:$0xff]
    %v892 = vld [vmem:[#allocation5 + $0x14f0] sm:$0xff]
    %v893 = vld [vmem:[#allocation5 + $0x14f8] sm:$0xff]
    %v894 = vld [vmem:[#allocation5 + $0x1500] sm:$0xff]
    %v895 = vld [vmem:[#allocation5 + $0x1508] sm:$0xff]
    %v896 = vld [vmem:[#allocation5 + $0x1510] sm:$0xff]
    %v897 = vld [vmem:[#allocation5 + $0x1518] sm:$0xff]
    %v898 = vld [vmem:[#allocation5 + $0x1520] sm:$0xff]
    %v899 = vld [vmem:[#allocation5 + $0x1528] sm:$0xff]
    %v900 = vld [vmem:[#allocation5 + $0x1530] sm:$0xff]
    %v901 = vld [vmem:[#allocation5 + $0x1538] sm:$0xff]
    %v902 = vld [vmem:[#allocation5 + $0x1540] sm:$0xff]
    %v903 = vld [vmem:[#allocation5 + $0x1548] sm:$0xff]
    %v904 = vld [vmem:[#allocation5 + $0x1550] sm:$0xff]
    %v905 = vld [vmem:[#allocation5 + $0x1558] sm:$0xff]
    %v906 = vld [vmem:[#allocation5 + $0x1560] sm:$0xff]
    %v907 = vld [vmem:[#allocation5 + $0x1568] sm:$0xff]
    %v908 = vld [vmem:[#allocation5 + $0x1570] sm:$0xff]
    %v909 = vld [vmem:[#allocation5 + $0x1578] sm:$0xff]
    %v910 = vld [vmem:[#allocation5 + $0x1580] sm:$0xff]
    %v911 = vld [vmem:[#allocation5 + $0x1588] sm:$0xff]
    %v912 = vld [vmem:[#allocation5 + $0x1590] sm:$0xff]
    %v913 = vld [vmem:[#allocation5 + $0x1598] sm:$0xff]
    %v914 = vld [vmem:[#allocation5 + $0x15a0] sm:$0xff]
    %v915 = vld [vmem:[#allocation5 + $0x15a8] sm:$0xff]
    %v916 = vld [vmem:[#allocation5 + $0x15b0] sm:$0xff]
    %v917 = vld [vmem:[#allocation5 + $0x15b8] sm:$0xff]
    %v918 = vld [vmem:[#allocation5 + $0x15c0] sm:$0xff]
    %v919 = vld [vmem:[#allocation5 + $0x15c8] sm:$0xff]
    %v920 = vld [vmem:[#allocation5 + $0x15d0] sm:$0xff]
    %v921 = vld [vmem:[#allocation5 + $0x15d8] sm:$0xff]
    %v922 = vld [vmem:[#allocation5 + $0x15e0] sm:$0xff]
    %v923 = vld [vmem:[#allocation5 + $0x15e8] sm:$0xff]
    %v924 = vld [vmem:[#allocation5 + $0x15f0] sm:$0xff]
    %v925 = vld [vmem:[#allocation5 + $0x15f8] sm:$0xff]
    %v926 = vld [vmem:[#allocation5 + $0x1600] sm:$0xff]
    %v927 = vld [vmem:[#allocation5 + $0x1608] sm:$0xff]
    %v928 = vld [vmem:[#allocation5 + $0x1610] sm:$0xff]
    %v929 = vld [vmem:[#allocation5 + $0x1618] sm:$0xff]
    %v930 = vld [vmem:[#allocation5 + $0x1620] sm:$0xff]
    %v931 = vld [vmem:[#allocation5 + $0x1628] sm:$0xff]
    %v932 = vld [vmem:[#allocation5 + $0x1630] sm:$0xff]
    %v933 = vld [vmem:[#allocation5 + $0x1638] sm:$0xff]
    %v934 = vld [vmem:[#allocation5 + $0x1640] sm:$0xff]
    %v935 = vld [vmem:[#allocation5 + $0x1648] sm:$0xff]
    %v936 = vld [vmem:[#allocation5 + $0x1650] sm:$0xff]
    %v937 = vld [vmem:[#allocation5 + $0x1658] sm:$0xff]
    %v938 = vld [vmem:[#allocation5 + $0x1660] sm:$0xff]
    %v939 = vld [vmem:[#allocation5 + $0x1668] sm:$0xff]
    %v940 = vld [vmem:[#allocation5 + $0x1670] sm:$0xff]
    %v941 = vld [vmem:[#allocation5 + $0x1678] sm:$0xff]
    %v942 = vld [vmem:[#allocation5 + $0x1680] sm:$0xff]
    %v943 = vld [vmem:[#allocation5 + $0x1688] sm:$0xff]
    %v944 = vld [vmem:[#allocation5 + $0x1690] sm:$0xff]
    %v945 = vld [vmem:[#allocation5 + $0x1698] sm:$0xff]
    %v946 = vld [vmem:[#allocation5 + $0x16a0] sm:$0xff]
    %v947 = vld [vmem:[#allocation5 + $0x16a8] sm:$0xff]
    %v948 = vld [vmem:[#allocation5 + $0x16b0] sm:$0xff]
    %v949 = vld [vmem:[#allocation5 + $0x16b8] sm:$0xff]
    %v950 = vld [vmem:[#allocation5 + $0x16c0] sm:$0xff]
    %v951 = vld [vmem:[#allocation5 + $0x16c8] sm:$0xff]
    %v952 = vld [vmem:[#allocation5 + $0x16d0] sm:$0xff]
    %v953 = vld [vmem:[#allocation5 + $0x16d8] sm:$0xff]
    %v954 = vld [vmem:[#allocation5 + $0x16e0] sm:$0xff]
    %v955 = vld [vmem:[#allocation5 + $0x16e8] sm:$0xff]
    %v956 = vld [vmem:[#allocation5 + $0x16f0] sm:$0xff]
    %v957 = vld [vmem:[#allocation5 + $0x16f8] sm:$0xff]
    %v958 = vld [vmem:[#allocation5 + $0x1700] sm:$0xff]
    %v959 = vld [vmem:[#allocation5 + $0x1708] sm:$0xff]
    %v960 = vld [vmem:[#allocation5 + $0x1710] sm:$0xff]
    %v961 = vld [vmem:[#allocation5 + $0x1718] sm:$0xff]
    %v962 = vld [vmem:[#allocation5 + $0x1720] sm:$0xff]
    %v963 = vld [vmem:[#allocation5 + $0x1728] sm:$0xff]
    %v964 = vld [vmem:[#allocation5 + $0x1730] sm:$0xff]
    %v965 = vld [vmem:[#allocation5 + $0x1738] sm:$0xff]
    %v966 = vld [vmem:[#allocation5 + $0x1740] sm:$0xff]
    %v967 = vld [vmem:[#allocation5 + $0x1748] sm:$0xff]
    %v968 = vld [vmem:[#allocation5 + $0x1750] sm:$0xff]
    %v969 = vld [vmem:[#allocation5 + $0x1758] sm:$0xff]
    %v970 = vld [vmem:[#allocation5 + $0x1760] sm:$0xff]
    %v971 = vld [vmem:[#allocation5 + $0x1768] sm:$0xff]
    %v972 = vld [vmem:[#allocation5 + $0x1770] sm:$0xff]
    %v973 = vld [vmem:[#allocation5 + $0x1778] sm:$0xff]
    %v974 = vld [vmem:[#allocation5 + $0x1780] sm:$0xff]
    %v975 = vld [vmem:[#allocation5 + $0x1788] sm:$0xff]
    %v976 = vld [vmem:[#allocation5 + $0x1790] sm:$0xff]
    %v977 = vld [vmem:[#allocation5 + $0x1798] sm:$0xff]
    %v978 = vld [vmem:[#allocation5 + $0x17a0] sm:$0xff]
    %v979 = vld [vmem:[#allocation5 + $0x17a8] sm:$0xff]
    %v980 = vld [vmem:[#allocation5 + $0x17b0] sm:$0xff]
    %v981 = vld [vmem:[#allocation5 + $0x17b8] sm:$0xff]
    %v982 = vld [vmem:[#allocation5 + $0x17c0] sm:$0xff]
    %v983 = vld [vmem:[#allocation5 + $0x17c8] sm:$0xff]
    %v984 = vld [vmem:[#allocation5 + $0x17d0] sm:$0xff]
    %v985 = vld [vmem:[#allocation5 + $0x17d8] sm:$0xff]
    %v986 = vld [vmem:[#allocation5 + $0x17e0] sm:$0xff]
    %v987 = vld [vmem:[#allocation5 + $0x17e8] sm:$0xff]
    %v988 = vld [vmem:[#allocation5 + $0x17f0] sm:$0xff]
    %v989 = vld [vmem:[#allocation5 + $0x17f8] sm:$0xff]
    %v990 = vld [vmem:[#allocation7] sm:$0x3]
    %v992 = vperm.slane %v990, 0
    %v993 = vperm.slane %v990, 1
    %996 = vmatpush.msra.mxu0 %v252
    %997 = vmatpush.msra.mxu0 %v250
    %998 = vmatpush.msra.mxu0 %v248
    %999 = vmatpush.msra.mxu0 %v246
    %1000 = vmatpush.msra.mxu0 %v244
    %1001 = vmatpush.msra.mxu0 %v242
    %1002 = vmatpush.msra.mxu0 %v240
    %1003 = vmatpush.msra.mxu0 %v238
    %1004 = vmatpush.msra.mxu0 %v236
    %1005 = vmatpush.msra.mxu0 %v234
    %1006 = vmatpush.msra.mxu0 %v232
    %1007 = vmatpush.msra.mxu0 %v230
    %1008 = vmatpush.msra.mxu0 %v228
    %1009 = vmatpush.msra.mxu0 %v226
    %1010 = vmatpush.msra.mxu0 %v224
    %1011 = vmatpush.msra.mxu0 %v222
    %1012 = vmatmul.f32.gmra.mxu0 %v198
    %v1013 = vpop.f32.mrf.mxu0
    %v1014 = vadd.f32 %v992, %v1013
    %1015 = vdwg.mxu0
    %1016 = vmatpush.msra.mxu0 %v284
    %1017 = vmatpush.msra.mxu0 %v282
    %1018 = vmatpush.msra.mxu0 %v280
    %1019 = vmatpush.msra.mxu0 %v278
    %1020 = vmatpush.msra.mxu0 %v276
    %1021 = vmatpush.msra.mxu0 %v274
    %1022 = vmatpush.msra.mxu0 %v272
    %1023 = vmatpush.msra.mxu0 %v270
    %1024 = vmatpush.msra.mxu0 %v268
    %1025 = vmatpush.msra.mxu0 %v266
    %1026 = vmatpush.msra.mxu0 %v264
    %1027 = vmatpush.msra.mxu0 %v262
    %1028 = vmatpush.msra.mxu0 %v260
    %1029 = vmatpush.msra.mxu0 %v258
    %1030 = vmatpush.msra.mxu0 %v256
    %1031 = vmatpush.msra.mxu0 %v254
    %1032 = vmatmul.f32.gmra.mxu0 %v199
    %v1033 = vpop.f32.mrf.mxu0
    %v1034 = vadd.f32 %v1014, %v1033
    %1035 = vdwg.mxu0
    %1036 = vmatpush.msra.mxu0 %v316
    %1037 = vmatpush.msra.mxu0 %v314
    %1038 = vmatpush.msra.mxu0 %v312
    %1039 = vmatpush.msra.mxu0 %v310
    %1040 = vmatpush.msra.mxu0 %v308
    %1041 = vmatpush.msra.mxu0 %v306
    %1042 = vmatpush.msra.mxu0 %v304
    %1043 = vmatpush.msra.mxu0 %v302
    %1044 = vmatpush.msra.mxu0 %v300
    %1045 = vmatpush.msra.mxu0 %v298
    %1046 = vmatpush.msra.mxu0 %v296
    %1047 = vmatpush.msra.mxu0 %v294
    %1048 = vmatpush.msra.mxu0 %v292
    %1049 = vmatpush.msra.mxu0 %v290
    %1050 = vmatpush.msra.mxu0 %v288
    %1051 = vmatpush.msra.mxu0 %v286
    %1052 = vmatmul.f32.gmra.mxu0 %v200
    %v1053 = vpop.f32.mrf.mxu0
    %v1054 = vadd.f32 %v1034, %v1053
    %1055 = vdwg.mxu0
    %1056 = vmatpush.msra.mxu0 %v348
    %1057 = vmatpush.msra.mxu0 %v346
    %1058 = vmatpush.msra.mxu0 %v344
    %1059 = vmatpush.msra.mxu0 %v342
    %1060 = vmatpush.msra.mxu0 %v340
    %1061 = vmatpush.msra.mxu0 %v338
    %1062 = vmatpush.msra.mxu0 %v336
    %1063 = vmatpush.msra.mxu0 %v334
    %1064 = vmatpush.msra.mxu0 %v332
    %1065 = vmatpush.msra.mxu0 %v330
    %1066 = vmatpush.msra.mxu0 %v328
    %1067 = vmatpush.msra.mxu0 %v326
    %1068 = vmatpush.msra.mxu0 %v324
    %1069 = vmatpush.msra.mxu0 %v322
    %1070 = vmatpush.msra.mxu0 %v320
    %1071 = vmatpush.msra.mxu0 %v318
    %1072 = vmatmul.f32.gmra.mxu0 %v201
    %v1073 = vpop.f32.mrf.mxu0
    %v1074 = vadd.f32 %v1054, %v1073
    %1075 = vdwg.mxu0
    %1076 = vmatpush.msra.mxu0 %v380
    %1077 = vmatpush.msra.mxu0 %v378
    %1078 = vmatpush.msra.mxu0 %v376
    %1079 = vmatpush.msra.mxu0 %v374
    %1080 = vmatpush.msra.mxu0 %v372
    %1081 = vmatpush.msra.mxu0 %v370
    %1082 = vmatpush.msra.mxu0 %v368
    %1083 = vmatpush.msra.mxu0 %v366
    %1084 = vmatpush.msra.mxu0 %v364
    %1085 = vmatpush.msra.mxu0 %v362
    %1086 = vmatpush.msra.mxu0 %v360
    %1087 = vmatpush.msra.mxu0 %v358
    %1088 = vmatpush.msra.mxu0 %v356
    %1089 = vmatpush.msra.mxu0 %v354
    %1090 = vmatpush.msra.mxu0 %v352
    %1091 = vmatpush.msra.mxu0 %v350
    %1092 = vmatmul.f32.gmra.mxu0 %v202
    %v1093 = vpop.f32.mrf.mxu0
    %v1094 = vadd.f32 %v1074, %v1093
    %1095 = vdwg.mxu0
    %1096 = vmatpush.msra.mxu0 %v412
    %1097 = vmatpush.msra.mxu0 %v410
    %1098 = vmatpush.msra.mxu0 %v408
    %1099 = vmatpush.msra.mxu0 %v406
    %1100 = vmatpush.msra.mxu0 %v404
    %1101 = vmatpush.msra.mxu0 %v402
    %1102 = vmatpush.msra.mxu0 %v400
    %1103 = vmatpush.msra.mxu0 %v398
    %1104 = vmatpush.msra.mxu0 %v396
    %1105 = vmatpush.msra.mxu0 %v394
    %1106 = vmatpush.msra.mxu0 %v392
    %1107 = vmatpush.msra.mxu0 %v390
    %1108 = vmatpush.msra.mxu0 %v388
    %1109 = vmatpush.msra.mxu0 %v386
    %1110 = vmatpush.msra.mxu0 %v384
    %1111 = vmatpush.msra.mxu0 %v382
    %1112 = vmatmul.f32.gmra.mxu0 %v203
    %v1113 = vpop.f32.mrf.mxu0
    %v1114 = vadd.f32 %v1094, %v1113
    %1115 = vdwg.mxu0
    %1116 = vmatpush.msra.mxu0 %v444
    %1117 = vmatpush.msra.mxu0 %v442
    %1118 = vmatpush.msra.mxu0 %v440
    %1119 = vmatpush.msra.mxu0 %v438
    %1120 = vmatpush.msra.mxu0 %v436
    %1121 = vmatpush.msra.mxu0 %v434
    %1122 = vmatpush.msra.mxu0 %v432
    %1123 = vmatpush.msra.mxu0 %v430
    %1124 = vmatpush.msra.mxu0 %v428
    %1125 = vmatpush.msra.mxu0 %v426
    %1126 = vmatpush.msra.mxu0 %v424
    %1127 = vmatpush.msra.mxu0 %v422
    %1128 = vmatpush.msra.mxu0 %v420
    %1129 = vmatpush.msra.mxu0 %v418
    %1130 = vmatpush.msra.mxu0 %v416
    %1131 = vmatpush.msra.mxu0 %v414
    %1132 = vmatmul.f32.gmra.mxu0 %v204
    %v1133 = vpop.f32.mrf.mxu0
    %v1134 = vadd.f32 %v1114, %v1133
    %1135 = vdwg.mxu0
    %1136 = vmatpush.msra.mxu0 %v476
    %1137 = vmatpush.msra.mxu0 %v474
    %1138 = vmatpush.msra.mxu0 %v472
    %1139 = vmatpush.msra.mxu0 %v470
    %1140 = vmatpush.msra.mxu0 %v468
    %1141 = vmatpush.msra.mxu0 %v466
    %1142 = vmatpush.msra.mxu0 %v464
    %1143 = vmatpush.msra.mxu0 %v462
    %1144 = vmatpush.msra.mxu0 %v460
    %1145 = vmatpush.msra.mxu0 %v458
    %1146 = vmatpush.msra.mxu0 %v456
    %1147 = vmatpush.msra.mxu0 %v454
    %1148 = vmatpush.msra.mxu0 %v452
    %1149 = vmatpush.msra.mxu0 %v450
    %1150 = vmatpush.msra.mxu0 %v448
    %1151 = vmatpush.msra.mxu0 %v446
    %1152 = vmatmul.f32.gmra.mxu0 %v205
    %v1153 = vpop.f32.mrf.mxu0
    %v1154 = vadd.f32 %v1134, %v1153
    %1155 = vdwg.mxu0
    %1156 = vmatpush.msra.mxu0 %v508
    %1157 = vmatpush.msra.mxu0 %v506
    %1158 = vmatpush.msra.mxu0 %v504
    %1159 = vmatpush.msra.mxu0 %v502
    %1160 = vmatpush.msra.mxu0 %v500
    %1161 = vmatpush.msra.mxu0 %v498
    %1162 = vmatpush.msra.mxu0 %v496
    %1163 = vmatpush.msra.mxu0 %v494
    %1164 = vmatpush.msra.mxu0 %v492
    %1165 = vmatpush.msra.mxu0 %v490
    %1166 = vmatpush.msra.mxu0 %v488
    %1167 = vmatpush.msra.mxu0 %v486
    %1168 = vmatpush.msra.mxu0 %v484
    %1169 = vmatpush.msra.mxu0 %v482
    %1170 = vmatpush.msra.mxu0 %v480
    %1171 = vmatpush.msra.mxu0 %v478
    %1172 = vmatmul.f32.gmra.mxu0 %v206
    %v1173 = vpop.f32.mrf.mxu0
    %v1174 = vadd.f32 %v1154, %v1173
    %1175 = vdwg.mxu0
    %1176 = vmatpush.msra.mxu0 %v540
    %1177 = vmatpush.msra.mxu0 %v538
    %1178 = vmatpush.msra.mxu0 %v536
    %1179 = vmatpush.msra.mxu0 %v534
    %1180 = vmatpush.msra.mxu0 %v532
    %1181 = vmatpush.msra.mxu0 %v530
    %1182 = vmatpush.msra.mxu0 %v528
    %1183 = vmatpush.msra.mxu0 %v526
    %1184 = vmatpush.msra.mxu0 %v524
    %1185 = vmatpush.msra.mxu0 %v522
    %1186 = vmatpush.msra.mxu0 %v520
    %1187 = vmatpush.msra.mxu0 %v518
    %1188 = vmatpush.msra.mxu0 %v516
    %1189 = vmatpush.msra.mxu0 %v514
    %1190 = vmatpush.msra.mxu0 %v512
    %1191 = vmatpush.msra.mxu0 %v510
    %1192 = vmatmul.f32.gmra.mxu0 %v207
    %v1193 = vpop.f32.mrf.mxu0
    %v1194 = vadd.f32 %v1174, %v1193
    %1195 = vdwg.mxu0
    %1196 = vmatpush.msra.mxu0 %v572
    %1197 = vmatpush.msra.mxu0 %v570
    %1198 = vmatpush.msra.mxu0 %v568
    %1199 = vmatpush.msra.mxu0 %v566
    %1200 = vmatpush.msra.mxu0 %v564
    %1201 = vmatpush.msra.mxu0 %v562
    %1202 = vmatpush.msra.mxu0 %v560
    %1203 = vmatpush.msra.mxu0 %v558
    %1204 = vmatpush.msra.mxu0 %v556
    %1205 = vmatpush.msra.mxu0 %v554
    %1206 = vmatpush.msra.mxu0 %v552
    %1207 = vmatpush.msra.mxu0 %v550
    %1208 = vmatpush.msra.mxu0 %v548
    %1209 = vmatpush.msra.mxu0 %v546
    %1210 = vmatpush.msra.mxu0 %v544
    %1211 = vmatpush.msra.mxu0 %v542
    %1212 = vmatmul.f32.gmra.mxu0 %v208
    %v1213 = vpop.f32.mrf.mxu0
    %v1214 = vadd.f32 %v1194, %v1213
    %1215 = vdwg.mxu0
    %1216 = vmatpush.msra.mxu0 %v604
    %1217 = vmatpush.msra.mxu0 %v602
    %1218 = vmatpush.msra.mxu0 %v600
    %1219 = vmatpush.msra.mxu0 %v598
    %1220 = vmatpush.msra.mxu0 %v596
    %1221 = vmatpush.msra.mxu0 %v594
    %1222 = vmatpush.msra.mxu0 %v592
    %1223 = vmatpush.msra.mxu0 %v590
    %1224 = vmatpush.msra.mxu0 %v588
    %1225 = vmatpush.msra.mxu0 %v586
    %1226 = vmatpush.msra.mxu0 %v584
    %1227 = vmatpush.msra.mxu0 %v582
    %1228 = vmatpush.msra.mxu0 %v580
    %1229 = vmatpush.msra.mxu0 %v578
    %1230 = vmatpush.msra.mxu0 %v576
    %1231 = vmatpush.msra.mxu0 %v574
    %1232 = vmatmul.f32.gmra.mxu0 %v209
    %v1233 = vpop.f32.mrf.mxu0
    %v1234 = vadd.f32 %v1214, %v1233
    %1235 = vdwg.mxu0
    %1236 = vmatpush.msra.mxu0 %v636
    %1237 = vmatpush.msra.mxu0 %v634
    %1238 = vmatpush.msra.mxu0 %v632
    %1239 = vmatpush.msra.mxu0 %v630
    %1240 = vmatpush.msra.mxu0 %v628
    %1241 = vmatpush.msra.mxu0 %v626
    %1242 = vmatpush.msra.mxu0 %v624
    %1243 = vmatpush.msra.mxu0 %v622
    %1244 = vmatpush.msra.mxu0 %v620
    %1245 = vmatpush.msra.mxu0 %v618
    %1246 = vmatpush.msra.mxu0 %v616
    %1247 = vmatpush.msra.mxu0 %v614
    %1248 = vmatpush.msra.mxu0 %v612
    %1249 = vmatpush.msra.mxu0 %v610
    %1250 = vmatpush.msra.mxu0 %v608
    %1251 = vmatpush.msra.mxu0 %v606
    %1252 = vmatmul.f32.gmra.mxu0 %v210
    %v1253 = vpop.f32.mrf.mxu0
    %v1254 = vadd.f32 %v1234, %v1253
    %1255 = vdwg.mxu0
    %1256 = vmatpush.msra.mxu0 %v668
    %1257 = vmatpush.msra.mxu0 %v666
    %1258 = vmatpush.msra.mxu0 %v664
    %1259 = vmatpush.msra.mxu0 %v662
    %1260 = vmatpush.msra.mxu0 %v660
    %1261 = vmatpush.msra.mxu0 %v658
    %1262 = vmatpush.msra.mxu0 %v656
    %1263 = vmatpush.msra.mxu0 %v654
    %1264 = vmatpush.msra.mxu0 %v652
    %1265 = vmatpush.msra.mxu0 %v650
    %1266 = vmatpush.msra.mxu0 %v648
    %1267 = vmatpush.msra.mxu0 %v646
    %1268 = vmatpush.msra.mxu0 %v644
    %1269 = vmatpush.msra.mxu0 %v642
    %1270 = vmatpush.msra.mxu0 %v640
    %1271 = vmatpush.msra.mxu0 %v638
    %1272 = vmatmul.f32.gmra.mxu0 %v211
    %v1273 = vpop.f32.mrf.mxu0
    %v1274 = vadd.f32 %v1254, %v1273
    %1275 = vdwg.mxu0
    %1276 = vmatpush.msra.mxu0 %v700
    %1277 = vmatpush.msra.mxu0 %v698
    %1278 = vmatpush.msra.mxu0 %v696
    %1279 = vmatpush.msra.mxu0 %v694
    %1280 = vmatpush.msra.mxu0 %v692
    %1281 = vmatpush.msra.mxu0 %v690
    %1282 = vmatpush.msra.mxu0 %v688
    %1283 = vmatpush.msra.mxu0 %v686
    %1284 = vmatpush.msra.mxu0 %v684
    %1285 = vmatpush.msra.mxu0 %v682
    %1286 = vmatpush.msra.mxu0 %v680
    %1287 = vmatpush.msra.mxu0 %v678
    %1288 = vmatpush.msra.mxu0 %v676
    %1289 = vmatpush.msra.mxu0 %v674
    %1290 = vmatpush.msra.mxu0 %v672
    %1291 = vmatpush.msra.mxu0 %v670
    %1292 = vmatmul.f32.gmra.mxu0 %v212
    %v1293 = vpop.f32.mrf.mxu0
    %v1294 = vadd.f32 %v1274, %v1293
    %1295 = vdwg.mxu0
    %1296 = vmatpush.msra.mxu0 %v732
    %1297 = vmatpush.msra.mxu0 %v730
    %1298 = vmatpush.msra.mxu0 %v728
    %1299 = vmatpush.msra.mxu0 %v726
    %1300 = vmatpush.msra.mxu0 %v724
    %1301 = vmatpush.msra.mxu0 %v722
    %1302 = vmatpush.msra.mxu0 %v720
    %1303 = vmatpush.msra.mxu0 %v718
    %1304 = vmatpush.msra.mxu0 %v716
    %1305 = vmatpush.msra.mxu0 %v714
    %1306 = vmatpush.msra.mxu0 %v712
    %1307 = vmatpush.msra.mxu0 %v710
    %1308 = vmatpush.msra.mxu0 %v708
    %1309 = vmatpush.msra.mxu0 %v706
    %1310 = vmatpush.msra.mxu0 %v704
    %1311 = vmatpush.msra.mxu0 %v702
    %1312 = vmatmul.f32.gmra.mxu0 %v213
    %v1313 = vpop.f32.mrf.mxu0
    %v1314 = vadd.f32 %v1294, %v1313
    %1315 = vdwg.mxu0
    %1316 = vmatpush.msra.mxu0 %v764
    %1317 = vmatpush.msra.mxu0 %v762
    %1318 = vmatpush.msra.mxu0 %v760
    %1319 = vmatpush.msra.mxu0 %v758
    %1320 = vmatpush.msra.mxu0 %v756
    %1321 = vmatpush.msra.mxu0 %v754
    %1322 = vmatpush.msra.mxu0 %v752
    %1323 = vmatpush.msra.mxu0 %v750
    %1324 = vmatpush.msra.mxu0 %v748
    %1325 = vmatpush.msra.mxu0 %v746
    %1326 = vmatpush.msra.mxu0 %v744
    %1327 = vmatpush.msra.mxu0 %v742
    %1328 = vmatpush.msra.mxu0 %v740
    %1329 = vmatpush.msra.mxu0 %v738
    %1330 = vmatpush.msra.mxu0 %v736
    %1331 = vmatpush.msra.mxu0 %v734
    %1332 = vmatmul.f32.gmra.mxu0 %v214
    %v1333 = vpop.f32.mrf.mxu0
    %v1334 = vadd.f32 %v1314, %v1333
    %1335 = vdwg.mxu0
    %1336 = vmatpush.msra.mxu0 %v796
    %1337 = vmatpush.msra.mxu0 %v794
    %1338 = vmatpush.msra.mxu0 %v792
    %1339 = vmatpush.msra.mxu0 %v790
    %1340 = vmatpush.msra.mxu0 %v788
    %1341 = vmatpush.msra.mxu0 %v786
    %1342 = vmatpush.msra.mxu0 %v784
    %1343 = vmatpush.msra.mxu0 %v782
    %1344 = vmatpush.msra.mxu0 %v780
    %1345 = vmatpush.msra.mxu0 %v778
    %1346 = vmatpush.msra.mxu0 %v776
    %1347 = vmatpush.msra.mxu0 %v774
    %1348 = vmatpush.msra.mxu0 %v772
    %1349 = vmatpush.msra.mxu0 %v770
    %1350 = vmatpush.msra.mxu0 %v768
    %1351 = vmatpush.msra.mxu0 %v766
    %1352 = vmatmul.f32.gmra.mxu0 %v215
    %v1353 = vpop.f32.mrf.mxu0
    %v1354 = vadd.f32 %v1334, %v1353
    %1355 = vdwg.mxu0
    %1356 = vmatpush.msra.mxu0 %v828
    %1357 = vmatpush.msra.mxu0 %v826
    %1358 = vmatpush.msra.mxu0 %v824
    %1359 = vmatpush.msra.mxu0 %v822
    %1360 = vmatpush.msra.mxu0 %v820
    %1361 = vmatpush.msra.mxu0 %v818
    %1362 = vmatpush.msra.mxu0 %v816
    %1363 = vmatpush.msra.mxu0 %v814
    %1364 = vmatpush.msra.mxu0 %v812
    %1365 = vmatpush.msra.mxu0 %v810
    %1366 = vmatpush.msra.mxu0 %v808
    %1367 = vmatpush.msra.mxu0 %v806
    %1368 = vmatpush.msra.mxu0 %v804
    %1369 = vmatpush.msra.mxu0 %v802
    %1370 = vmatpush.msra.mxu0 %v800
    %1371 = vmatpush.msra.mxu0 %v798
    %1372 = vmatmul.f32.gmra.mxu0 %v216
    %v1373 = vpop.f32.mrf.mxu0
    %v1374 = vadd.f32 %v1354, %v1373
    %1375 = vdwg.mxu0
    %1376 = vmatpush.msra.mxu0 %v860
    %1377 = vmatpush.msra.mxu0 %v858
    %1378 = vmatpush.msra.mxu0 %v856
    %1379 = vmatpush.msra.mxu0 %v854
    %1380 = vmatpush.msra.mxu0 %v852
    %1381 = vmatpush.msra.mxu0 %v850
    %1382 = vmatpush.msra.mxu0 %v848
    %1383 = vmatpush.msra.mxu0 %v846
    %1384 = vmatpush.msra.mxu0 %v844
    %1385 = vmatpush.msra.mxu0 %v842
    %1386 = vmatpush.msra.mxu0 %v840
    %1387 = vmatpush.msra.mxu0 %v838
    %1388 = vmatpush.msra.mxu0 %v836
    %1389 = vmatpush.msra.mxu0 %v834
    %1390 = vmatpush.msra.mxu0 %v832
    %1391 = vmatpush.msra.mxu0 %v830
    %1392 = vmatmul.f32.gmra.mxu0 %v217
    %v1393 = vpop.f32.mrf.mxu0
    %v1394 = vadd.f32 %v1374, %v1393
    %1395 = vdwg.mxu0
    %1396 = vmatpush.msra.mxu0 %v892
    %1397 = vmatpush.msra.mxu0 %v890
    %1398 = vmatpush.msra.mxu0 %v888
    %1399 = vmatpush.msra.mxu0 %v886
    %1400 = vmatpush.msra.mxu0 %v884
    %1401 = vmatpush.msra.mxu0 %v882
    %1402 = vmatpush.msra.mxu0 %v880
    %1403 = vmatpush.msra.mxu0 %v878
    %1404 = vmatpush.msra.mxu0 %v876
    %1405 = vmatpush.msra.mxu0 %v874
    %1406 = vmatpush.msra.mxu0 %v872
    %1407 = vmatpush.msra.mxu0 %v870
    %1408 = vmatpush.msra.mxu0 %v868
    %1409 = vmatpush.msra.mxu0 %v866
    %1410 = vmatpush.msra.mxu0 %v864
    %1411 = vmatpush.msra.mxu0 %v862
    %1412 = vmatmul.f32.gmra.mxu0 %v218
    %v1413 = vpop.f32.mrf.mxu0
    %v1414 = vadd.f32 %v1394, %v1413
    %1415 = vdwg.mxu0
    %1416 = vmatpush.msra.mxu0 %v924
    %1417 = vmatpush.msra.mxu0 %v922
    %1418 = vmatpush.msra.mxu0 %v920
    %1419 = vmatpush.msra.mxu0 %v918
    %1420 = vmatpush.msra.mxu0 %v916
    %1421 = vmatpush.msra.mxu0 %v914
    %1422 = vmatpush.msra.mxu0 %v912
    %1423 = vmatpush.msra.mxu0 %v910
    %1424 = vmatpush.msra.mxu0 %v908
    %1425 = vmatpush.msra.mxu0 %v906
    %1426 = vmatpush.msra.mxu0 %v904
    %1427 = vmatpush.msra.mxu0 %v902
    %1428 = vmatpush.msra.mxu0 %v900
    %1429 = vmatpush.msra.mxu0 %v898
    %1430 = vmatpush.msra.mxu0 %v896
    %1431 = vmatpush.msra.mxu0 %v894
    %1432 = vmatmul.f32.gmra.mxu0 %v219
    %v1433 = vpop.f32.mrf.mxu0
    %v1434 = vadd.f32 %v1414, %v1433
    %1435 = vdwg.mxu0
    %1436 = vmatpush.msra.mxu0 %v956
    %1437 = vmatpush.msra.mxu0 %v954
    %1438 = vmatpush.msra.mxu0 %v952
    %1439 = vmatpush.msra.mxu0 %v950
    %1440 = vmatpush.msra.mxu0 %v948
    %1441 = vmatpush.msra.mxu0 %v946
    %1442 = vmatpush.msra.mxu0 %v944
    %1443 = vmatpush.msra.mxu0 %v942
    %1444 = vmatpush.msra.mxu0 %v940
    %1445 = vmatpush.msra.mxu0 %v938
    %1446 = vmatpush.msra.mxu0 %v936
    %1447 = vmatpush.msra.mxu0 %v934
    %1448 = vmatpush.msra.mxu0 %v932
    %1449 = vmatpush.msra.mxu0 %v930
    %1450 = vmatpush.msra.mxu0 %v928
    %1451 = vmatpush.msra.mxu0 %v926
    %1452 = vmatmul.f32.gmra.mxu0 %v220
    %v1453 = vpop.f32.mrf.mxu0
    %v1454 = vadd.f32 %v1434, %v1453
    %1455 = vdwg.mxu0
    %1456 = vmatpush.msra.mxu0 %v988
    %1457 = vmatpush.msra.mxu0 %v986
    %1458 = vmatpush.msra.mxu0 %v984
    %1459 = vmatpush.msra.mxu0 %v982
    %1460 = vmatpush.msra.mxu0 %v980
    %1461 = vmatpush.msra.mxu0 %v978
    %1462 = vmatpush.msra.mxu0 %v976
    %1463 = vmatpush.msra.mxu0 %v974
    %1464 = vmatpush.msra.mxu0 %v972
    %1465 = vmatpush.msra.mxu0 %v970
    %1466 = vmatpush.msra.mxu0 %v968
    %1467 = vmatpush.msra.mxu0 %v966
    %1468 = vmatpush.msra.mxu0 %v964
    %1469 = vmatpush.msra.mxu0 %v962
    %1470 = vmatpush.msra.mxu0 %v960
    %1471 = vmatpush.msra.mxu0 %v958
    %1472 = vmatmul.f32.gmra.mxu0 %v221
    %v1473 = vpop.f32.mrf.mxu0
    %v1474 = vadd.f32 %v1454, %v1473
    %1475 = vdwg.mxu0
    %1476 = vmatpush.msra.mxu0 %v253
    %1477 = vmatpush.msra.mxu0 %v251
    %1478 = vmatpush.msra.mxu0 %v249
    %1479 = vmatpush.msra.mxu0 %v247
    %1480 = vmatpush.msra.mxu0 %v245
    %1481 = vmatpush.msra.mxu0 %v243
    %1482 = vmatpush.msra.mxu0 %v241
    %1483 = vmatpush.msra.mxu0 %v239
    %1484 = vmatpush.msra.mxu0 %v237
    %1485 = vmatpush.msra.mxu0 %v235
    %1486 = vmatpush.msra.mxu0 %v233
    %1487 = vmatpush.msra.mxu0 %v231
    %1488 = vmatpush.msra.mxu0 %v229
    %1489 = vmatpush.msra.mxu0 %v227
    %1490 = vmatpush.msra.mxu0 %v225
    %1491 = vmatpush.msra.mxu0 %v223
    %1492 = vmatmul.f32.gmra.mxu0 %v198
    %v1493 = vpop.f32.mrf.mxu0
    %v1494 = vadd.f32 %v993, %v1493
    %1495 = vdwg.mxu0
    %1496 = vmatpush.msra.mxu0 %v285
    %1497 = vmatpush.msra.mxu0 %v283
    %1498 = vmatpush.msra.mxu0 %v281
    %1499 = vmatpush.msra.mxu0 %v279
    %1500 = vmatpush.msra.mxu0 %v277
    %1501 = vmatpush.msra.mxu0 %v275
    %1502 = vmatpush.msra.mxu0 %v273
    %1503 = vmatpush.msra.mxu0 %v271
    %1504 = vmatpush.msra.mxu0 %v269
    %1505 = vmatpush.msra.mxu0 %v267
    %1506 = vmatpush.msra.mxu0 %v265
    %1507 = vmatpush.msra.mxu0 %v263
    %1508 = vmatpush.msra.mxu0 %v261
    %1509 = vmatpush.msra.mxu0 %v259
    %1510 = vmatpush.msra.mxu0 %v257
    %1511 = vmatpush.msra.mxu0 %v255
    %1512 = vmatmul.f32.gmra.mxu0 %v199
    %v1513 = vpop.f32.mrf.mxu0
    %v1514 = vadd.f32 %v1494, %v1513
    %1515 = vdwg.mxu0
    %1516 = vmatpush.msra.mxu0 %v317
    %1517 = vmatpush.msra.mxu0 %v315
    %1518 = vmatpush.msra.mxu0 %v313
    %1519 = vmatpush.msra.mxu0 %v311
    %1520 = vmatpush.msra.mxu0 %v309
    %1521 = vmatpush.msra.mxu0 %v307
    %1522 = vmatpush.msra.mxu0 %v305
    %1523 = vmatpush.msra.mxu0 %v303
    %1524 = vmatpush.msra.mxu0 %v301
    %1525 = vmatpush.msra.mxu0 %v299
    %1526 = vmatpush.msra.mxu0 %v297
    %1527 = vmatpush.msra.mxu0 %v295
    %1528 = vmatpush.msra.mxu0 %v293
    %1529 = vmatpush.msra.mxu0 %v291
    %1530 = vmatpush.msra.mxu0 %v289
    %1531 = vmatpush.msra.mxu0 %v287
    %1532 = vmatmul.f32.gmra.mxu0 %v200
    %v1533 = vpop.f32.mrf.mxu0
    %v1534 = vadd.f32 %v1514, %v1533
    %1535 = vdwg.mxu0
    %1536 = vmatpush.msra.mxu0 %v349
    %1537 = vmatpush.msra.mxu0 %v347
    %1538 = vmatpush.msra.mxu0 %v345
    %1539 = vmatpush.msra.mxu0 %v343
    %1540 = vmatpush.msra.mxu0 %v341
    %1541 = vmatpush.msra.mxu0 %v339
    %1542 = vmatpush.msra.mxu0 %v337
    %1543 = vmatpush.msra.mxu0 %v335
    %1544 = vmatpush.msra.mxu0 %v333
    %1545 = vmatpush.msra.mxu0 %v331
    %1546 = vmatpush.msra.mxu0 %v329
    %1547 = vmatpush.msra.mxu0 %v327
    %1548 = vmatpush.msra.mxu0 %v325
    %1549 = vmatpush.msra.mxu0 %v323
    %1550 = vmatpush.msra.mxu0 %v321
    %1551 = vmatpush.msra.mxu0 %v319
    %1552 = vmatmul.f32.gmra.mxu0 %v201
    %v1553 = vpop.f32.mrf.mxu0
    %v1554 = vadd.f32 %v1534, %v1553
    %1555 = vdwg.mxu0
    %1556 = vmatpush.msra.mxu0 %v381
    %1557 = vmatpush.msra.mxu0 %v379
    %1558 = vmatpush.msra.mxu0 %v377
    %1559 = vmatpush.msra.mxu0 %v375
    %1560 = vmatpush.msra.mxu0 %v373
    %1561 = vmatpush.msra.mxu0 %v371
    %1562 = vmatpush.msra.mxu0 %v369
    %1563 = vmatpush.msra.mxu0 %v367
    %1564 = vmatpush.msra.mxu0 %v365
    %1565 = vmatpush.msra.mxu0 %v363
    %1566 = vmatpush.msra.mxu0 %v361
    %1567 = vmatpush.msra.mxu0 %v359
    %1568 = vmatpush.msra.mxu0 %v357
    %1569 = vmatpush.msra.mxu0 %v355
    %1570 = vmatpush.msra.mxu0 %v353
    %1571 = vmatpush.msra.mxu0 %v351
    %1572 = vmatmul.f32.gmra.mxu0 %v202
    %v1573 = vpop.f32.mrf.mxu0
    %v1574 = vadd.f32 %v1554, %v1573
    %1575 = vdwg.mxu0
    %1576 = vmatpush.msra.mxu0 %v413
    %1577 = vmatpush.msra.mxu0 %v411
    %1578 = vmatpush.msra.mxu0 %v409
    %1579 = vmatpush.msra.mxu0 %v407
    %1580 = vmatpush.msra.mxu0 %v405
    %1581 = vmatpush.msra.mxu0 %v403
    %1582 = vmatpush.msra.mxu0 %v401
    %1583 = vmatpush.msra.mxu0 %v399
    %1584 = vmatpush.msra.mxu0 %v397
    %1585 = vmatpush.msra.mxu0 %v395
    %1586 = vmatpush.msra.mxu0 %v393
    %1587 = vmatpush.msra.mxu0 %v391
    %1588 = vmatpush.msra.mxu0 %v389
    %1589 = vmatpush.msra.mxu0 %v387
    %1590 = vmatpush.msra.mxu0 %v385
    %1591 = vmatpush.msra.mxu0 %v383
    %1592 = vmatmul.f32.gmra.mxu0 %v203
    %v1593 = vpop.f32.mrf.mxu0
    %v1594 = vadd.f32 %v1574, %v1593
    %1595 = vdwg.mxu0
    %1596 = vmatpush.msra.mxu0 %v445
    %1597 = vmatpush.msra.mxu0 %v443
    %1598 = vmatpush.msra.mxu0 %v441
    %1599 = vmatpush.msra.mxu0 %v439
    %1600 = vmatpush.msra.mxu0 %v437
    %1601 = vmatpush.msra.mxu0 %v435
    %1602 = vmatpush.msra.mxu0 %v433
    %1603 = vmatpush.msra.mxu0 %v431
    %1604 = vmatpush.msra.mxu0 %v429
    %1605 = vmatpush.msra.mxu0 %v427
    %1606 = vmatpush.msra.mxu0 %v425
    %1607 = vmatpush.msra.mxu0 %v423
    %1608 = vmatpush.msra.mxu0 %v421
    %1609 = vmatpush.msra.mxu0 %v419
    %1610 = vmatpush.msra.mxu0 %v417
    %1611 = vmatpush.msra.mxu0 %v415
    %1612 = vmatmul.f32.gmra.mxu0 %v204
    %v1613 = vpop.f32.mrf.mxu0
    %v1614 = vadd.f32 %v1594, %v1613
    %1615 = vdwg.mxu0
    %1616 = vmatpush.msra.mxu0 %v477
    %1617 = vmatpush.msra.mxu0 %v475
    %1618 = vmatpush.msra.mxu0 %v473
    %1619 = vmatpush.msra.mxu0 %v471
    %1620 = vmatpush.msra.mxu0 %v469
    %1621 = vmatpush.msra.mxu0 %v467
    %1622 = vmatpush.msra.mxu0 %v465
    %1623 = vmatpush.msra.mxu0 %v463
    %1624 = vmatpush.msra.mxu0 %v461
    %1625 = vmatpush.msra.mxu0 %v459
    %1626 = vmatpush.msra.mxu0 %v457
    %1627 = vmatpush.msra.mxu0 %v455
    %1628 = vmatpush.msra.mxu0 %v453
    %1629 = vmatpush.msra.mxu0 %v451
    %1630 = vmatpush.msra.mxu0 %v449
    %1631 = vmatpush.msra.mxu0 %v447
    %1632 = vmatmul.f32.gmra.mxu0 %v205
    %v1633 = vpop.f32.mrf.mxu0
    %v1634 = vadd.f32 %v1614, %v1633
    %1635 = vdwg.mxu0
    %1636 = vmatpush.msra.mxu0 %v509
    %1637 = vmatpush.msra.mxu0 %v507
    %1638 = vmatpush.msra.mxu0 %v505
    %1639 = vmatpush.msra.mxu0 %v503
    %1640 = vmatpush.msra.mxu0 %v501
    %1641 = vmatpush.msra.mxu0 %v499
    %1642 = vmatpush.msra.mxu0 %v497
    %1643 = vmatpush.msra.mxu0 %v495
    %1644 = vmatpush.msra.mxu0 %v493
    %1645 = vmatpush.msra.mxu0 %v491
    %1646 = vmatpush.msra.mxu0 %v489
    %1647 = vmatpush.msra.mxu0 %v487
    %1648 = vmatpush.msra.mxu0 %v485
    %1649 = vmatpush.msra.mxu0 %v483
    %1650 = vmatpush.msra.mxu0 %v481
    %1651 = vmatpush.msra.mxu0 %v479
    %1652 = vmatmul.f32.gmra.mxu0 %v206
    %v1653 = vpop.f32.mrf.mxu0
    %v1654 = vadd.f32 %v1634, %v1653
    %1655 = vdwg.mxu0
    %1656 = vmatpush.msra.mxu0 %v541
    %1657 = vmatpush.msra.mxu0 %v539
    %1658 = vmatpush.msra.mxu0 %v537
    %1659 = vmatpush.msra.mxu0 %v535
    %1660 = vmatpush.msra.mxu0 %v533
    %1661 = vmatpush.msra.mxu0 %v531
    %1662 = vmatpush.msra.mxu0 %v529
    %1663 = vmatpush.msra.mxu0 %v527
    %1664 = vmatpush.msra.mxu0 %v525
    %1665 = vmatpush.msra.mxu0 %v523
    %1666 = vmatpush.msra.mxu0 %v521
    %1667 = vmatpush.msra.mxu0 %v519
    %1668 = vmatpush.msra.mxu0 %v517
    %1669 = vmatpush.msra.mxu0 %v515
    %1670 = vmatpush.msra.mxu0 %v513
    %1671 = vmatpush.msra.mxu0 %v511
    %1672 = vmatmul.f32.gmra.mxu0 %v207
    %v1673 = vpop.f32.mrf.mxu0
    %v1674 = vadd.f32 %v1654, %v1673
    %1675 = vdwg.mxu0
    %1676 = vmatpush.msra.mxu0 %v573
    %1677 = vmatpush.msra.mxu0 %v571
    %1678 = vmatpush.msra.mxu0 %v569
    %1679 = vmatpush.msra.mxu0 %v567
    %1680 = vmatpush.msra.mxu0 %v565
    %1681 = vmatpush.msra.mxu0 %v563
    %1682 = vmatpush.msra.mxu0 %v561
    %1683 = vmatpush.msra.mxu0 %v559
    %1684 = vmatpush.msra.mxu0 %v557
    %1685 = vmatpush.msra.mxu0 %v555
    %1686 = vmatpush.msra.mxu0 %v553
    %1687 = vmatpush.msra.mxu0 %v551
    %1688 = vmatpush.msra.mxu0 %v549
    %1689 = vmatpush.msra.mxu0 %v547
    %1690 = vmatpush.msra.mxu0 %v545
    %1691 = vmatpush.msra.mxu0 %v543
    %1692 = vmatmul.f32.gmra.mxu0 %v208
    %v1693 = vpop.f32.mrf.mxu0
    %v1694 = vadd.f32 %v1674, %v1693
    %1695 = vdwg.mxu0
    %1696 = vmatpush.msra.mxu0 %v605
    %1697 = vmatpush.msra.mxu0 %v603
    %1698 = vmatpush.msra.mxu0 %v601
    %1699 = vmatpush.msra.mxu0 %v599
    %1700 = vmatpush.msra.mxu0 %v597
    %1701 = vmatpush.msra.mxu0 %v595
    %1702 = vmatpush.msra.mxu0 %v593
    %1703 = vmatpush.msra.mxu0 %v591
    %1704 = vmatpush.msra.mxu0 %v589
    %1705 = vmatpush.msra.mxu0 %v587
    %1706 = vmatpush.msra.mxu0 %v585
    %1707 = vmatpush.msra.mxu0 %v583
    %1708 = vmatpush.msra.mxu0 %v581
    %1709 = vmatpush.msra.mxu0 %v579
    %1710 = vmatpush.msra.mxu0 %v577
    %1711 = vmatpush.msra.mxu0 %v575
    %1712 = vmatmul.f32.gmra.mxu0 %v209
    %v1713 = vpop.f32.mrf.mxu0
    %v1714 = vadd.f32 %v1694, %v1713
    %1715 = vdwg.mxu0
    %1716 = vmatpush.msra.mxu0 %v637
    %1717 = vmatpush.msra.mxu0 %v635
    %1718 = vmatpush.msra.mxu0 %v633
    %1719 = vmatpush.msra.mxu0 %v631
    %1720 = vmatpush.msra.mxu0 %v629
    %1721 = vmatpush.msra.mxu0 %v627
    %1722 = vmatpush.msra.mxu0 %v625
    %1723 = vmatpush.msra.mxu0 %v623
    %1724 = vmatpush.msra.mxu0 %v621
    %1725 = vmatpush.msra.mxu0 %v619
    %1726 = vmatpush.msra.mxu0 %v617
    %1727 = vmatpush.msra.mxu0 %v615
    %1728 = vmatpush.msra.mxu0 %v613
    %1729 = vmatpush.msra.mxu0 %v611
    %1730 = vmatpush.msra.mxu0 %v609
    %1731 = vmatpush.msra.mxu0 %v607
    %1732 = vmatmul.f32.gmra.mxu0 %v210
    %v1733 = vpop.f32.mrf.mxu0
    %v1734 = vadd.f32 %v1714, %v1733
    %1735 = vdwg.mxu0
    %1736 = vmatpush.msra.mxu0 %v669
    %1737 = vmatpush.msra.mxu0 %v667
    %1738 = vmatpush.msra.mxu0 %v665
    %1739 = vmatpush.msra.mxu0 %v663
    %1740 = vmatpush.msra.mxu0 %v661
    %1741 = vmatpush.msra.mxu0 %v659
    %1742 = vmatpush.msra.mxu0 %v657
    %1743 = vmatpush.msra.mxu0 %v655
    %1744 = vmatpush.msra.mxu0 %v653
    %1745 = vmatpush.msra.mxu0 %v651
    %1746 = vmatpush.msra.mxu0 %v649
    %1747 = vmatpush.msra.mxu0 %v647
    %1748 = vmatpush.msra.mxu0 %v645
    %1749 = vmatpush.msra.mxu0 %v643
    %1750 = vmatpush.msra.mxu0 %v641
    %1751 = vmatpush.msra.mxu0 %v639
    %1752 = vmatmul.f32.gmra.mxu0 %v211
    %v1753 = vpop.f32.mrf.mxu0
    %v1754 = vadd.f32 %v1734, %v1753
    %1755 = vdwg.mxu0
    %1756 = vmatpush.msra.mxu0 %v701
    %1757 = vmatpush.msra.mxu0 %v699
    %1758 = vmatpush.msra.mxu0 %v697
    %1759 = vmatpush.msra.mxu0 %v695
    %1760 = vmatpush.msra.mxu0 %v693
    %1761 = vmatpush.msra.mxu0 %v691
    %1762 = vmatpush.msra.mxu0 %v689
    %1763 = vmatpush.msra.mxu0 %v687
    %1764 = vmatpush.msra.mxu0 %v685
    %1765 = vmatpush.msra.mxu0 %v683
    %1766 = vmatpush.msra.mxu0 %v681
    %1767 = vmatpush.msra.mxu0 %v679
    %1768 = vmatpush.msra.mxu0 %v677
    %1769 = vmatpush.msra.mxu0 %v675
    %1770 = vmatpush.msra.mxu0 %v673
    %1771 = vmatpush.msra.mxu0 %v671
    %1772 = vmatmul.f32.gmra.mxu0 %v212
    %v1773 = vpop.f32.mrf.mxu0
    %v1774 = vadd.f32 %v1754, %v1773
    %1775 = vdwg.mxu0
    %1776 = vmatpush.msra.mxu0 %v733
    %1777 = vmatpush.msra.mxu0 %v731
    %1778 = vmatpush.msra.mxu0 %v729
    %1779 = vmatpush.msra.mxu0 %v727
    %1780 = vmatpush.msra.mxu0 %v725
    %1781 = vmatpush.msra.mxu0 %v723
    %1782 = vmatpush.msra.mxu0 %v721
    %1783 = vmatpush.msra.mxu0 %v719
    %1784 = vmatpush.msra.mxu0 %v717
    %1785 = vmatpush.msra.mxu0 %v715
    %1786 = vmatpush.msra.mxu0 %v713
    %1787 = vmatpush.msra.mxu0 %v711
    %1788 = vmatpush.msra.mxu0 %v709
    %1789 = vmatpush.msra.mxu0 %v707
    %1790 = vmatpush.msra.mxu0 %v705
    %1791 = vmatpush.msra.mxu0 %v703
    %1792 = vmatmul.f32.gmra.mxu0 %v213
    %v1793 = vpop.f32.mrf.mxu0
    %v1794 = vadd.f32 %v1774, %v1793
    %1795 = vdwg.mxu0
    %1796 = vmatpush.msra.mxu0 %v765
    %1797 = vmatpush.msra.mxu0 %v763
    %1798 = vmatpush.msra.mxu0 %v761
    %1799 = vmatpush.msra.mxu0 %v759
    %1800 = vmatpush.msra.mxu0 %v757
    %1801 = vmatpush.msra.mxu0 %v755
    %1802 = vmatpush.msra.mxu0 %v753
    %1803 = vmatpush.msra.mxu0 %v751
    %1804 = vmatpush.msra.mxu0 %v749
    %1805 = vmatpush.msra.mxu0 %v747
    %1806 = vmatpush.msra.mxu0 %v745
    %1807 = vmatpush.msra.mxu0 %v743
    %1808 = vmatpush.msra.mxu0 %v741
    %1809 = vmatpush.msra.mxu0 %v739
    %1810 = vmatpush.msra.mxu0 %v737
    %1811 = vmatpush.msra.mxu0 %v735
    %1812 = vmatmul.f32.gmra.mxu0 %v214
    %v1813 = vpop.f32.mrf.mxu0
    %v1814 = vadd.f32 %v1794, %v1813
    %1815 = vdwg.mxu0
    %1816 = vmatpush.msra.mxu0 %v797
    %1817 = vmatpush.msra.mxu0 %v795
    %1818 = vmatpush.msra.mxu0 %v793
    %1819 = vmatpush.msra.mxu0 %v791
    %1820 = vmatpush.msra.mxu0 %v789
    %1821 = vmatpush.msra.mxu0 %v787
    %1822 = vmatpush.msra.mxu0 %v785
    %1823 = vmatpush.msra.mxu0 %v783
    %1824 = vmatpush.msra.mxu0 %v781
    %1825 = vmatpush.msra.mxu0 %v779
    %1826 = vmatpush.msra.mxu0 %v777
    %1827 = vmatpush.msra.mxu0 %v775
    %1828 = vmatpush.msra.mxu0 %v773
    %1829 = vmatpush.msra.mxu0 %v771
    %1830 = vmatpush.msra.mxu0 %v769
    %1831 = vmatpush.msra.mxu0 %v767
    %1832 = vmatmul.f32.gmra.mxu0 %v215
    %v1833 = vpop.f32.mrf.mxu0
    %v1834 = vadd.f32 %v1814, %v1833
    %1835 = vdwg.mxu0
    %1836 = vmatpush.msra.mxu0 %v829
    %1837 = vmatpush.msra.mxu0 %v827
    %1838 = vmatpush.msra.mxu0 %v825
    %1839 = vmatpush.msra.mxu0 %v823
    %1840 = vmatpush.msra.mxu0 %v821
    %1841 = vmatpush.msra.mxu0 %v819
    %1842 = vmatpush.msra.mxu0 %v817
    %1843 = vmatpush.msra.mxu0 %v815
    %1844 = vmatpush.msra.mxu0 %v813
    %1845 = vmatpush.msra.mxu0 %v811
    %1846 = vmatpush.msra.mxu0 %v809
    %1847 = vmatpush.msra.mxu0 %v807
    %1848 = vmatpush.msra.mxu0 %v805
    %1849 = vmatpush.msra.mxu0 %v803
    %1850 = vmatpush.msra.mxu0 %v801
    %1851 = vmatpush.msra.mxu0 %v799
    %1852 = vmatmul.f32.gmra.mxu0 %v216
    %v1853 = vpop.f32.mrf.mxu0
    %v1854 = vadd.f32 %v1834, %v1853
    %1855 = vdwg.mxu0
    %1856 = vmatpush.msra.mxu0 %v861
    %1857 = vmatpush.msra.mxu0 %v859
    %1858 = vmatpush.msra.mxu0 %v857
    %1859 = vmatpush.msra.mxu0 %v855
    %1860 = vmatpush.msra.mxu0 %v853
    %1861 = vmatpush.msra.mxu0 %v851
    %1862 = vmatpush.msra.mxu0 %v849
    %1863 = vmatpush.msra.mxu0 %v847
    %1864 = vmatpush.msra.mxu0 %v845
    %1865 = vmatpush.msra.mxu0 %v843
    %1866 = vmatpush.msra.mxu0 %v841
    %1867 = vmatpush.msra.mxu0 %v839
    %1868 = vmatpush.msra.mxu0 %v837
    %1869 = vmatpush.msra.mxu0 %v835
    %1870 = vmatpush.msra.mxu0 %v833
    %1871 = vmatpush.msra.mxu0 %v831
    %1872 = vmatmul.f32.gmra.mxu0 %v217
    %v1873 = vpop.f32.mrf.mxu0
    %v1874 = vadd.f32 %v1854, %v1873
    %1875 = vdwg.mxu0
    %1876 = vmatpush.msra.mxu0 %v893
    %1877 = vmatpush.msra.mxu0 %v891
    %1878 = vmatpush.msra.mxu0 %v889
    %1879 = vmatpush.msra.mxu0 %v887
    %1880 = vmatpush.msra.mxu0 %v885
    %1881 = vmatpush.msra.mxu0 %v883
    %1882 = vmatpush.msra.mxu0 %v881
    %1883 = vmatpush.msra.mxu0 %v879
    %1884 = vmatpush.msra.mxu0 %v877
    %1885 = vmatpush.msra.mxu0 %v875
    %1886 = vmatpush.msra.mxu0 %v873
    %1887 = vmatpush.msra.mxu0 %v871
    %1888 = vmatpush.msra.mxu0 %v869
    %1889 = vmatpush.msra.mxu0 %v867
    %1890 = vmatpush.msra.mxu0 %v865
    %1891 = vmatpush.msra.mxu0 %v863
    %1892 = vmatmul.f32.gmra.mxu0 %v218
    %v1893 = vpop.f32.mrf.mxu0
    %v1894 = vadd.f32 %v1874, %v1893
    %1895 = vdwg.mxu0
    %1896 = vmatpush.msra.mxu0 %v925
    %1897 = vmatpush.msra.mxu0 %v923
    %1898 = vmatpush.msra.mxu0 %v921
    %1899 = vmatpush.msra.mxu0 %v919
    %1900 = vmatpush.msra.mxu0 %v917
    %1901 = vmatpush.msra.mxu0 %v915
    %1902 = vmatpush.msra.mxu0 %v913
    %1903 = vmatpush.msra.mxu0 %v911
    %1904 = vmatpush.msra.mxu0 %v909
    %1905 = vmatpush.msra.mxu0 %v907
    %1906 = vmatpush.msra.mxu0 %v905
    %1907 = vmatpush.msra.mxu0 %v903
    %1908 = vmatpush.msra.mxu0 %v901
    %1909 = vmatpush.msra.mxu0 %v899
    %1910 = vmatpush.msra.mxu0 %v897
    %1911 = vmatpush.msra.mxu0 %v895
    %1912 = vmatmul.f32.gmra.mxu0 %v219
    %v1913 = vpop.f32.mrf.mxu0
    %v1914 = vadd.f32 %v1894, %v1913
    %1915 = vdwg.mxu0
    %1916 = vmatpush.msra.mxu0 %v957
    %1917 = vmatpush.msra.mxu0 %v955
    %1918 = vmatpush.msra.mxu0 %v953
    %1919 = vmatpush.msra.mxu0 %v951
    %1920 = vmatpush.msra.mxu0 %v949
    %1921 = vmatpush.msra.mxu0 %v947
    %1922 = vmatpush.msra.mxu0 %v945
    %1923 = vmatpush.msra.mxu0 %v943
    %1924 = vmatpush.msra.mxu0 %v941
    %1925 = vmatpush.msra.mxu0 %v939
    %1926 = vmatpush.msra.mxu0 %v937
    %1927 = vmatpush.msra.mxu0 %v935
    %1928 = vmatpush.msra.mxu0 %v933
    %1929 = vmatpush.msra.mxu0 %v931
    %1930 = vmatpush.msra.mxu0 %v929
    %1931 = vmatpush.msra.mxu0 %v927
    %1932 = vmatmul.f32.gmra.mxu0 %v220
    %v1933 = vpop.f32.mrf.mxu0
    %v1934 = vadd.f32 %v1914, %v1933
    %1935 = vdwg.mxu0
    %1936 = vmatpush.msra.mxu0 %v989
    %1937 = vmatpush.msra.mxu0 %v987
    %1938 = vmatpush.msra.mxu0 %v985
    %1939 = vmatpush.msra.mxu0 %v983
    %1940 = vmatpush.msra.mxu0 %v981
    %1941 = vmatpush.msra.mxu0 %v979
    %1942 = vmatpush.msra.mxu0 %v977
    %1943 = vmatpush.msra.mxu0 %v975
    %1944 = vmatpush.msra.mxu0 %v973
    %1945 = vmatpush.msra.mxu0 %v971
    %1946 = vmatpush.msra.mxu0 %v969
    %1947 = vmatpush.msra.mxu0 %v967
    %1948 = vmatpush.msra.mxu0 %v965
    %1949 = vmatpush.msra.mxu0 %v963
    %1950 = vmatpush.msra.mxu0 %v961
    %1951 = vmatpush.msra.mxu0 %v959
    %1952 = vmatmul.f32.gmra.mxu0 %v221
    %v1953 = vpop.f32.mrf.mxu0
    %v1954 = vadd.f32 %v1934, %v1953
    %1955 = vdwg.mxu0
    %v1956 = vmax.f32 %v1474, 0.0
    %v1957 = vmax.f32 %v1954, 0.0
    %v1958 = vld [vmem:[#allocation8] sm:$0xff]
    %v1959 = vld [vmem:[#allocation8 + $0x8] sm:$0xff]
    %v1960 = vld [vmem:[#allocation8 + $0x10] sm:$0xff]
    %v1961 = vld [vmem:[#allocation8 + $0x18] sm:$0xff]
    %v1962 = vld [vmem:[#allocation8 + $0x20] sm:$0xff]
    %v1963 = vld [vmem:[#allocation8 + $0x28] sm:$0xff]
    %v1964 = vld [vmem:[#allocation8 + $0x30] sm:$0xff]
    %v1965 = vld [vmem:[#allocation8 + $0x38] sm:$0xff]
    %v1966 = vld [vmem:[#allocation8 + $0x40] sm:$0xff]
    %v1967 = vld [vmem:[#allocation8 + $0x48] sm:$0xff]
    %v1968 = vld [vmem:[#allocation8 + $0x50] sm:$0xff]
    %v1969 = vld [vmem:[#allocation8 + $0x58] sm:$0xff]
    %v1970 = vld [vmem:[#allocation8 + $0x60] sm:$0xff]
    %v1971 = vld [vmem:[#allocation8 + $0x68] sm:$0xff]
    %v1972 = vld [vmem:[#allocation8 + $0x70] sm:$0xff]
    %v1973 = vld [vmem:[#allocation8 + $0x78] sm:$0xff]
    %v1974 = vld [vmem:[#allocation8 + $0x80] sm:$0xff]
    %v1975 = vld [vmem:[#allocation8 + $0x88] sm:$0xff]
    %v1976 = vld [vmem:[#allocation8 + $0x90] sm:$0xff]
    %v1977 = vld [vmem:[#allocation8 + $0x98] sm:$0xff]
    %v1978 = vld [vmem:[#allocation8 + $0xa0] sm:$0xff]
    %v1979 = vld [vmem:[#allocation8 + $0xa8] sm:$0xff]
    %v1980 = vld [vmem:[#allocation8 + $0xb0] sm:$0xff]
    %v1981 = vld [vmem:[#allocation8 + $0xb8] sm:$0xff]
    %v1982 = vld [vmem:[#allocation8 + $0xc0] sm:$0xff]
    %v1983 = vld [vmem:[#allocation8 + $0xc8] sm:$0xff]
    %v1984 = vld [vmem:[#allocation8 + $0xd0] sm:$0xff]
    %v1985 = vld [vmem:[#allocation8 + $0xd8] sm:$0xff]
    %v1986 = vld [vmem:[#allocation8 + $0xe0] sm:$0xff]
    %v1987 = vld [vmem:[#allocation8 + $0xe8] sm:$0xff]
    %v1988 = vld [vmem:[#allocation8 + $0xf0] sm:$0xff]
    %v1989 = vld [vmem:[#allocation8 + $0xf8] sm:$0xff]
    %v1990 = vld [vmem:[#allocation8 + $0x100] sm:$0xff]
    %v1991 = vld [vmem:[#allocation8 + $0x108] sm:$0xff]
    %v1992 = vld [vmem:[#allocation8 + $0x110] sm:$0xff]
    %v1993 = vld [vmem:[#allocation8 + $0x118] sm:$0xff]
    %v1994 = vld [vmem:[#allocation8 + $0x120] sm:$0xff]
    %v1995 = vld [vmem:[#allocation8 + $0x128] sm:$0xff]
    %v1996 = vld [vmem:[#allocation8 + $0x130] sm:$0xff]
    %v1997 = vld [vmem:[#allocation8 + $0x138] sm:$0xff]
    %v1998 = vld [vmem:[#allocation8 + $0x140] sm:$0xff]
    %v1999 = vld [vmem:[#allocation8 + $0x148] sm:$0xff]
    %v2000 = vld [vmem:[#allocation8 + $0x150] sm:$0xff]
    %v2001 = vld [vmem:[#allocation8 + $0x158] sm:$0xff]
    %v2002 = vld [vmem:[#allocation8 + $0x160] sm:$0xff]
    %v2003 = vld [vmem:[#allocation8 + $0x168] sm:$0xff]
    %v2004 = vld [vmem:[#allocation8 + $0x170] sm:$0xff]
    %v2005 = vld [vmem:[#allocation8 + $0x178] sm:$0xff]
    %v2006 = vld [vmem:[#allocation8 + $0x180] sm:$0xff]
    %v2007 = vld [vmem:[#allocation8 + $0x188] sm:$0xff]
    %v2008 = vld [vmem:[#allocation8 + $0x190] sm:$0xff]
    %v2009 = vld [vmem:[#allocation8 + $0x198] sm:$0xff]
    %v2010 = vld [vmem:[#allocation8 + $0x1a0] sm:$0xff]
    %v2011 = vld [vmem:[#allocation8 + $0x1a8] sm:$0xff]
    %v2012 = vld [vmem:[#allocation8 + $0x1b0] sm:$0xff]
    %v2013 = vld [vmem:[#allocation8 + $0x1b8] sm:$0xff]
    %v2014 = vld [vmem:[#allocation8 + $0x1c0] sm:$0xff]
    %v2015 = vld [vmem:[#allocation8 + $0x1c8] sm:$0xff]
    %v2016 = vld [vmem:[#allocation8 + $0x1d0] sm:$0xff]
    %v2017 = vld [vmem:[#allocation8 + $0x1d8] sm:$0xff]
    %v2018 = vld [vmem:[#allocation8 + $0x1e0] sm:$0xff]
    %v2019 = vld [vmem:[#allocation8 + $0x1e8] sm:$0xff]
    %v2020 = vld [vmem:[#allocation8 + $0x1f0] sm:$0xff]
    %v2021 = vld [vmem:[#allocation8 + $0x1f8] sm:$0xff]
    %v2022 = vld [vmem:[#allocation8 + $0x200] sm:$0xff]
    %v2023 = vld [vmem:[#allocation8 + $0x208] sm:$0xff]
    %v2024 = vld [vmem:[#allocation8 + $0x210] sm:$0xff]
    %v2025 = vld [vmem:[#allocation8 + $0x218] sm:$0xff]
    %v2026 = vld [vmem:[#allocation8 + $0x220] sm:$0xff]
    %v2027 = vld [vmem:[#allocation8 + $0x228] sm:$0xff]
    %v2028 = vld [vmem:[#allocation8 + $0x230] sm:$0xff]
    %v2029 = vld [vmem:[#allocation8 + $0x238] sm:$0xff]
    %v2030 = vld [vmem:[#allocation8 + $0x240] sm:$0xff]
    %v2031 = vld [vmem:[#allocation8 + $0x248] sm:$0xff]
    %v2032 = vld [vmem:[#allocation8 + $0x250] sm:$0xff]
    %v2033 = vld [vmem:[#allocation8 + $0x258] sm:$0xff]
    %v2034 = vld [vmem:[#allocation8 + $0x260] sm:$0xff]
    %v2035 = vld [vmem:[#allocation8 + $0x268] sm:$0xff]
    %v2036 = vld [vmem:[#allocation8 + $0x270] sm:$0xff]
    %v2037 = vld [vmem:[#allocation8 + $0x278] sm:$0xff]
    %v2038 = vld [vmem:[#allocation8 + $0x280] sm:$0xff]
    %v2039 = vld [vmem:[#allocation8 + $0x288] sm:$0xff]
    %v2040 = vld [vmem:[#allocation8 + $0x290] sm:$0xff]
    %v2041 = vld [vmem:[#allocation8 + $0x298] sm:$0xff]
    %v2042 = vld [vmem:[#allocation8 + $0x2a0] sm:$0xff]
    %v2043 = vld [vmem:[#allocation8 + $0x2a8] sm:$0xff]
    %v2044 = vld [vmem:[#allocation8 + $0x2b0] sm:$0xff]
    %v2045 = vld [vmem:[#allocation8 + $0x2b8] sm:$0xff]
    %v2046 = vld [vmem:[#allocation8 + $0x2c0] sm:$0xff]
    %v2047 = vld [vmem:[#allocation8 + $0x2c8] sm:$0xff]
    %v2048 = vld [vmem:[#allocation8 + $0x2d0] sm:$0xff]
    %v2049 = vld [vmem:[#allocation8 + $0x2d8] sm:$0xff]
    %v2050 = vld [vmem:[#allocation8 + $0x2e0] sm:$0xff]
    %v2051 = vld [vmem:[#allocation8 + $0x2e8] sm:$0xff]
    %v2052 = vld [vmem:[#allocation8 + $0x2f0] sm:$0xff]
    %v2053 = vld [vmem:[#allocation8 + $0x2f8] sm:$0xff]
    %v2054 = vld [vmem:[#allocation8 + $0x300] sm:$0xff]
    %v2055 = vld [vmem:[#allocation8 + $0x308] sm:$0xff]
    %v2056 = vld [vmem:[#allocation8 + $0x310] sm:$0xff]
    %v2057 = vld [vmem:[#allocation8 + $0x318] sm:$0xff]
    %v2058 = vld [vmem:[#allocation8 + $0x320] sm:$0xff]
    %v2059 = vld [vmem:[#allocation8 + $0x328] sm:$0xff]
    %v2060 = vld [vmem:[#allocation8 + $0x330] sm:$0xff]
    %v2061 = vld [vmem:[#allocation8 + $0x338] sm:$0xff]
    %v2062 = vld [vmem:[#allocation8 + $0x340] sm:$0xff]
    %v2063 = vld [vmem:[#allocation8 + $0x348] sm:$0xff]
    %v2064 = vld [vmem:[#allocation8 + $0x350] sm:$0xff]
    %v2065 = vld [vmem:[#allocation8 + $0x358] sm:$0xff]
    %v2066 = vld [vmem:[#allocation8 + $0x360] sm:$0xff]
    %v2067 = vld [vmem:[#allocation8 + $0x368] sm:$0xff]
    %v2068 = vld [vmem:[#allocation8 + $0x370] sm:$0xff]
    %v2069 = vld [vmem:[#allocation8 + $0x378] sm:$0xff]
    %v2070 = vld [vmem:[#allocation8 + $0x380] sm:$0xff]
    %v2071 = vld [vmem:[#allocation8 + $0x388] sm:$0xff]
    %v2072 = vld [vmem:[#allocation8 + $0x390] sm:$0xff]
    %v2073 = vld [vmem:[#allocation8 + $0x398] sm:$0xff]
    %v2074 = vld [vmem:[#allocation8 + $0x3a0] sm:$0xff]
    %v2075 = vld [vmem:[#allocation8 + $0x3a8] sm:$0xff]
    %v2076 = vld [vmem:[#allocation8 + $0x3b0] sm:$0xff]
    %v2077 = vld [vmem:[#allocation8 + $0x3b8] sm:$0xff]
    %v2078 = vld [vmem:[#allocation8 + $0x3c0] sm:$0xff]
    %v2079 = vld [vmem:[#allocation8 + $0x3c8] sm:$0xff]
    %v2080 = vld [vmem:[#allocation8 + $0x3d0] sm:$0xff]
    %v2081 = vld [vmem:[#allocation8 + $0x3d8] sm:$0xff]
    %v2082 = vld [vmem:[#allocation8 + $0x3e0] sm:$0xff]
    %v2083 = vld [vmem:[#allocation8 + $0x3e8] sm:$0xff]
    %v2084 = vld [vmem:[#allocation8 + $0x3f0] sm:$0xff]
    %v2085 = vld [vmem:[#allocation8 + $0x3f8] sm:$0xff]
    %v2086 = vld [vmem:[#allocation10] sm:$0xf]
    %v2088 = vperm.slane %v2086, 0
    %v2089 = vperm.slane %v2086, 1
    %v2090 = vperm.slane %v2086, 2
    %v2091 = vperm.slane %v2086, 3
    %2096 = vmatpush.msra.mxu0 %v2018
    %2097 = vmatpush.msra.mxu0 %v2014
    %2098 = vmatpush.msra.mxu0 %v2010
    %2099 = vmatpush.msra.mxu0 %v2006
    %2100 = vmatpush.msra.mxu0 %v2002
    %2101 = vmatpush.msra.mxu0 %v1998
    %2102 = vmatpush.msra.mxu0 %v1994
    %2103 = vmatpush.msra.mxu0 %v1990
    %2104 = vmatpush.msra.mxu0 %v1986
    %2105 = vmatpush.msra.mxu0 %v1982
    %2106 = vmatpush.msra.mxu0 %v1978
    %2107 = vmatpush.msra.mxu0 %v1974
    %2108 = vmatpush.msra.mxu0 %v1970
    %2109 = vmatpush.msra.mxu0 %v1966
    %2110 = vmatpush.msra.mxu0 %v1962
    %2111 = vmatpush.msra.mxu0 %v1958
    %2112 = vmatmul.f32.gmra.mxu0 %v1956
    %v2113 = vpop.f32.mrf.mxu0
    %v2114 = vadd.f32 %v2088, %v2113
    %2115 = vdwg.mxu0
    %2116 = vmatpush.msra.mxu0 %v2082
    %2117 = vmatpush.msra.mxu0 %v2078
    %2118 = vmatpush.msra.mxu0 %v2074
    %2119 = vmatpush.msra.mxu0 %v2070
    %2120 = vmatpush.msra.mxu0 %v2066
    %2121 = vmatpush.msra.mxu0 %v2062
    %2122 = vmatpush.msra.mxu0 %v2058
    %2123 = vmatpush.msra.mxu0 %v2054
    %2124 = vmatpush.msra.mxu0 %v2050
    %2125 = vmatpush.msra.mxu0 %v2046
    %2126 = vmatpush.msra.mxu0 %v2042
    %2127 = vmatpush.msra.mxu0 %v2038
    %2128 = vmatpush.msra.mxu0 %v2034
    %2129 = vmatpush.msra.mxu0 %v2030
    %2130 = vmatpush.msra.mxu0 %v2026
    %2131 = vmatpush.msra.mxu0 %v2022
    %2132 = vmatmul.f32.gmra.mxu0 %v1957
    %v2133 = vpop.f32.mrf.mxu0
    %v2134 = vadd.f32 %v2114, %v2133
    %2135 = vdwg.mxu0
    %2136 = vmatpush.msra.mxu0 %v2019
    %2137 = vmatpush.msra.mxu0 %v2015
    %2138 = vmatpush.msra.mxu0 %v2011
    %2139 = vmatpush.msra.mxu0 %v2007
    %2140 = vmatpush.msra.mxu0 %v2003
    %2141 = vmatpush.msra.mxu0 %v1999
    %2142 = vmatpush.msra.mxu0 %v1995
    %2143 = vmatpush.msra.mxu0 %v1991
    %2144 = vmatpush.msra.mxu0 %v1987
    %2145 = vmatpush.msra.mxu0 %v1983
    %2146 = vmatpush.msra.mxu0 %v1979
    %2147 = vmatpush.msra.mxu0 %v1975
    %2148 = vmatpush.msra.mxu0 %v1971
    %2149 = vmatpush.msra.mxu0 %v1967
    %2150 = vmatpush.msra.mxu0 %v1963
    %2151 = vmatpush.msra.mxu0 %v1959
    %2152 = vmatmul.f32.gmra.mxu0 %v1956
    %v2153 = vpop.f32.mrf.mxu0
    %v2154 = vadd.f32 %v2089, %v2153
    %2155 = vdwg.mxu0
    %2156 = vmatpush.msra.mxu0 %v2083
    %2157 = vmatpush.msra.mxu0 %v2079
    %2158 = vmatpush.msra.mxu0 %v2075
    %2159 = vmatpush.msra.mxu0 %v2071
    %2160 = vmatpush.msra.mxu0 %v2067
    %2161 = vmatpush.msra.mxu0 %v2063
    %2162 = vmatpush.msra.mxu0 %v2059
    %2163 = vmatpush.msra.mxu0 %v2055
    %2164 = vmatpush.msra.mxu0 %v2051
    %2165 = vmatpush.msra.mxu0 %v2047
    %2166 = vmatpush.msra.mxu0 %v2043
    %2167 = vmatpush.msra.mxu0 %v2039
    %2168 = vmatpush.msra.mxu0 %v2035
    %2169 = vmatpush.msra.mxu0 %v2031
    %2170 = vmatpush.msra.mxu0 %v2027
    %2171 = vmatpush.msra.mxu0 %v2023
    %2172 = vmatmul.f32.gmra.mxu0 %v1957
    %v2173 = vpop.f32.mrf.mxu0
    %v2174 = vadd.f32 %v2154, %v2173
    %2175 = vdwg.mxu0
    %2176 = vmatpush.msra.mxu0 %v2020
    %2177 = vmatpush.msra.mxu0 %v2016
    %2178 = vmatpush.msra.mxu0 %v2012
    %2179 = vmatpush.msra.mxu0 %v2008
    %2180 = vmatpush.msra.mxu0 %v2004
    %2181 = vmatpush.msra.mxu0 %v2000
    %2182 = vmatpush.msra.mxu0 %v1996
    %2183 = vmatpush.msra.mxu0 %v1992
    %2184 = vmatpush.msra.mxu0 %v1988
    %2185 = vmatpush.msra.mxu0 %v1984
    %2186 = vmatpush.msra.mxu0 %v1980
    %2187 = vmatpush.msra.mxu0 %v1976
    %2188 = vmatpush.msra.mxu0 %v1972
    %2189 = vmatpush.msra.mxu0 %v1968
    %2190 = vmatpush.msra.mxu0 %v1964
    %2191 = vmatpush.msra.mxu0 %v1960
    %2192 = vmatmul.f32.gmra.mxu0 %v1956
    %v2193 = vpop.f32.mrf.mxu0
    %v2194 = vadd.f32 %v2090, %v2193
    %2195 = vdwg.mxu0
    %2196 = vmatpush.msra.mxu0 %v2084
    %2197 = vmatpush.msra.mxu0 %v2080
    %2198 = vmatpush.msra.mxu0 %v2076
    %2199 = vmatpush.msra.mxu0 %v2072
    %2200 = vmatpush.msra.mxu0 %v2068
    %2201 = vmatpush.msra.mxu0 %v2064
    %2202 = vmatpush.msra.mxu0 %v2060
    %2203 = vmatpush.msra.mxu0 %v2056
    %2204 = vmatpush.msra.mxu0 %v2052
    %2205 = vmatpush.msra.mxu0 %v2048
    %2206 = vmatpush.msra.mxu0 %v2044
    %2207 = vmatpush.msra.mxu0 %v2040
    %2208 = vmatpush.msra.mxu0 %v2036
    %2209 = vmatpush.msra.mxu0 %v2032
    %2210 = vmatpush.msra.mxu0 %v2028
    %2211 = vmatpush.msra.mxu0 %v2024
    %2212 = vmatmul.f32.gmra.mxu0 %v1957
    %v2213 = vpop.f32.mrf.mxu0
    %v2214 = vadd.f32 %v2194, %v2213
    %2215 = vdwg.mxu0
    %2216 = vmatpush.msra.mxu0 %v2021
    %2217 = vmatpush.msra.mxu0 %v2017
    %2218 = vmatpush.msra.mxu0 %v2013
    %2219 = vmatpush.msra.mxu0 %v2009
    %2220 = vmatpush.msra.mxu0 %v2005
    %2221 = vmatpush.msra.mxu0 %v2001
    %2222 = vmatpush.msra.mxu0 %v1997
    %2223 = vmatpush.msra.mxu0 %v1993
    %2224 = vmatpush.msra.mxu0 %v1989
    %2225 = vmatpush.msra.mxu0 %v1985
    %2226 = vmatpush.msra.mxu0 %v1981
    %2227 = vmatpush.msra.mxu0 %v1977
    %2228 = vmatpush.msra.mxu0 %v1973
    %2229 = vmatpush.msra.mxu0 %v1969
    %2230 = vmatpush.msra.mxu0 %v1965
    %2231 = vmatpush.msra.mxu0 %v1961
    %2232 = vmatmul.f32.gmra.mxu0 %v1956
    %v2233 = vpop.f32.mrf.mxu0
    %v2234 = vadd.f32 %v2091, %v2233
    %2235 = vdwg.mxu0
    %2236 = vmatpush.msra.mxu0 %v2085
    %2237 = vmatpush.msra.mxu0 %v2081
    %2238 = vmatpush.msra.mxu0 %v2077
    %2239 = vmatpush.msra.mxu0 %v2073
    %2240 = vmatpush.msra.mxu0 %v2069
    %2241 = vmatpush.msra.mxu0 %v2065
    %2242 = vmatpush.msra.mxu0 %v2061
    %2243 = vmatpush.msra.mxu0 %v2057
    %2244 = vmatpush.msra.mxu0 %v2053
    %2245 = vmatpush.msra.mxu0 %v2049
    %2246 = vmatpush.msra.mxu0 %v2045
    %2247 = vmatpush.msra.mxu0 %v2041
    %2248 = vmatpush.msra.mxu0 %v2037
    %2249 = vmatpush.msra.mxu0 %v2033
    %2250 = vmatpush.msra.mxu0 %v2029
    %2251 = vmatpush.msra.mxu0 %v2025
    %2252 = vmatmul.f32.gmra.mxu0 %v1957
    %v2253 = vpop.f32.mrf.mxu0
    %v2254 = vadd.f32 %v2234, %v2253
    %2255 = vdwg.mxu0
    %v2256 = vmax.f32 %v2134, 0.0
    %v2257 = vmax.f32 %v2174, 0.0
    %v2258 = vmax.f32 %v2214, 0.0
    %v2259 = vmax.f32 %v2254, 0.0
    %v2260 = vld [vmem:[#allocation11] sm:$0xff]
    %v2261 = vld [vmem:[#allocation11 + $0x8] sm:$0xff]
    %v2262 = vld [vmem:[#allocation11 + $0x10] sm:$0xff]
    %v2263 = vld [vmem:[#allocation11 + $0x18] sm:$0xff]
    %v2264 = vld [vmem:[#allocation11 + $0x20] sm:$0xff]
    %v2265 = vld [vmem:[#allocation11 + $0x28] sm:$0xff]
    %v2266 = vld [vmem:[#allocation11 + $0x30] sm:$0xff]
    %v2267 = vld [vmem:[#allocation11 + $0x38] sm:$0xff]
    %v2268 = vld [vmem:[#allocation11 + $0x40] sm:$0xff]
    %v2269 = vld [vmem:[#allocation11 + $0x48] sm:$0xff]
    %v2270 = vld [vmem:[#allocation11 + $0x50] sm:$0xff]
    %v2271 = vld [vmem:[#allocation11 + $0x58] sm:$0xff]
    %v2272 = vld [vmem:[#allocation11 + $0x60] sm:$0xff]
    %v2273 = vld [vmem:[#allocation11 + $0x68] sm:$0xff]
    %v2274 = vld [vmem:[#allocation11 + $0x70] sm:$0xff]
    %v2275 = vld [vmem:[#allocation11 + $0x78] sm:$0xff]
    %v2276 = vld [vmem:[#allocation11 + $0x80] sm:$0xff]
    %v2277 = vld [vmem:[#allocation11 + $0x88] sm:$0xff]
    %v2278 = vld [vmem:[#allocation11 + $0x90] sm:$0xff]
    %v2279 = vld [vmem:[#allocation11 + $0x98] sm:$0xff]
    %v2280 = vld [vmem:[#allocation11 + $0xa0] sm:$0xff]
    %v2281 = vld [vmem:[#allocation11 + $0xa8] sm:$0xff]
    %v2282 = vld [vmem:[#allocation11 + $0xb0] sm:$0xff]
    %v2283 = vld [vmem:[#allocation11 + $0xb8] sm:$0xff]
    %v2284 = vld [vmem:[#allocation11 + $0xc0] sm:$0xff]
    %v2285 = vld [vmem:[#allocation11 + $0xc8] sm:$0xff]
    %v2286 = vld [vmem:[#allocation11 + $0xd0] sm:$0xff]
    %v2287 = vld [vmem:[#allocation11 + $0xd8] sm:$0xff]
    %v2288 = vld [vmem:[#allocation11 + $0xe0] sm:$0xff]
    %v2289 = vld [vmem:[#allocation11 + $0xe8] sm:$0xff]
    %v2290 = vld [vmem:[#allocation11 + $0xf0] sm:$0xff]
    %v2291 = vld [vmem:[#allocation11 + $0xf8] sm:$0xff]
    %v2292 = vld [vmem:[#allocation11 + $0x100] sm:$0xff]
    %v2293 = vld [vmem:[#allocation11 + $0x108] sm:$0xff]
    %v2294 = vld [vmem:[#allocation11 + $0x110] sm:$0xff]
    %v2295 = vld [vmem:[#allocation11 + $0x118] sm:$0xff]
    %v2296 = vld [vmem:[#allocation11 + $0x120] sm:$0xff]
    %v2297 = vld [vmem:[#allocation11 + $0x128] sm:$0xff]
    %v2298 = vld [vmem:[#allocation11 + $0x130] sm:$0xff]
    %v2299 = vld [vmem:[#allocation11 + $0x138] sm:$0xff]
    %v2300 = vld [vmem:[#allocation11 + $0x140] sm:$0xff]
    %v2301 = vld [vmem:[#allocation11 + $0x148] sm:$0xff]
    %v2302 = vld [vmem:[#allocation11 + $0x150] sm:$0xff]
    %v2303 = vld [vmem:[#allocation11 + $0x158] sm:$0xff]
    %v2304 = vld [vmem:[#allocation11 + $0x160] sm:$0xff]
    %v2305 = vld [vmem:[#allocation11 + $0x168] sm:$0xff]
    %v2306 = vld [vmem:[#allocation11 + $0x170] sm:$0xff]
    %v2307 = vld [vmem:[#allocation11 + $0x178] sm:$0xff]
    %v2308 = vld [vmem:[#allocation11 + $0x180] sm:$0xff]
    %v2309 = vld [vmem:[#allocation11 + $0x188] sm:$0xff]
    %v2310 = vld [vmem:[#allocation11 + $0x190] sm:$0xff]
    %v2311 = vld [vmem:[#allocation11 + $0x198] sm:$0xff]
    %v2312 = vld [vmem:[#allocation11 + $0x1a0] sm:$0xff]
    %v2313 = vld [vmem:[#allocation11 + $0x1a8] sm:$0xff]
    %v2314 = vld [vmem:[#allocation11 + $0x1b0] sm:$0xff]
    %v2315 = vld [vmem:[#allocation11 + $0x1b8] sm:$0xff]
    %v2316 = vld [vmem:[#allocation11 + $0x1c0] sm:$0xff]
    %v2317 = vld [vmem:[#allocation11 + $0x1c8] sm:$0xff]
    %v2318 = vld [vmem:[#allocation11 + $0x1d0] sm:$0xff]
    %v2319 = vld [vmem:[#allocation11 + $0x1d8] sm:$0xff]
    %v2320 = vld [vmem:[#allocation11 + $0x1e0] sm:$0xff]
    %v2321 = vld [vmem:[#allocation11 + $0x1e8] sm:$0xff]
    %v2322 = vld [vmem:[#allocation11 + $0x1f0] sm:$0xff]
    %v2323 = vld [vmem:[#allocation11 + $0x1f8] sm:$0xff]
    %v2324 = vld [vmem:[#allocation11 + $0x200] sm:$0xff]
    %v2325 = vld [vmem:[#allocation11 + $0x208] sm:$0xff]
    %v2326 = vld [vmem:[#allocation11 + $0x210] sm:$0xff]
    %v2327 = vld [vmem:[#allocation11 + $0x218] sm:$0xff]
    %v2328 = vld [vmem:[#allocation11 + $0x220] sm:$0xff]
    %v2329 = vld [vmem:[#allocation11 + $0x228] sm:$0xff]
    %v2330 = vld [vmem:[#allocation11 + $0x230] sm:$0xff]
    %v2331 = vld [vmem:[#allocation11 + $0x238] sm:$0xff]
    %v2332 = vld [vmem:[#allocation11 + $0x240] sm:$0xff]
    %v2333 = vld [vmem:[#allocation11 + $0x248] sm:$0xff]
    %v2334 = vld [vmem:[#allocation11 + $0x250] sm:$0xff]
    %v2335 = vld [vmem:[#allocation11 + $0x258] sm:$0xff]
    %v2336 = vld [vmem:[#allocation11 + $0x260] sm:$0xff]
    %v2337 = vld [vmem:[#allocation11 + $0x268] sm:$0xff]
    %v2338 = vld [vmem:[#allocation11 + $0x270] sm:$0xff]
    %v2339 = vld [vmem:[#allocation11 + $0x278] sm:$0xff]
    %v2340 = vld [vmem:[#allocation11 + $0x280] sm:$0xff]
    %v2341 = vld [vmem:[#allocation11 + $0x288] sm:$0xff]
    %v2342 = vld [vmem:[#allocation11 + $0x290] sm:$0xff]
    %v2343 = vld [vmem:[#allocation11 + $0x298] sm:$0xff]
    %v2344 = vld [vmem:[#allocation11 + $0x2a0] sm:$0xff]
    %v2345 = vld [vmem:[#allocation11 + $0x2a8] sm:$0xff]
    %v2346 = vld [vmem:[#allocation11 + $0x2b0] sm:$0xff]
    %v2347 = vld [vmem:[#allocation11 + $0x2b8] sm:$0xff]
    %v2348 = vld [vmem:[#allocation11 + $0x2c0] sm:$0xff]
    %v2349 = vld [vmem:[#allocation11 + $0x2c8] sm:$0xff]
    %v2350 = vld [vmem:[#allocation11 + $0x2d0] sm:$0xff]
    %v2351 = vld [vmem:[#allocation11 + $0x2d8] sm:$0xff]
    %v2352 = vld [vmem:[#allocation11 + $0x2e0] sm:$0xff]
    %v2353 = vld [vmem:[#allocation11 + $0x2e8] sm:$0xff]
    %v2354 = vld [vmem:[#allocation11 + $0x2f0] sm:$0xff]
    %v2355 = vld [vmem:[#allocation11 + $0x2f8] sm:$0xff]
    %v2356 = vld [vmem:[#allocation11 + $0x300] sm:$0xff]
    %v2357 = vld [vmem:[#allocation11 + $0x308] sm:$0xff]
    %v2358 = vld [vmem:[#allocation11 + $0x310] sm:$0xff]
    %v2359 = vld [vmem:[#allocation11 + $0x318] sm:$0xff]
    %v2360 = vld [vmem:[#allocation11 + $0x320] sm:$0xff]
    %v2361 = vld [vmem:[#allocation11 + $0x328] sm:$0xff]
    %v2362 = vld [vmem:[#allocation11 + $0x330] sm:$0xff]
    %v2363 = vld [vmem:[#allocation11 + $0x338] sm:$0xff]
    %v2364 = vld [vmem:[#allocation11 + $0x340] sm:$0xff]
    %v2365 = vld [vmem:[#allocation11 + $0x348] sm:$0xff]
    %v2366 = vld [vmem:[#allocation11 + $0x350] sm:$0xff]
    %v2367 = vld [vmem:[#allocation11 + $0x358] sm:$0xff]
    %v2368 = vld [vmem:[#allocation11 + $0x360] sm:$0xff]
    %v2369 = vld [vmem:[#allocation11 + $0x368] sm:$0xff]
    %v2370 = vld [vmem:[#allocation11 + $0x370] sm:$0xff]
    %v2371 = vld [vmem:[#allocation11 + $0x378] sm:$0xff]
    %v2372 = vld [vmem:[#allocation11 + $0x380] sm:$0xff]
    %v2373 = vld [vmem:[#allocation11 + $0x388] sm:$0xff]
    %v2374 = vld [vmem:[#allocation11 + $0x390] sm:$0xff]
    %v2375 = vld [vmem:[#allocation11 + $0x398] sm:$0xff]
    %v2376 = vld [vmem:[#allocation11 + $0x3a0] sm:$0xff]
    %v2377 = vld [vmem:[#allocation11 + $0x3a8] sm:$0xff]
    %v2378 = vld [vmem:[#allocation11 + $0x3b0] sm:$0xff]
    %v2379 = vld [vmem:[#allocation11 + $0x3b8] sm:$0xff]
    %v2380 = vld [vmem:[#allocation11 + $0x3c0] sm:$0xff]
    %v2381 = vld [vmem:[#allocation11 + $0x3c8] sm:$0xff]
    %v2382 = vld [vmem:[#allocation11 + $0x3d0] sm:$0xff]
    %v2383 = vld [vmem:[#allocation11 + $0x3d8] sm:$0xff]
    %v2384 = vld [vmem:[#allocation11 + $0x3e0] sm:$0xff]
    %v2385 = vld [vmem:[#allocation11 + $0x3e8] sm:$0xff]
    %v2386 = vld [vmem:[#allocation11 + $0x3f0] sm:$0xff]
    %v2387 = vld [vmem:[#allocation11 + $0x3f8] sm:$0xff]
    %v2388 = vld [vmem:[#allocation11 + $0x400] sm:$0xff]
    %v2389 = vld [vmem:[#allocation11 + $0x408] sm:$0xff]
    %v2390 = vld [vmem:[#allocation11 + $0x410] sm:$0xff]
    %v2391 = vld [vmem:[#allocation11 + $0x418] sm:$0xff]
    %v2392 = vld [vmem:[#allocation11 + $0x420] sm:$0xff]
    %v2393 = vld [vmem:[#allocation11 + $0x428] sm:$0xff]
    %v2394 = vld [vmem:[#allocation11 + $0x430] sm:$0xff]
    %v2395 = vld [vmem:[#allocation11 + $0x438] sm:$0xff]
    %v2396 = vld [vmem:[#allocation11 + $0x440] sm:$0xff]
    %v2397 = vld [vmem:[#allocation11 + $0x448] sm:$0xff]
    %v2398 = vld [vmem:[#allocation11 + $0x450] sm:$0xff]
    %v2399 = vld [vmem:[#allocation11 + $0x458] sm:$0xff]
    %v2400 = vld [vmem:[#allocation11 + $0x460] sm:$0xff]
    %v2401 = vld [vmem:[#allocation11 + $0x468] sm:$0xff]
    %v2402 = vld [vmem:[#allocation11 + $0x470] sm:$0xff]
    %v2403 = vld [vmem:[#allocation11 + $0x478] sm:$0xff]
    %v2404 = vld [vmem:[#allocation11 + $0x480] sm:$0xff]
    %v2405 = vld [vmem:[#allocation11 + $0x488] sm:$0xff]
    %v2406 = vld [vmem:[#allocation11 + $0x490] sm:$0xff]
    %v2407 = vld [vmem:[#allocation11 + $0x498] sm:$0xff]
    %v2408 = vld [vmem:[#allocation11 + $0x4a0] sm:$0xff]
    %v2409 = vld [vmem:[#allocation11 + $0x4a8] sm:$0xff]
    %v2410 = vld [vmem:[#allocation11 + $0x4b0] sm:$0xff]
    %v2411 = vld [vmem:[#allocation11 + $0x4b8] sm:$0xff]
    %v2412 = vld [vmem:[#allocation11 + $0x4c0] sm:$0xff]
    %v2413 = vld [vmem:[#allocation11 + $0x4c8] sm:$0xff]
    %v2414 = vld [vmem:[#allocation11 + $0x4d0] sm:$0xff]
    %v2415 = vld [vmem:[#allocation11 + $0x4d8] sm:$0xff]
    %v2416 = vld [vmem:[#allocation11 + $0x4e0] sm:$0xff]
    %v2417 = vld [vmem:[#allocation11 + $0x4e8] sm:$0xff]
    %v2418 = vld [vmem:[#allocation11 + $0x4f0] sm:$0xff]
    %v2419 = vld [vmem:[#allocation11 + $0x4f8] sm:$0xff]
    %v2420 = vld [vmem:[#allocation11 + $0x500] sm:$0xff]
    %v2421 = vld [vmem:[#allocation11 + $0x508] sm:$0xff]
    %v2422 = vld [vmem:[#allocation11 + $0x510] sm:$0xff]
    %v2423 = vld [vmem:[#allocation11 + $0x518] sm:$0xff]
    %v2424 = vld [vmem:[#allocation11 + $0x520] sm:$0xff]
    %v2425 = vld [vmem:[#allocation11 + $0x528] sm:$0xff]
    %v2426 = vld [vmem:[#allocation11 + $0x530] sm:$0xff]
    %v2427 = vld [vmem:[#allocation11 + $0x538] sm:$0xff]
    %v2428 = vld [vmem:[#allocation11 + $0x540] sm:$0xff]
    %v2429 = vld [vmem:[#allocation11 + $0x548] sm:$0xff]
    %v2430 = vld [vmem:[#allocation11 + $0x550] sm:$0xff]
    %v2431 = vld [vmem:[#allocation11 + $0x558] sm:$0xff]
    %v2432 = vld [vmem:[#allocation11 + $0x560] sm:$0xff]
    %v2433 = vld [vmem:[#allocation11 + $0x568] sm:$0xff]
    %v2434 = vld [vmem:[#allocation11 + $0x570] sm:$0xff]
    %v2435 = vld [vmem:[#allocation11 + $0x578] sm:$0xff]
    %v2436 = vld [vmem:[#allocation11 + $0x580] sm:$0xff]
    %v2437 = vld [vmem:[#allocation11 + $0x588] sm:$0xff]
    %v2438 = vld [vmem:[#allocation11 + $0x590] sm:$0xff]
    %v2439 = vld [vmem:[#allocation11 + $0x598] sm:$0xff]
    %v2440 = vld [vmem:[#allocation11 + $0x5a0] sm:$0xff]
    %v2441 = vld [vmem:[#allocation11 + $0x5a8] sm:$0xff]
    %v2442 = vld [vmem:[#allocation11 + $0x5b0] sm:$0xff]
    %v2443 = vld [vmem:[#allocation11 + $0x5b8] sm:$0xff]
    %v2444 = vld [vmem:[#allocation11 + $0x5c0] sm:$0xff]
    %v2445 = vld [vmem:[#allocation11 + $0x5c8] sm:$0xff]
    %v2446 = vld [vmem:[#allocation11 + $0x5d0] sm:$0xff]
    %v2447 = vld [vmem:[#allocation11 + $0x5d8] sm:$0xff]
    %v2448 = vld [vmem:[#allocation11 + $0x5e0] sm:$0xff]
    %v2449 = vld [vmem:[#allocation11 + $0x5e8] sm:$0xff]
    %v2450 = vld [vmem:[#allocation11 + $0x5f0] sm:$0xff]
    %v2451 = vld [vmem:[#allocation11 + $0x5f8] sm:$0xff]
    %v2452 = vld [vmem:[#allocation11 + $0x600] sm:$0xff]
    %v2453 = vld [vmem:[#allocation11 + $0x608] sm:$0xff]
    %v2454 = vld [vmem:[#allocation11 + $0x610] sm:$0xff]
    %v2455 = vld [vmem:[#allocation11 + $0x618] sm:$0xff]
    %v2456 = vld [vmem:[#allocation11 + $0x620] sm:$0xff]
    %v2457 = vld [vmem:[#allocation11 + $0x628] sm:$0xff]
    %v2458 = vld [vmem:[#allocation11 + $0x630] sm:$0xff]
    %v2459 = vld [vmem:[#allocation11 + $0x638] sm:$0xff]
    %v2460 = vld [vmem:[#allocation11 + $0x640] sm:$0xff]
    %v2461 = vld [vmem:[#allocation11 + $0x648] sm:$0xff]
    %v2462 = vld [vmem:[#allocation11 + $0x650] sm:$0xff]
    %v2463 = vld [vmem:[#allocation11 + $0x658] sm:$0xff]
    %v2464 = vld [vmem:[#allocation11 + $0x660] sm:$0xff]
    %v2465 = vld [vmem:[#allocation11 + $0x668] sm:$0xff]
    %v2466 = vld [vmem:[#allocation11 + $0x670] sm:$0xff]
    %v2467 = vld [vmem:[#allocation11 + $0x678] sm:$0xff]
    %v2468 = vld [vmem:[#allocation11 + $0x680] sm:$0xff]
    %v2469 = vld [vmem:[#allocation11 + $0x688] sm:$0xff]
    %v2470 = vld [vmem:[#allocation11 + $0x690] sm:$0xff]
    %v2471 = vld [vmem:[#allocation11 + $0x698] sm:$0xff]
    %v2472 = vld [vmem:[#allocation11 + $0x6a0] sm:$0xff]
    %v2473 = vld [vmem:[#allocation11 + $0x6a8] sm:$0xff]
    %v2474 = vld [vmem:[#allocation11 + $0x6b0] sm:$0xff]
    %v2475 = vld [vmem:[#allocation11 + $0x6b8] sm:$0xff]
    %v2476 = vld [vmem:[#allocation11 + $0x6c0] sm:$0xff]
    %v2477 = vld [vmem:[#allocation11 + $0x6c8] sm:$0xff]
    %v2478 = vld [vmem:[#allocation11 + $0x6d0] sm:$0xff]
    %v2479 = vld [vmem:[#allocation11 + $0x6d8] sm:$0xff]
    %v2480 = vld [vmem:[#allocation11 + $0x6e0] sm:$0xff]
    %v2481 = vld [vmem:[#allocation11 + $0x6e8] sm:$0xff]
    %v2482 = vld [vmem:[#allocation11 + $0x6f0] sm:$0xff]
    %v2483 = vld [vmem:[#allocation11 + $0x6f8] sm:$0xff]
    %v2484 = vld [vmem:[#allocation11 + $0x700] sm:$0xff]
    %v2485 = vld [vmem:[#allocation11 + $0x708] sm:$0xff]
    %v2486 = vld [vmem:[#allocation11 + $0x710] sm:$0xff]
    %v2487 = vld [vmem:[#allocation11 + $0x718] sm:$0xff]
    %v2488 = vld [vmem:[#allocation11 + $0x720] sm:$0xff]
    %v2489 = vld [vmem:[#allocation11 + $0x728] sm:$0xff]
    %v2490 = vld [vmem:[#allocation11 + $0x730] sm:$0xff]
    %v2491 = vld [vmem:[#allocation11 + $0x738] sm:$0xff]
    %v2492 = vld [vmem:[#allocation11 + $0x740] sm:$0xff]
    %v2493 = vld [vmem:[#allocation11 + $0x748] sm:$0xff]
    %v2494 = vld [vmem:[#allocation11 + $0x750] sm:$0xff]
    %v2495 = vld [vmem:[#allocation11 + $0x758] sm:$0xff]
    %v2496 = vld [vmem:[#allocation11 + $0x760] sm:$0xff]
    %v2497 = vld [vmem:[#allocation11 + $0x768] sm:$0xff]
    %v2498 = vld [vmem:[#allocation11 + $0x770] sm:$0xff]
    %v2499 = vld [vmem:[#allocation11 + $0x778] sm:$0xff]
    %v2500 = vld [vmem:[#allocation11 + $0x780] sm:$0xff]
    %v2501 = vld [vmem:[#allocation11 + $0x788] sm:$0xff]
    %v2502 = vld [vmem:[#allocation11 + $0x790] sm:$0xff]
    %v2503 = vld [vmem:[#allocation11 + $0x798] sm:$0xff]
    %v2504 = vld [vmem:[#allocation11 + $0x7a0] sm:$0xff]
    %v2505 = vld [vmem:[#allocation11 + $0x7a8] sm:$0xff]
    %v2506 = vld [vmem:[#allocation11 + $0x7b0] sm:$0xff]
    %v2507 = vld [vmem:[#allocation11 + $0x7b8] sm:$0xff]
    %v2508 = vld [vmem:[#allocation11 + $0x7c0] sm:$0xff]
    %v2509 = vld [vmem:[#allocation11 + $0x7c8] sm:$0xff]
    %v2510 = vld [vmem:[#allocation11 + $0x7d0] sm:$0xff]
    %v2511 = vld [vmem:[#allocation11 + $0x7d8] sm:$0xff]
    %v2512 = vld [vmem:[#allocation11 + $0x7e0] sm:$0xff]
    %v2513 = vld [vmem:[#allocation11 + $0x7e8] sm:$0xff]
    %v2514 = vld [vmem:[#allocation11 + $0x7f0] sm:$0xff]
    %v2515 = vld [vmem:[#allocation11 + $0x7f8] sm:$0xff]
    %v2516 = vld [vmem:[#allocation11 + $0x800] sm:$0xff]
    %v2517 = vld [vmem:[#allocation11 + $0x808] sm:$0xff]
    %v2518 = vld [vmem:[#allocation11 + $0x810] sm:$0xff]
    %v2519 = vld [vmem:[#allocation11 + $0x818] sm:$0xff]
    %v2520 = vld [vmem:[#allocation11 + $0x820] sm:$0xff]
    %v2521 = vld [vmem:[#allocation11 + $0x828] sm:$0xff]
    %v2522 = vld [vmem:[#allocation11 + $0x830] sm:$0xff]
    %v2523 = vld [vmem:[#allocation11 + $0x838] sm:$0xff]
    %v2524 = vld [vmem:[#allocation11 + $0x840] sm:$0xff]
    %v2525 = vld [vmem:[#allocation11 + $0x848] sm:$0xff]
    %v2526 = vld [vmem:[#allocation11 + $0x850] sm:$0xff]
    %v2527 = vld [vmem:[#allocation11 + $0x858] sm:$0xff]
    %v2528 = vld [vmem:[#allocation11 + $0x860] sm:$0xff]
    %v2529 = vld [vmem:[#allocation11 + $0x868] sm:$0xff]
    %v2530 = vld [vmem:[#allocation11 + $0x870] sm:$0xff]
    %v2531 = vld [vmem:[#allocation11 + $0x878] sm:$0xff]
    %v2532 = vld [vmem:[#allocation11 + $0x880] sm:$0xff]
    %v2533 = vld [vmem:[#allocation11 + $0x888] sm:$0xff]
    %v2534 = vld [vmem:[#allocation11 + $0x890] sm:$0xff]
    %v2535 = vld [vmem:[#allocation11 + $0x898] sm:$0xff]
    %v2536 = vld [vmem:[#allocation11 + $0x8a0] sm:$0xff]
    %v2537 = vld [vmem:[#allocation11 + $0x8a8] sm:$0xff]
    %v2538 = vld [vmem:[#allocation11 + $0x8b0] sm:$0xff]
    %v2539 = vld [vmem:[#allocation11 + $0x8b8] sm:$0xff]
    %v2540 = vld [vmem:[#allocation11 + $0x8c0] sm:$0xff]
    %v2541 = vld [vmem:[#allocation11 + $0x8c8] sm:$0xff]
    %v2542 = vld [vmem:[#allocation11 + $0x8d0] sm:$0xff]
    %v2543 = vld [vmem:[#allocation11 + $0x8d8] sm:$0xff]
    %v2544 = vld [vmem:[#allocation11 + $0x8e0] sm:$0xff]
    %v2545 = vld [vmem:[#allocation11 + $0x8e8] sm:$0xff]
    %v2546 = vld [vmem:[#allocation11 + $0x8f0] sm:$0xff]
    %v2547 = vld [vmem:[#allocation11 + $0x8f8] sm:$0xff]
    %v2548 = vld [vmem:[#allocation11 + $0x900] sm:$0xff]
    %v2549 = vld [vmem:[#allocation11 + $0x908] sm:$0xff]
    %v2550 = vld [vmem:[#allocation11 + $0x910] sm:$0xff]
    %v2551 = vld [vmem:[#allocation11 + $0x918] sm:$0xff]
    %v2552 = vld [vmem:[#allocation11 + $0x920] sm:$0xff]
    %v2553 = vld [vmem:[#allocation11 + $0x928] sm:$0xff]
    %v2554 = vld [vmem:[#allocation11 + $0x930] sm:$0xff]
    %v2555 = vld [vmem:[#allocation11 + $0x938] sm:$0xff]
    %v2556 = vld [vmem:[#allocation11 + $0x940] sm:$0xff]
    %v2557 = vld [vmem:[#allocation11 + $0x948] sm:$0xff]
    %v2558 = vld [vmem:[#allocation11 + $0x950] sm:$0xff]
    %v2559 = vld [vmem:[#allocation11 + $0x958] sm:$0xff]
    %v2560 = vld [vmem:[#allocation11 + $0x960] sm:$0xff]
    %v2561 = vld [vmem:[#allocation11 + $0x968] sm:$0xff]
    %v2562 = vld [vmem:[#allocation11 + $0x970] sm:$0xff]
    %v2563 = vld [vmem:[#allocation11 + $0x978] sm:$0xff]
    %v2564 = vld [vmem:[#allocation11 + $0x980] sm:$0xff]
    %v2565 = vld [vmem:[#allocation11 + $0x988] sm:$0xff]
    %v2566 = vld [vmem:[#allocation11 + $0x990] sm:$0xff]
    %v2567 = vld [vmem:[#allocation11 + $0x998] sm:$0xff]
    %v2568 = vld [vmem:[#allocation11 + $0x9a0] sm:$0xff]
    %v2569 = vld [vmem:[#allocation11 + $0x9a8] sm:$0xff]
    %v2570 = vld [vmem:[#allocation11 + $0x9b0] sm:$0xff]
    %v2571 = vld [vmem:[#allocation11 + $0x9b8] sm:$0xff]
    %v2572 = vld [vmem:[#allocation11 + $0x9c0] sm:$0xff]
    %v2573 = vld [vmem:[#allocation11 + $0x9c8] sm:$0xff]
    %v2574 = vld [vmem:[#allocation11 + $0x9d0] sm:$0xff]
    %v2575 = vld [vmem:[#allocation11 + $0x9d8] sm:$0xff]
    %v2576 = vld [vmem:[#allocation11 + $0x9e0] sm:$0xff]
    %v2577 = vld [vmem:[#allocation11 + $0x9e8] sm:$0xff]
    %v2578 = vld [vmem:[#allocation11 + $0x9f0] sm:$0xff]
    %v2579 = vld [vmem:[#allocation11 + $0x9f8] sm:$0xff]
    %v2580 = vld [vmem:[#allocation11 + $0xa00] sm:$0xff]
    %v2581 = vld [vmem:[#allocation11 + $0xa08] sm:$0xff]
    %v2582 = vld [vmem:[#allocation11 + $0xa10] sm:$0xff]
    %v2583 = vld [vmem:[#allocation11 + $0xa18] sm:$0xff]
    %v2584 = vld [vmem:[#allocation11 + $0xa20] sm:$0xff]
    %v2585 = vld [vmem:[#allocation11 + $0xa28] sm:$0xff]
    %v2586 = vld [vmem:[#allocation11 + $0xa30] sm:$0xff]
    %v2587 = vld [vmem:[#allocation11 + $0xa38] sm:$0xff]
    %v2588 = vld [vmem:[#allocation11 + $0xa40] sm:$0xff]
    %v2589 = vld [vmem:[#allocation11 + $0xa48] sm:$0xff]
    %v2590 = vld [vmem:[#allocation11 + $0xa50] sm:$0xff]
    %v2591 = vld [vmem:[#allocation11 + $0xa58] sm:$0xff]
    %v2592 = vld [vmem:[#allocation11 + $0xa60] sm:$0xff]
    %v2593 = vld [vmem:[#allocation11 + $0xa68] sm:$0xff]
    %v2594 = vld [vmem:[#allocation11 + $0xa70] sm:$0xff]
    %v2595 = vld [vmem:[#allocation11 + $0xa78] sm:$0xff]
    %v2596 = vld [vmem:[#allocation11 + $0xa80] sm:$0xff]
    %v2597 = vld [vmem:[#allocation11 + $0xa88] sm:$0xff]
    %v2598 = vld [vmem:[#allocation11 + $0xa90] sm:$0xff]
    %v2599 = vld [vmem:[#allocation11 + $0xa98] sm:$0xff]
    %v2600 = vld [vmem:[#allocation11 + $0xaa0] sm:$0xff]
    %v2601 = vld [vmem:[#allocation11 + $0xaa8] sm:$0xff]
    %v2602 = vld [vmem:[#allocation11 + $0xab0] sm:$0xff]
    %v2603 = vld [vmem:[#allocation11 + $0xab8] sm:$0xff]
    %v2604 = vld [vmem:[#allocation11 + $0xac0] sm:$0xff]
    %v2605 = vld [vmem:[#allocation11 + $0xac8] sm:$0xff]
    %v2606 = vld [vmem:[#allocation11 + $0xad0] sm:$0xff]
    %v2607 = vld [vmem:[#allocation11 + $0xad8] sm:$0xff]
    %v2608 = vld [vmem:[#allocation11 + $0xae0] sm:$0xff]
    %v2609 = vld [vmem:[#allocation11 + $0xae8] sm:$0xff]
    %v2610 = vld [vmem:[#allocation11 + $0xaf0] sm:$0xff]
    %v2611 = vld [vmem:[#allocation11 + $0xaf8] sm:$0xff]
    %v2612 = vld [vmem:[#allocation11 + $0xb00] sm:$0xff]
    %v2613 = vld [vmem:[#allocation11 + $0xb08] sm:$0xff]
    %v2614 = vld [vmem:[#allocation11 + $0xb10] sm:$0xff]
    %v2615 = vld [vmem:[#allocation11 + $0xb18] sm:$0xff]
    %v2616 = vld [vmem:[#allocation11 + $0xb20] sm:$0xff]
    %v2617 = vld [vmem:[#allocation11 + $0xb28] sm:$0xff]
    %v2618 = vld [vmem:[#allocation11 + $0xb30] sm:$0xff]
    %v2619 = vld [vmem:[#allocation11 + $0xb38] sm:$0xff]
    %v2620 = vld [vmem:[#allocation11 + $0xb40] sm:$0xff]
    %v2621 = vld [vmem:[#allocation11 + $0xb48] sm:$0xff]
    %v2622 = vld [vmem:[#allocation11 + $0xb50] sm:$0xff]
    %v2623 = vld [vmem:[#allocation11 + $0xb58] sm:$0xff]
    %v2624 = vld [vmem:[#allocation11 + $0xb60] sm:$0xff]
    %v2625 = vld [vmem:[#allocation11 + $0xb68] sm:$0xff]
    %v2626 = vld [vmem:[#allocation11 + $0xb70] sm:$0xff]
    %v2627 = vld [vmem:[#allocation11 + $0xb78] sm:$0xff]
    %v2628 = vld [vmem:[#allocation11 + $0xb80] sm:$0xff]
    %v2629 = vld [vmem:[#allocation11 + $0xb88] sm:$0xff]
    %v2630 = vld [vmem:[#allocation11 + $0xb90] sm:$0xff]
    %v2631 = vld [vmem:[#allocation11 + $0xb98] sm:$0xff]
    %v2632 = vld [vmem:[#allocation11 + $0xba0] sm:$0xff]
    %v2633 = vld [vmem:[#allocation11 + $0xba8] sm:$0xff]
    %v2634 = vld [vmem:[#allocation11 + $0xbb0] sm:$0xff]
    %v2635 = vld [vmem:[#allocation11 + $0xbb8] sm:$0xff]
    %v2636 = vld [vmem:[#allocation11 + $0xbc0] sm:$0xff]
    %v2637 = vld [vmem:[#allocation11 + $0xbc8] sm:$0xff]
    %v2638 = vld [vmem:[#allocation11 + $0xbd0] sm:$0xff]
    %v2639 = vld [vmem:[#allocation11 + $0xbd8] sm:$0xff]
    %v2640 = vld [vmem:[#allocation11 + $0xbe0] sm:$0xff]
    %v2641 = vld [vmem:[#allocation11 + $0xbe8] sm:$0xff]
    %v2642 = vld [vmem:[#allocation11 + $0xbf0] sm:$0xff]
    %v2643 = vld [vmem:[#allocation11 + $0xbf8] sm:$0xff]
    %v2644 = vld [vmem:[#allocation11 + $0xc00] sm:$0xff]
    %v2645 = vld [vmem:[#allocation11 + $0xc08] sm:$0xff]
    %v2646 = vld [vmem:[#allocation11 + $0xc10] sm:$0xff]
    %v2647 = vld [vmem:[#allocation11 + $0xc18] sm:$0xff]
    %v2648 = vld [vmem:[#allocation11 + $0xc20] sm:$0xff]
    %v2649 = vld [vmem:[#allocation11 + $0xc28] sm:$0xff]
    %v2650 = vld [vmem:[#allocation11 + $0xc30] sm:$0xff]
    %v2651 = vld [vmem:[#allocation11 + $0xc38] sm:$0xff]
    %v2652 = vld [vmem:[#allocation11 + $0xc40] sm:$0xff]
    %v2653 = vld [vmem:[#allocation11 + $0xc48] sm:$0xff]
    %v2654 = vld [vmem:[#allocation11 + $0xc50] sm:$0xff]
    %v2655 = vld [vmem:[#allocation11 + $0xc58] sm:$0xff]
    %v2656 = vld [vmem:[#allocation11 + $0xc60] sm:$0xff]
    %v2657 = vld [vmem:[#allocation11 + $0xc68] sm:$0xff]
    %v2658 = vld [vmem:[#allocation11 + $0xc70] sm:$0xff]
    %v2659 = vld [vmem:[#allocation11 + $0xc78] sm:$0xff]
    %v2660 = vld [vmem:[#allocation11 + $0xc80] sm:$0xff]
    %v2661 = vld [vmem:[#allocation11 + $0xc88] sm:$0xff]
    %v2662 = vld [vmem:[#allocation11 + $0xc90] sm:$0xff]
    %v2663 = vld [vmem:[#allocation11 + $0xc98] sm:$0xff]
    %v2664 = vld [vmem:[#allocation11 + $0xca0] sm:$0xff]
    %v2665 = vld [vmem:[#allocation11 + $0xca8] sm:$0xff]
    %v2666 = vld [vmem:[#allocation11 + $0xcb0] sm:$0xff]
    %v2667 = vld [vmem:[#allocation11 + $0xcb8] sm:$0xff]
    %v2668 = vld [vmem:[#allocation11 + $0xcc0] sm:$0xff]
    %v2669 = vld [vmem:[#allocation11 + $0xcc8] sm:$0xff]
    %v2670 = vld [vmem:[#allocation11 + $0xcd0] sm:$0xff]
    %v2671 = vld [vmem:[#allocation11 + $0xcd8] sm:$0xff]
    %v2672 = vld [vmem:[#allocation11 + $0xce0] sm:$0xff]
    %v2673 = vld [vmem:[#allocation11 + $0xce8] sm:$0xff]
    %v2674 = vld [vmem:[#allocation11 + $0xcf0] sm:$0xff]
    %v2675 = vld [vmem:[#allocation11 + $0xcf8] sm:$0xff]
    %v2676 = vld [vmem:[#allocation11 + $0xd00] sm:$0xff]
    %v2677 = vld [vmem:[#allocation11 + $0xd08] sm:$0xff]
    %v2678 = vld [vmem:[#allocation11 + $0xd10] sm:$0xff]
    %v2679 = vld [vmem:[#allocation11 + $0xd18] sm:$0xff]
    %v2680 = vld [vmem:[#allocation11 + $0xd20] sm:$0xff]
    %v2681 = vld [vmem:[#allocation11 + $0xd28] sm:$0xff]
    %v2682 = vld [vmem:[#allocation11 + $0xd30] sm:$0xff]
    %v2683 = vld [vmem:[#allocation11 + $0xd38] sm:$0xff]
    %v2684 = vld [vmem:[#allocation11 + $0xd40] sm:$0xff]
    %v2685 = vld [vmem:[#allocation11 + $0xd48] sm:$0xff]
    %v2686 = vld [vmem:[#allocation11 + $0xd50] sm:$0xff]
    %v2687 = vld [vmem:[#allocation11 + $0xd58] sm:$0xff]
    %v2688 = vld [vmem:[#allocation11 + $0xd60] sm:$0xff]
    %v2689 = vld [vmem:[#allocation11 + $0xd68] sm:$0xff]
    %v2690 = vld [vmem:[#allocation11 + $0xd70] sm:$0xff]
    %v2691 = vld [vmem:[#allocation11 + $0xd78] sm:$0xff]
    %v2692 = vld [vmem:[#allocation11 + $0xd80] sm:$0xff]
    %v2693 = vld [vmem:[#allocation11 + $0xd88] sm:$0xff]
    %v2694 = vld [vmem:[#allocation11 + $0xd90] sm:$0xff]
    %v2695 = vld [vmem:[#allocation11 + $0xd98] sm:$0xff]
    %v2696 = vld [vmem:[#allocation11 + $0xda0] sm:$0xff]
    %v2697 = vld [vmem:[#allocation11 + $0xda8] sm:$0xff]
    %v2698 = vld [vmem:[#allocation11 + $0xdb0] sm:$0xff]
    %v2699 = vld [vmem:[#allocation11 + $0xdb8] sm:$0xff]
    %v2700 = vld [vmem:[#allocation11 + $0xdc0] sm:$0xff]
    %v2701 = vld [vmem:[#allocation11 + $0xdc8] sm:$0xff]
    %v2702 = vld [vmem:[#allocation11 + $0xdd0] sm:$0xff]
    %v2703 = vld [vmem:[#allocation11 + $0xdd8] sm:$0xff]
    %v2704 = vld [vmem:[#allocation11 + $0xde0] sm:$0xff]
    %v2705 = vld [vmem:[#allocation11 + $0xde8] sm:$0xff]
    %v2706 = vld [vmem:[#allocation11 + $0xdf0] sm:$0xff]
    %v2707 = vld [vmem:[#allocation11 + $0xdf8] sm:$0xff]
    %v2708 = vld [vmem:[#allocation11 + $0xe00] sm:$0xff]
    %v2709 = vld [vmem:[#allocation11 + $0xe08] sm:$0xff]
    %v2710 = vld [vmem:[#allocation11 + $0xe10] sm:$0xff]
    %v2711 = vld [vmem:[#allocation11 + $0xe18] sm:$0xff]
    %v2712 = vld [vmem:[#allocation11 + $0xe20] sm:$0xff]
    %v2713 = vld [vmem:[#allocation11 + $0xe28] sm:$0xff]
    %v2714 = vld [vmem:[#allocation11 + $0xe30] sm:$0xff]
    %v2715 = vld [vmem:[#allocation11 + $0xe38] sm:$0xff]
    %v2716 = vld [vmem:[#allocation11 + $0xe40] sm:$0xff]
    %v2717 = vld [vmem:[#allocation11 + $0xe48] sm:$0xff]
    %v2718 = vld [vmem:[#allocation11 + $0xe50] sm:$0xff]
    %v2719 = vld [vmem:[#allocation11 + $0xe58] sm:$0xff]
    %v2720 = vld [vmem:[#allocation11 + $0xe60] sm:$0xff]
    %v2721 = vld [vmem:[#allocation11 + $0xe68] sm:$0xff]
    %v2722 = vld [vmem:[#allocation11 + $0xe70] sm:$0xff]
    %v2723 = vld [vmem:[#allocation11 + $0xe78] sm:$0xff]
    %v2724 = vld [vmem:[#allocation11 + $0xe80] sm:$0xff]
    %v2725 = vld [vmem:[#allocation11 + $0xe88] sm:$0xff]
    %v2726 = vld [vmem:[#allocation11 + $0xe90] sm:$0xff]
    %v2727 = vld [vmem:[#allocation11 + $0xe98] sm:$0xff]
    %v2728 = vld [vmem:[#allocation11 + $0xea0] sm:$0xff]
    %v2729 = vld [vmem:[#allocation11 + $0xea8] sm:$0xff]
    %v2730 = vld [vmem:[#allocation11 + $0xeb0] sm:$0xff]
    %v2731 = vld [vmem:[#allocation11 + $0xeb8] sm:$0xff]
    %v2732 = vld [vmem:[#allocation11 + $0xec0] sm:$0xff]
    %v2733 = vld [vmem:[#allocation11 + $0xec8] sm:$0xff]
    %v2734 = vld [vmem:[#allocation11 + $0xed0] sm:$0xff]
    %v2735 = vld [vmem:[#allocation11 + $0xed8] sm:$0xff]
    %v2736 = vld [vmem:[#allocation11 + $0xee0] sm:$0xff]
    %v2737 = vld [vmem:[#allocation11 + $0xee8] sm:$0xff]
    %v2738 = vld [vmem:[#allocation11 + $0xef0] sm:$0xff]
    %v2739 = vld [vmem:[#allocation11 + $0xef8] sm:$0xff]
    %v2740 = vld [vmem:[#allocation11 + $0xf00] sm:$0xff]
    %v2741 = vld [vmem:[#allocation11 + $0xf08] sm:$0xff]
    %v2742 = vld [vmem:[#allocation11 + $0xf10] sm:$0xff]
    %v2743 = vld [vmem:[#allocation11 + $0xf18] sm:$0xff]
    %v2744 = vld [vmem:[#allocation11 + $0xf20] sm:$0xff]
    %v2745 = vld [vmem:[#allocation11 + $0xf28] sm:$0xff]
    %v2746 = vld [vmem:[#allocation11 + $0xf30] sm:$0xff]
    %v2747 = vld [vmem:[#allocation11 + $0xf38] sm:$0xff]
    %v2748 = vld [vmem:[#allocation11 + $0xf40] sm:$0xff]
    %v2749 = vld [vmem:[#allocation11 + $0xf48] sm:$0xff]
    %v2750 = vld [vmem:[#allocation11 + $0xf50] sm:$0xff]
    %v2751 = vld [vmem:[#allocation11 + $0xf58] sm:$0xff]
    %v2752 = vld [vmem:[#allocation11 + $0xf60] sm:$0xff]
    %v2753 = vld [vmem:[#allocation11 + $0xf68] sm:$0xff]
    %v2754 = vld [vmem:[#allocation11 + $0xf70] sm:$0xff]
    %v2755 = vld [vmem:[#allocation11 + $0xf78] sm:$0xff]
    %v2756 = vld [vmem:[#allocation11 + $0xf80] sm:$0xff]
    %v2757 = vld [vmem:[#allocation11 + $0xf88] sm:$0xff]
    %v2758 = vld [vmem:[#allocation11 + $0xf90] sm:$0xff]
    %v2759 = vld [vmem:[#allocation11 + $0xf98] sm:$0xff]
    %v2760 = vld [vmem:[#allocation11 + $0xfa0] sm:$0xff]
    %v2761 = vld [vmem:[#allocation11 + $0xfa8] sm:$0xff]
    %v2762 = vld [vmem:[#allocation11 + $0xfb0] sm:$0xff]
    %v2763 = vld [vmem:[#allocation11 + $0xfb8] sm:$0xff]
    %v2764 = vld [vmem:[#allocation11 + $0xfc0] sm:$0xff]
    %v2765 = vld [vmem:[#allocation11 + $0xfc8] sm:$0xff]
    %v2766 = vld [vmem:[#allocation11 + $0xfd0] sm:$0xff]
    %v2767 = vld [vmem:[#allocation11 + $0xfd8] sm:$0xff]
    %v2768 = vld [vmem:[#allocation11 + $0xfe0] sm:$0xff]
    %v2769 = vld [vmem:[#allocation11 + $0xfe8] sm:$0xff]
    %v2770 = vld [vmem:[#allocation11 + $0xff0] sm:$0xff]
    %v2771 = vld [vmem:[#allocation11 + $0xff8] sm:$0xff]
    %v2772 = vld [vmem:[#allocation13] sm:$0xff]
    %v2774 = vperm.slane %v2772, 0
    %v2775 = vperm.slane %v2772, 1
    %v2776 = vperm.slane %v2772, 2
    %v2777 = vperm.slane %v2772, 3
    %v2778 = vperm.slane %v2772, 4
    %v2779 = vperm.slane %v2772, 5
    %v2780 = vperm.slane %v2772, 6
    %v2781 = vperm.slane %v2772, 7
    %2790 = vmatpush.msra.mxu0 %v2380
    %2791 = vmatpush.msra.mxu0 %v2372
    %2792 = vmatpush.msra.mxu0 %v2364
    %2793 = vmatpush.msra.mxu0 %v2356
    %2794 = vmatpush.msra.mxu0 %v2348
    %2795 = vmatpush.msra.mxu0 %v2340
    %2796 = vmatpush.msra.mxu0 %v2332
    %2797 = vmatpush.msra.mxu0 %v2324
    %2798 = vmatpush.msra.mxu0 %v2316
    %2799 = vmatpush.msra.mxu0 %v2308
    %2800 = vmatpush.msra.mxu0 %v2300
    %2801 = vmatpush.msra.mxu0 %v2292
    %2802 = vmatpush.msra.mxu0 %v2284
    %2803 = vmatpush.msra.mxu0 %v2276
    %2804 = vmatpush.msra.mxu0 %v2268
    %2805 = vmatpush.msra.mxu0 %v2260
    %2806 = vmatmul.f32.gmra.mxu0 %v2256
    %v2807 = vpop.f32.mrf.mxu0
    %v2808 = vadd.f32 %v2774, %v2807
    %2809 = vdwg.mxu0
    %2810 = vmatpush.msra.mxu0 %v2508
    %2811 = vmatpush.msra.mxu0 %v2500
    %2812 = vmatpush.msra.mxu0 %v2492
    %2813 = vmatpush.msra.mxu0 %v2484
    %2814 = vmatpush.msra.mxu0 %v2476
    %2815 = vmatpush.msra.mxu0 %v2468
    %2816 = vmatpush.msra.mxu0 %v2460
    %2817 = vmatpush.msra.mxu0 %v2452
    %2818 = vmatpush.msra.mxu0 %v2444
    %2819 = vmatpush.msra.mxu0 %v2436
    %2820 = vmatpush.msra.mxu0 %v2428
    %2821 = vmatpush.msra.mxu0 %v2420
    %2822 = vmatpush.msra.mxu0 %v2412
    %2823 = vmatpush.msra.mxu0 %v2404
    %2824 = vmatpush.msra.mxu0 %v2396
    %2825 = vmatpush.msra.mxu0 %v2388
    %2826 = vmatmul.f32.gmra.mxu0 %v2257
    %v2827 = vpop.f32.mrf.mxu0
    %v2828 = vadd.f32 %v2808, %v2827
    %2829 = vdwg.mxu0
    %2830 = vmatpush.msra.mxu0 %v2636
    %2831 = vmatpush.msra.mxu0 %v2628
    %2832 = vmatpush.msra.mxu0 %v2620
    %2833 = vmatpush.msra.mxu0 %v2612
    %2834 = vmatpush.msra.mxu0 %v2604
    %2835 = vmatpush.msra.mxu0 %v2596
    %2836 = vmatpush.msra.mxu0 %v2588
    %2837 = vmatpush.msra.mxu0 %v2580
    %2838 = vmatpush.msra.mxu0 %v2572
    %2839 = vmatpush.msra.mxu0 %v2564
    %2840 = vmatpush.msra.mxu0 %v2556
    %2841 = vmatpush.msra.mxu0 %v2548
    %2842 = vmatpush.msra.mxu0 %v2540
    %2843 = vmatpush.msra.mxu0 %v2532
    %2844 = vmatpush.msra.mxu0 %v2524
    %2845 = vmatpush.msra.mxu0 %v2516
    %2846 = vmatmul.f32.gmra.mxu0 %v2258
    %v2847 = vpop.f32.mrf.mxu0
    %v2848 = vadd.f32 %v2828, %v2847
    %2849 = vdwg.mxu0
    %2850 = vmatpush.msra.mxu0 %v2764
    %2851 = vmatpush.msra.mxu0 %v2756
    %2852 = vmatpush.msra.mxu0 %v2748
    %2853 = vmatpush.msra.mxu0 %v2740
    %2854 = vmatpush.msra.mxu0 %v2732
    %2855 = vmatpush.msra.mxu0 %v2724
    %2856 = vmatpush.msra.mxu0 %v2716
    %2857 = vmatpush.msra.mxu0 %v2708
    %2858 = vmatpush.msra.mxu0 %v2700
    %2859 = vmatpush.msra.mxu0 %v2692
    %2860 = vmatpush.msra.mxu0 %v2684
    %2861 = vmatpush.msra.mxu0 %v2676
    %2862 = vmatpush.msra.mxu0 %v2668
    %2863 = vmatpush.msra.mxu0 %v2660
    %2864 = vmatpush.msra.mxu0 %v2652
    %2865 = vmatpush.msra.mxu0 %v2644
    %2866 = vmatmul.f32.gmra.mxu0 %v2259
    %v2867 = vpop.f32.mrf.mxu0
    %v2868 = vadd.f32 %v2848, %v2867
    %2869 = vdwg.mxu0
    %2870 = vmatpush.msra.mxu0 %v2381
    %2871 = vmatpush.msra.mxu0 %v2373
    %2872 = vmatpush.msra.mxu0 %v2365
    %2873 = vmatpush.msra.mxu0 %v2357
    %2874 = vmatpush.msra.mxu0 %v2349
    %2875 = vmatpush.msra.mxu0 %v2341
    %2876 = vmatpush.msra.mxu0 %v2333
    %2877 = vmatpush.msra.mxu0 %v2325
    %2878 = vmatpush.msra.mxu0 %v2317
    %2879 = vmatpush.msra.mxu0 %v2309
    %2880 = vmatpush.msra.mxu0 %v2301
    %2881 = vmatpush.msra.mxu0 %v2293
    %2882 = vmatpush.msra.mxu0 %v2285
    %2883 = vmatpush.msra.mxu0 %v2277
    %2884 = vmatpush.msra.mxu0 %v2269
    %2885 = vmatpush.msra.mxu0 %v2261
    %2886 = vmatmul.f32.gmra.mxu0 %v2256
    %v2887 = vpop.f32.mrf.mxu0
    %v2888 = vadd.f32 %v2775, %v2887
    %2889 = vdwg.mxu0
    %2890 = vmatpush.msra.mxu0 %v2509
    %2891 = vmatpush.msra.mxu0 %v2501
    %2892 = vmatpush.msra.mxu0 %v2493
    %2893 = vmatpush.msra.mxu0 %v2485
    %2894 = vmatpush.msra.mxu0 %v2477
    %2895 = vmatpush.msra.mxu0 %v2469
    %2896 = vmatpush.msra.mxu0 %v2461
    %2897 = vmatpush.msra.mxu0 %v2453
    %2898 = vmatpush.msra.mxu0 %v2445
    %2899 = vmatpush.msra.mxu0 %v2437
    %2900 = vmatpush.msra.mxu0 %v2429
    %2901 = vmatpush.msra.mxu0 %v2421
    %2902 = vmatpush.msra.mxu0 %v2413
    %2903 = vmatpush.msra.mxu0 %v2405
    %2904 = vmatpush.msra.mxu0 %v2397
    %2905 = vmatpush.msra.mxu0 %v2389
    %2906 = vmatmul.f32.gmra.mxu0 %v2257
    %v2907 = vpop.f32.mrf.mxu0
    %v2908 = vadd.f32 %v2888, %v2907
    %2909 = vdwg.mxu0
    %2910 = vmatpush.msra.mxu0 %v2637
    %2911 = vmatpush.msra.mxu0 %v2629
    %2912 = vmatpush.msra.mxu0 %v2621
    %2913 = vmatpush.msra.mxu0 %v2613
    %2914 = vmatpush.msra.mxu0 %v2605
    %2915 = vmatpush.msra.mxu0 %v2597
    %2916 = vmatpush.msra.mxu0 %v2589
    %2917 = vmatpush.msra.mxu0 %v2581
    %2918 = vmatpush.msra.mxu0 %v2573
    %2919 = vmatpush.msra.mxu0 %v2565
    %2920 = vmatpush.msra.mxu0 %v2557
    %2921 = vmatpush.msra.mxu0 %v2549
    %2922 = vmatpush.msra.mxu0 %v2541
    %2923 = vmatpush.msra.mxu0 %v2533
    %2924 = vmatpush.msra.mxu0 %v2525
    %2925 = vmatpush.msra.mxu0 %v2517
    %2926 = vmatmul.f32.gmra.mxu0 %v2258
    %v2927 = vpop.f32.mrf.mxu0
    %v2928 = vadd.f32 %v2908, %v2927
    %2929 = vdwg.mxu0
    %2930 = vmatpush.msra.mxu0 %v2765
    %2931 = vmatpush.msra.mxu0 %v2757
    %2932 = vmatpush.msra.mxu0 %v2749
    %2933 = vmatpush.msra.mxu0 %v2741
    %2934 = vmatpush.msra.mxu0 %v2733
    %2935 = vmatpush.msra.mxu0 %v2725
    %2936 = vmatpush.msra.mxu0 %v2717
    %2937 = vmatpush.msra.mxu0 %v2709
    %2938 = vmatpush.msra.mxu0 %v2701
    %2939 = vmatpush.msra.mxu0 %v2693
    %2940 = vmatpush.msra.mxu0 %v2685
    %2941 = vmatpush.msra.mxu0 %v2677
    %2942 = vmatpush.msra.mxu0 %v2669
    %2943 = vmatpush.msra.mxu0 %v2661
    %2944 = vmatpush.msra.mxu0 %v2653
    %2945 = vmatpush.msra.mxu0 %v2645
    %2946 = vmatmul.f32.gmra.mxu0 %v2259
    %v2947 = vpop.f32.mrf.mxu0
    %v2948 = vadd.f32 %v2928, %v2947
    %2949 = vdwg.mxu0
    %2950 = vmatpush.msra.mxu0 %v2382
    %2951 = vmatpush.msra.mxu0 %v2374
    %2952 = vmatpush.msra.mxu0 %v2366
    %2953 = vmatpush.msra.mxu0 %v2358
    %2954 = vmatpush.msra.mxu0 %v2350
    %2955 = vmatpush.msra.mxu0 %v2342
    %2956 = vmatpush.msra.mxu0 %v2334
    %2957 = vmatpush.msra.mxu0 %v2326
    %2958 = vmatpush.msra.mxu0 %v2318
    %2959 = vmatpush.msra.mxu0 %v2310
    %2960 = vmatpush.msra.mxu0 %v2302
    %2961 = vmatpush.msra.mxu0 %v2294
    %2962 = vmatpush.msra.mxu0 %v2286
    %2963 = vmatpush.msra.mxu0 %v2278
    %2964 = vmatpush.msra.mxu0 %v2270
    %2965 = vmatpush.msra.mxu0 %v2262
    %2966 = vmatmul.f32.gmra.mxu0 %v2256
    %v2967 = vpop.f32.mrf.mxu0
    %v2968 = vadd.f32 %v2776, %v2967
    %2969 = vdwg.mxu0
    %2970 = vmatpush.msra.mxu0 %v2510
    %2971 = vmatpush.msra.mxu0 %v2502
    %2972 = vmatpush.msra.mxu0 %v2494
    %2973 = vmatpush.msra.mxu0 %v2486
    %2974 = vmatpush.msra.mxu0 %v2478
    %2975 = vmatpush.msra.mxu0 %v2470
    %2976 = vmatpush.msra.mxu0 %v2462
    %2977 = vmatpush.msra.mxu0 %v2454
    %2978 = vmatpush.msra.mxu0 %v2446
    %2979 = vmatpush.msra.mxu0 %v2438
    %2980 = vmatpush.msra.mxu0 %v2430
    %2981 = vmatpush.msra.mxu0 %v2422
    %2982 = vmatpush.msra.mxu0 %v2414
    %2983 = vmatpush.msra.mxu0 %v2406
    %2984 = vmatpush.msra.mxu0 %v2398
    %2985 = vmatpush.msra.mxu0 %v2390
    %2986 = vmatmul.f32.gmra.mxu0 %v2257
    %v2987 = vpop.f32.mrf.mxu0
    %v2988 = vadd.f32 %v2968, %v2987
    %2989 = vdwg.mxu0
    %2990 = vmatpush.msra.mxu0 %v2638
    %2991 = vmatpush.msra.mxu0 %v2630
    %2992 = vmatpush.msra.mxu0 %v2622
    %2993 = vmatpush.msra.mxu0 %v2614
    %2994 = vmatpush.msra.mxu0 %v2606
    %2995 = vmatpush.msra.mxu0 %v2598
    %2996 = vmatpush.msra.mxu0 %v2590
    %2997 = vmatpush.msra.mxu0 %v2582
    %2998 = vmatpush.msra.mxu0 %v2574
    %2999 = vmatpush.msra.mxu0 %v2566
    %3000 = vmatpush.msra.mxu0 %v2558
    %3001 = vmatpush.msra.mxu0 %v2550
    %3002 = vmatpush.msra.mxu0 %v2542
    %3003 = vmatpush.msra.mxu0 %v2534
    %3004 = vmatpush.msra.mxu0 %v2526
    %3005 = vmatpush.msra.mxu0 %v2518
    %3006 = vmatmul.f32.gmra.mxu0 %v2258
    %v3007 = vpop.f32.mrf.mxu0
    %v3008 = vadd.f32 %v2988, %v3007
    %3009 = vdwg.mxu0
    %3010 = vmatpush.msra.mxu0 %v2766
    %3011 = vmatpush.msra.mxu0 %v2758
    %3012 = vmatpush.msra.mxu0 %v2750
    %3013 = vmatpush.msra.mxu0 %v2742
    %3014 = vmatpush.msra.mxu0 %v2734
    %3015 = vmatpush.msra.mxu0 %v2726
    %3016 = vmatpush.msra.mxu0 %v2718
    %3017 = vmatpush.msra.mxu0 %v2710
    %3018 = vmatpush.msra.mxu0 %v2702
    %3019 = vmatpush.msra.mxu0 %v2694
    %3020 = vmatpush.msra.mxu0 %v2686
    %3021 = vmatpush.msra.mxu0 %v2678
    %3022 = vmatpush.msra.mxu0 %v2670
    %3023 = vmatpush.msra.mxu0 %v2662
    %3024 = vmatpush.msra.mxu0 %v2654
    %3025 = vmatpush.msra.mxu0 %v2646
    %3026 = vmatmul.f32.gmra.mxu0 %v2259
    %v3027 = vpop.f32.mrf.mxu0
    %v3028 = vadd.f32 %v3008, %v3027
    %3029 = vdwg.mxu0
    %3030 = vmatpush.msra.mxu0 %v2383
    %3031 = vmatpush.msra.mxu0 %v2375
    %3032 = vmatpush.msra.mxu0 %v2367
    %3033 = vmatpush.msra.mxu0 %v2359
    %3034 = vmatpush.msra.mxu0 %v2351
    %3035 = vmatpush.msra.mxu0 %v2343
    %3036 = vmatpush.msra.mxu0 %v2335
    %3037 = vmatpush.msra.mxu0 %v2327
    %3038 = vmatpush.msra.mxu0 %v2319
    %3039 = vmatpush.msra.mxu0 %v2311
    %3040 = vmatpush.msra.mxu0 %v2303
    %3041 = vmatpush.msra.mxu0 %v2295
    %3042 = vmatpush.msra.mxu0 %v2287
    %3043 = vmatpush.msra.mxu0 %v2279
    %3044 = vmatpush.msra.mxu0 %v2271
    %3045 = vmatpush.msra.mxu0 %v2263
    %3046 = vmatmul.f32.gmra.mxu0 %v2256
    %v3047 = vpop.f32.mrf.mxu0
    %v3048 = vadd.f32 %v2777, %v3047
    %3049 = vdwg.mxu0
    %3050 = vmatpush.msra.mxu0 %v2511
    %3051 = vmatpush.msra.mxu0 %v2503
    %3052 = vmatpush.msra.mxu0 %v2495
    %3053 = vmatpush.msra.mxu0 %v2487
    %3054 = vmatpush.msra.mxu0 %v2479
    %3055 = vmatpush.msra.mxu0 %v2471
    %3056 = vmatpush.msra.mxu0 %v2463
    %3057 = vmatpush.msra.mxu0 %v2455
    %3058 = vmatpush.msra.mxu0 %v2447
    %3059 = vmatpush.msra.mxu0 %v2439
    %3060 = vmatpush.msra.mxu0 %v2431
    %3061 = vmatpush.msra.mxu0 %v2423
    %3062 = vmatpush.msra.mxu0 %v2415
    %3063 = vmatpush.msra.mxu0 %v2407
    %3064 = vmatpush.msra.mxu0 %v2399
    %3065 = vmatpush.msra.mxu0 %v2391
    %3066 = vmatmul.f32.gmra.mxu0 %v2257
    %v3067 = vpop.f32.mrf.mxu0
    %v3068 = vadd.f32 %v3048, %v3067
    %3069 = vdwg.mxu0
    %3070 = vmatpush.msra.mxu0 %v2639
    %3071 = vmatpush.msra.mxu0 %v2631
    %3072 = vmatpush.msra.mxu0 %v2623
    %3073 = vmatpush.msra.mxu0 %v2615
    %3074 = vmatpush.msra.mxu0 %v2607
    %3075 = vmatpush.msra.mxu0 %v2599
    %3076 = vmatpush.msra.mxu0 %v2591
    %3077 = vmatpush.msra.mxu0 %v2583
    %3078 = vmatpush.msra.mxu0 %v2575
    %3079 = vmatpush.msra.mxu0 %v2567
    %3080 = vmatpush.msra.mxu0 %v2559
    %3081 = vmatpush.msra.mxu0 %v2551
    %3082 = vmatpush.msra.mxu0 %v2543
    %3083 = vmatpush.msra.mxu0 %v2535
    %3084 = vmatpush.msra.mxu0 %v2527
    %3085 = vmatpush.msra.mxu0 %v2519
    %3086 = vmatmul.f32.gmra.mxu0 %v2258
    %v3087 = vpop.f32.mrf.mxu0
    %v3088 = vadd.f32 %v3068, %v3087
    %3089 = vdwg.mxu0
    %3090 = vmatpush.msra.mxu0 %v2767
    %3091 = vmatpush.msra.mxu0 %v2759
    %3092 = vmatpush.msra.mxu0 %v2751
    %3093 = vmatpush.msra.mxu0 %v2743
    %3094 = vmatpush.msra.mxu0 %v2735
    %3095 = vmatpush.msra.mxu0 %v2727
    %3096 = vmatpush.msra.mxu0 %v2719
    %3097 = vmatpush.msra.mxu0 %v2711
    %3098 = vmatpush.msra.mxu0 %v2703
    %3099 = vmatpush.msra.mxu0 %v2695
    %3100 = vmatpush.msra.mxu0 %v2687
    %3101 = vmatpush.msra.mxu0 %v2679
    %3102 = vmatpush.msra.mxu0 %v2671
    %3103 = vmatpush.msra.mxu0 %v2663
    %3104 = vmatpush.msra.mxu0 %v2655
    %3105 = vmatpush.msra.mxu0 %v2647
    %3106 = vmatmul.f32.gmra.mxu0 %v2259
    %v3107 = vpop.f32.mrf.mxu0
    %v3108 = vadd.f32 %v3088, %v3107
    %3109 = vdwg.mxu0
    %3110 = vmatpush.msra.mxu0 %v2384
    %3111 = vmatpush.msra.mxu0 %v2376
    %3112 = vmatpush.msra.mxu0 %v2368
    %3113 = vmatpush.msra.mxu0 %v2360
    %3114 = vmatpush.msra.mxu0 %v2352
    %3115 = vmatpush.msra.mxu0 %v2344
    %3116 = vmatpush.msra.mxu0 %v2336
    %3117 = vmatpush.msra.mxu0 %v2328
    %3118 = vmatpush.msra.mxu0 %v2320
    %3119 = vmatpush.msra.mxu0 %v2312
    %3120 = vmatpush.msra.mxu0 %v2304
    %3121 = vmatpush.msra.mxu0 %v2296
    %3122 = vmatpush.msra.mxu0 %v2288
    %3123 = vmatpush.msra.mxu0 %v2280
    %3124 = vmatpush.msra.mxu0 %v2272
    %3125 = vmatpush.msra.mxu0 %v2264
    %3126 = vmatmul.f32.gmra.mxu0 %v2256
    %v3127 = vpop.f32.mrf.mxu0
    %v3128 = vadd.f32 %v2778, %v3127
    %3129 = vdwg.mxu0
    %3130 = vmatpush.msra.mxu0 %v2512
    %3131 = vmatpush.msra.mxu0 %v2504
    %3132 = vmatpush.msra.mxu0 %v2496
    %3133 = vmatpush.msra.mxu0 %v2488
    %3134 = vmatpush.msra.mxu0 %v2480
    %3135 = vmatpush.msra.mxu0 %v2472
    %3136 = vmatpush.msra.mxu0 %v2464
    %3137 = vmatpush.msra.mxu0 %v2456
    %3138 = vmatpush.msra.mxu0 %v2448
    %3139 = vmatpush.msra.mxu0 %v2440
    %3140 = vmatpush.msra.mxu0 %v2432
    %3141 = vmatpush.msra.mxu0 %v2424
    %3142 = vmatpush.msra.mxu0 %v2416
    %3143 = vmatpush.msra.mxu0 %v2408
    %3144 = vmatpush.msra.mxu0 %v2400
    %3145 = vmatpush.msra.mxu0 %v2392
    %3146 = vmatmul.f32.gmra.mxu0 %v2257
    %v3147 = vpop.f32.mrf.mxu0
    %v3148 = vadd.f32 %v3128, %v3147
    %3149 = vdwg.mxu0
    %3150 = vmatpush.msra.mxu0 %v2640
    %3151 = vmatpush.msra.mxu0 %v2632
    %3152 = vmatpush.msra.mxu0 %v2624
    %3153 = vmatpush.msra.mxu0 %v2616
    %3154 = vmatpush.msra.mxu0 %v2608
    %3155 = vmatpush.msra.mxu0 %v2600
    %3156 = vmatpush.msra.mxu0 %v2592
    %3157 = vmatpush.msra.mxu0 %v2584
    %3158 = vmatpush.msra.mxu0 %v2576
    %3159 = vmatpush.msra.mxu0 %v2568
    %3160 = vmatpush.msra.mxu0 %v2560
    %3161 = vmatpush.msra.mxu0 %v2552
    %3162 = vmatpush.msra.mxu0 %v2544
    %3163 = vmatpush.msra.mxu0 %v2536
    %3164 = vmatpush.msra.mxu0 %v2528
    %3165 = vmatpush.msra.mxu0 %v2520
    %3166 = vmatmul.f32.gmra.mxu0 %v2258
    %v3167 = vpop.f32.mrf.mxu0
    %v3168 = vadd.f32 %v3148, %v3167
    %3169 = vdwg.mxu0
    %3170 = vmatpush.msra.mxu0 %v2768
    %3171 = vmatpush.msra.mxu0 %v2760
    %3172 = vmatpush.msra.mxu0 %v2752
    %3173 = vmatpush.msra.mxu0 %v2744
    %3174 = vmatpush.msra.mxu0 %v2736
    %3175 = vmatpush.msra.mxu0 %v2728
    %3176 = vmatpush.msra.mxu0 %v2720
    %3177 = vmatpush.msra.mxu0 %v2712
    %3178 = vmatpush.msra.mxu0 %v2704
    %3179 = vmatpush.msra.mxu0 %v2696
    %3180 = vmatpush.msra.mxu0 %v2688
    %3181 = vmatpush.msra.mxu0 %v2680
    %3182 = vmatpush.msra.mxu0 %v2672
    %3183 = vmatpush.msra.mxu0 %v2664
    %3184 = vmatpush.msra.mxu0 %v2656
    %3185 = vmatpush.msra.mxu0 %v2648
    %3186 = vmatmul.f32.gmra.mxu0 %v2259
    %v3187 = vpop.f32.mrf.mxu0
    %v3188 = vadd.f32 %v3168, %v3187
    %3189 = vdwg.mxu0
    %3190 = vmatpush.msra.mxu0 %v2385
    %3191 = vmatpush.msra.mxu0 %v2377
    %3192 = vmatpush.msra.mxu0 %v2369
    %3193 = vmatpush.msra.mxu0 %v2361
    %3194 = vmatpush.msra.mxu0 %v2353
    %3195 = vmatpush.msra.mxu0 %v2345
    %3196 = vmatpush.msra.mxu0 %v2337
    %3197 = vmatpush.msra.mxu0 %v2329
    %3198 = vmatpush.msra.mxu0 %v2321
    %3199 = vmatpush.msra.mxu0 %v2313
    %3200 = vmatpush.msra.mxu0 %v2305
    %3201 = vmatpush.msra.mxu0 %v2297
    %3202 = vmatpush.msra.mxu0 %v2289
    %3203 = vmatpush.msra.mxu0 %v2281
    %3204 = vmatpush.msra.mxu0 %v2273
    %3205 = vmatpush.msra.mxu0 %v2265
    %3206 = vmatmul.f32.gmra.mxu0 %v2256
    %v3207 = vpop.f32.mrf.mxu0
    %v3208 = vadd.f32 %v2779, %v3207
    %3209 = vdwg.mxu0
    %3210 = vmatpush.msra.mxu0 %v2513
    %3211 = vmatpush.msra.mxu0 %v2505
    %3212 = vmatpush.msra.mxu0 %v2497
    %3213 = vmatpush.msra.mxu0 %v2489
    %3214 = vmatpush.msra.mxu0 %v2481
    %3215 = vmatpush.msra.mxu0 %v2473
    %3216 = vmatpush.msra.mxu0 %v2465
    %3217 = vmatpush.msra.mxu0 %v2457
    %3218 = vmatpush.msra.mxu0 %v2449
    %3219 = vmatpush.msra.mxu0 %v2441
    %3220 = vmatpush.msra.mxu0 %v2433
    %3221 = vmatpush.msra.mxu0 %v2425
    %3222 = vmatpush.msra.mxu0 %v2417
    %3223 = vmatpush.msra.mxu0 %v2409
    %3224 = vmatpush.msra.mxu0 %v2401
    %3225 = vmatpush.msra.mxu0 %v2393
    %3226 = vmatmul.f32.gmra.mxu0 %v2257
    %v3227 = vpop.f32.mrf.mxu0
    %v3228 = vadd.f32 %v3208, %v3227
    %3229 = vdwg.mxu0
    %3230 = vmatpush.msra.mxu0 %v2641
    %3231 = vmatpush.msra.mxu0 %v2633
    %3232 = vmatpush.msra.mxu0 %v2625
    %3233 = vmatpush.msra.mxu0 %v2617
    %3234 = vmatpush.msra.mxu0 %v2609
    %3235 = vmatpush.msra.mxu0 %v2601
    %3236 = vmatpush.msra.mxu0 %v2593
    %3237 = vmatpush.msra.mxu0 %v2585
    %3238 = vmatpush.msra.mxu0 %v2577
    %3239 = vmatpush.msra.mxu0 %v2569
    %3240 = vmatpush.msra.mxu0 %v2561
    %3241 = vmatpush.msra.mxu0 %v2553
    %3242 = vmatpush.msra.mxu0 %v2545
    %3243 = vmatpush.msra.mxu0 %v2537
    %3244 = vmatpush.msra.mxu0 %v2529
    %3245 = vmatpush.msra.mxu0 %v2521
    %3246 = vmatmul.f32.gmra.mxu0 %v2258
    %v3247 = vpop.f32.mrf.mxu0
    %v3248 = vadd.f32 %v3228, %v3247
    %3249 = vdwg.mxu0
    %3250 = vmatpush.msra.mxu0 %v2769
    %3251 = vmatpush.msra.mxu0 %v2761
    %3252 = vmatpush.msra.mxu0 %v2753
    %3253 = vmatpush.msra.mxu0 %v2745
    %3254 = vmatpush.msra.mxu0 %v2737
    %3255 = vmatpush.msra.mxu0 %v2729
    %3256 = vmatpush.msra.mxu0 %v2721
    %3257 = vmatpush.msra.mxu0 %v2713
    %3258 = vmatpush.msra.mxu0 %v2705
    %3259 = vmatpush.msra.mxu0 %v2697
    %3260 = vmatpush.msra.mxu0 %v2689
    %3261 = vmatpush.msra.mxu0 %v2681
    %3262 = vmatpush.msra.mxu0 %v2673
    %3263 = vmatpush.msra.mxu0 %v2665
    %3264 = vmatpush.msra.mxu0 %v2657
    %3265 = vmatpush.msra.mxu0 %v2649
    %3266 = vmatmul.f32.gmra.mxu0 %v2259
    %v3267 = vpop.f32.mrf.mxu0
    %v3268 = vadd.f32 %v3248, %v3267
    %3269 = vdwg.mxu0
    %3270 = vmatpush.msra.mxu0 %v2386
    %3271 = vmatpush.msra.mxu0 %v2378
    %3272 = vmatpush.msra.mxu0 %v2370
    %3273 = vmatpush.msra.mxu0 %v2362
    %3274 = vmatpush.msra.mxu0 %v2354
    %3275 = vmatpush.msra.mxu0 %v2346
    %3276 = vmatpush.msra.mxu0 %v2338
    %3277 = vmatpush.msra.mxu0 %v2330
    %3278 = vmatpush.msra.mxu0 %v2322
    %3279 = vmatpush.msra.mxu0 %v2314
    %3280 = vmatpush.msra.mxu0 %v2306
    %3281 = vmatpush.msra.mxu0 %v2298
    %3282 = vmatpush.msra.mxu0 %v2290
    %3283 = vmatpush.msra.mxu0 %v2282
    %3284 = vmatpush.msra.mxu0 %v2274
    %3285 = vmatpush.msra.mxu0 %v2266
    %3286 = vmatmul.f32.gmra.mxu0 %v2256
    %v3287 = vpop.f32.mrf.mxu0
    %v3288 = vadd.f32 %v2780, %v3287
    %3289 = vdwg.mxu0
    %3290 = vmatpush.msra.mxu0 %v2514
    %3291 = vmatpush.msra.mxu0 %v2506
    %3292 = vmatpush.msra.mxu0 %v2498
    %3293 = vmatpush.msra.mxu0 %v2490
    %3294 = vmatpush.msra.mxu0 %v2482
    %3295 = vmatpush.msra.mxu0 %v2474
    %3296 = vmatpush.msra.mxu0 %v2466
    %3297 = vmatpush.msra.mxu0 %v2458
    %3298 = vmatpush.msra.mxu0 %v2450
    %3299 = vmatpush.msra.mxu0 %v2442
    %3300 = vmatpush.msra.mxu0 %v2434
    %3301 = vmatpush.msra.mxu0 %v2426
    %3302 = vmatpush.msra.mxu0 %v2418
    %3303 = vmatpush.msra.mxu0 %v2410
    %3304 = vmatpush.msra.mxu0 %v2402
    %3305 = vmatpush.msra.mxu0 %v2394
    %3306 = vmatmul.f32.gmra.mxu0 %v2257
    %v3307 = vpop.f32.mrf.mxu0
    %v3308 = vadd.f32 %v3288, %v3307
    %3309 = vdwg.mxu0
    %3310 = vmatpush.msra.mxu0 %v2642
    %3311 = vmatpush.msra.mxu0 %v2634
    %3312 = vmatpush.msra.mxu0 %v2626
    %3313 = vmatpush.msra.mxu0 %v2618
    %3314 = vmatpush.msra.mxu0 %v2610
    %3315 = vmatpush.msra.mxu0 %v2602
    %3316 = vmatpush.msra.mxu0 %v2594
    %3317 = vmatpush.msra.mxu0 %v2586
    %3318 = vmatpush.msra.mxu0 %v2578
    %3319 = vmatpush.msra.mxu0 %v2570
    %3320 = vmatpush.msra.mxu0 %v2562
    %3321 = vmatpush.msra.mxu0 %v2554
    %3322 = vmatpush.msra.mxu0 %v2546
    %3323 = vmatpush.msra.mxu0 %v2538
    %3324 = vmatpush.msra.mxu0 %v2530
    %3325 = vmatpush.msra.mxu0 %v2522
    %3326 = vmatmul.f32.gmra.mxu0 %v2258
    %v3327 = vpop.f32.mrf.mxu0
    %v3328 = vadd.f32 %v3308, %v3327
    %3329 = vdwg.mxu0
    %3330 = vmatpush.msra.mxu0 %v2770
    %3331 = vmatpush.msra.mxu0 %v2762
    %3332 = vmatpush.msra.mxu0 %v2754
    %3333 = vmatpush.msra.mxu0 %v2746
    %3334 = vmatpush.msra.mxu0 %v2738
    %3335 = vmatpush.msra.mxu0 %v2730
    %3336 = vmatpush.msra.mxu0 %v2722
    %3337 = vmatpush.msra.mxu0 %v2714
    %3338 = vmatpush.msra.mxu0 %v2706
    %3339 = vmatpush.msra.mxu0 %v2698
    %3340 = vmatpush.msra.mxu0 %v2690
    %3341 = vmatpush.msra.mxu0 %v2682
    %3342 = vmatpush.msra.mxu0 %v2674
    %3343 = vmatpush.msra.mxu0 %v2666
    %3344 = vmatpush.msra.mxu0 %v2658
    %3345 = vmatpush.msra.mxu0 %v2650
    %3346 = vmatmul.f32.gmra.mxu0 %v2259
    %v3347 = vpop.f32.mrf.mxu0
    %v3348 = vadd.f32 %v3328, %v3347
    %3349 = vdwg.mxu0
    %3350 = vmatpush.msra.mxu0 %v2387
    %3351 = vmatpush.msra.mxu0 %v2379
    %3352 = vmatpush.msra.mxu0 %v2371
    %3353 = vmatpush.msra.mxu0 %v2363
    %3354 = vmatpush.msra.mxu0 %v2355
    %3355 = vmatpush.msra.mxu0 %v2347
    %3356 = vmatpush.msra.mxu0 %v2339
    %3357 = vmatpush.msra.mxu0 %v2331
    %3358 = vmatpush.msra.mxu0 %v2323
    %3359 = vmatpush.msra.mxu0 %v2315
    %3360 = vmatpush.msra.mxu0 %v2307
    %3361 = vmatpush.msra.mxu0 %v2299
    %3362 = vmatpush.msra.mxu0 %v2291
    %3363 = vmatpush.msra.mxu0 %v2283
    %3364 = vmatpush.msra.mxu0 %v2275
    %3365 = vmatpush.msra.mxu0 %v2267
    %3366 = vmatmul.f32.gmra.mxu0 %v2256
    %v3367 = vpop.f32.mrf.mxu0
    %v3368 = vadd.f32 %v2781, %v3367
    %3369 = vdwg.mxu0
    %3370 = vmatpush.msra.mxu0 %v2515
    %3371 = vmatpush.msra.mxu0 %v2507
    %3372 = vmatpush.msra.mxu0 %v2499
    %3373 = vmatpush.msra.mxu0 %v2491
    %3374 = vmatpush.msra.mxu0 %v2483
    %3375 = vmatpush.msra.mxu0 %v2475
    %3376 = vmatpush.msra.mxu0 %v2467
    %3377 = vmatpush.msra.mxu0 %v2459
    %3378 = vmatpush.msra.mxu0 %v2451
    %3379 = vmatpush.msra.mxu0 %v2443
    %3380 = vmatpush.msra.mxu0 %v2435
    %3381 = vmatpush.msra.mxu0 %v2427
    %3382 = vmatpush.msra.mxu0 %v2419
    %3383 = vmatpush.msra.mxu0 %v2411
    %3384 = vmatpush.msra.mxu0 %v2403
    %3385 = vmatpush.msra.mxu0 %v2395
    %3386 = vmatmul.f32.gmra.mxu0 %v2257
    %v3387 = vpop.f32.mrf.mxu0
    %v3388 = vadd.f32 %v3368, %v3387
    %3389 = vdwg.mxu0
    %3390 = vmatpush.msra.mxu0 %v2643
    %3391 = vmatpush.msra.mxu0 %v2635
    %3392 = vmatpush.msra.mxu0 %v2627
    %3393 = vmatpush.msra.mxu0 %v2619
    %3394 = vmatpush.msra.mxu0 %v2611
    %3395 = vmatpush.msra.mxu0 %v2603
    %3396 = vmatpush.msra.mxu0 %v2595
    %3397 = vmatpush.msra.mxu0 %v2587
    %3398 = vmatpush.msra.mxu0 %v2579
    %3399 = vmatpush.msra.mxu0 %v2571
    %3400 = vmatpush.msra.mxu0 %v2563
    %3401 = vmatpush.msra.mxu0 %v2555
    %3402 = vmatpush.msra.mxu0 %v2547
    %3403 = vmatpush.msra.mxu0 %v2539
    %3404 = vmatpush.msra.mxu0 %v2531
    %3405 = vmatpush.msra.mxu0 %v2523
    %3406 = vmatmul.f32.gmra.mxu0 %v2258
    %v3407 = vpop.f32.mrf.mxu0
    %v3408 = vadd.f32 %v3388, %v3407
    %3409 = vdwg.mxu0
    %3410 = vmatpush.msra.mxu0 %v2771
    %3411 = vmatpush.msra.mxu0 %v2763
    %3412 = vmatpush.msra.mxu0 %v2755
    %3413 = vmatpush.msra.mxu0 %v2747
    %3414 = vmatpush.msra.mxu0 %v2739
    %3415 = vmatpush.msra.mxu0 %v2731
    %3416 = vmatpush.msra.mxu0 %v2723
    %3417 = vmatpush.msra.mxu0 %v2715
    %3418 = vmatpush.msra.mxu0 %v2707
    %3419 = vmatpush.msra.mxu0 %v2699
    %3420 = vmatpush.msra.mxu0 %v2691
    %3421 = vmatpush.msra.mxu0 %v2683
    %3422 = vmatpush.msra.mxu0 %v2675
    %3423 = vmatpush.msra.mxu0 %v2667
    %3424 = vmatpush.msra.mxu0 %v2659
    %3425 = vmatpush.msra.mxu0 %v2651
    %3426 = vmatmul.f32.gmra.mxu0 %v2259
    %v3427 = vpop.f32.mrf.mxu0
    %v3428 = vadd.f32 %v3408, %v3427
    %3429 = vdwg.mxu0
    %v3430 = vmax.f32 %v2868, 0.0
    %v3431 = vmax.f32 %v2948, 0.0
    %v3432 = vmax.f32 %v3028, 0.0
    %v3433 = vmax.f32 %v3108, 0.0
    %v3434 = vmax.f32 %v3188, 0.0
    %v3435 = vmax.f32 %v3268, 0.0
    %v3436 = vmax.f32 %v3348, 0.0
    %v3437 = vmax.f32 %v3428, 0.0
    %v3438 = vld [vmem:[#allocation14] sm:$0xff]
    %v3439 = vld [vmem:[#allocation14 + $0x8] sm:$0xff]
    %v3440 = vld [vmem:[#allocation14 + $0x10] sm:$0xff]
    %v3441 = vld [vmem:[#allocation14 + $0x18] sm:$0xff]
    %v3442 = vld [vmem:[#allocation14 + $0x20] sm:$0xff]
    %v3443 = vld [vmem:[#allocation14 + $0x28] sm:$0xff]
    %v3444 = vld [vmem:[#allocation14 + $0x30] sm:$0xff]
    %v3445 = vld [vmem:[#allocation14 + $0x38] sm:$0xff]
    %v3446 = vld [vmem:[#allocation14 + $0x40] sm:$0xff]
    %v3447 = vld [vmem:[#allocation14 + $0x48] sm:$0xff]
    %v3448 = vld [vmem:[#allocation14 + $0x50] sm:$0xff]
    %v3449 = vld [vmem:[#allocation14 + $0x58] sm:$0xff]
    %v3450 = vld [vmem:[#allocation14 + $0x60] sm:$0xff]
    %v3451 = vld [vmem:[#allocation14 + $0x68] sm:$0xff]
    %v3452 = vld [vmem:[#allocation14 + $0x70] sm:$0xff]
    %v3453 = vld [vmem:[#allocation14 + $0x78] sm:$0xff]
    %v3454 = vld [vmem:[#allocation14 + $0x80] sm:$0xff]
    %v3455 = vld [vmem:[#allocation14 + $0x88] sm:$0xff]
    %v3456 = vld [vmem:[#allocation14 + $0x90] sm:$0xff]
    %v3457 = vld [vmem:[#allocation14 + $0x98] sm:$0xff]
    %v3458 = vld [vmem:[#allocation14 + $0xa0] sm:$0xff]
    %v3459 = vld [vmem:[#allocation14 + $0xa8] sm:$0xff]
    %v3460 = vld [vmem:[#allocation14 + $0xb0] sm:$0xff]
    %v3461 = vld [vmem:[#allocation14 + $0xb8] sm:$0xff]
    %v3462 = vld [vmem:[#allocation14 + $0xc0] sm:$0xff]
    %v3463 = vld [vmem:[#allocation14 + $0xc8] sm:$0xff]
    %v3464 = vld [vmem:[#allocation14 + $0xd0] sm:$0xff]
    %v3465 = vld [vmem:[#allocation14 + $0xd8] sm:$0xff]
    %v3466 = vld [vmem:[#allocation14 + $0xe0] sm:$0xff]
    %v3467 = vld [vmem:[#allocation14 + $0xe8] sm:$0xff]
    %v3468 = vld [vmem:[#allocation14 + $0xf0] sm:$0xff]
    %v3469 = vld [vmem:[#allocation14 + $0xf8] sm:$0xff]
    %v3470 = vld [vmem:[#allocation14 + $0x100] sm:$0xff]
    %v3471 = vld [vmem:[#allocation14 + $0x108] sm:$0xff]
    %v3472 = vld [vmem:[#allocation14 + $0x110] sm:$0xff]
    %v3473 = vld [vmem:[#allocation14 + $0x118] sm:$0xff]
    %v3474 = vld [vmem:[#allocation14 + $0x120] sm:$0xff]
    %v3475 = vld [vmem:[#allocation14 + $0x128] sm:$0xff]
    %v3476 = vld [vmem:[#allocation14 + $0x130] sm:$0xff]
    %v3477 = vld [vmem:[#allocation14 + $0x138] sm:$0xff]
    %v3478 = vld [vmem:[#allocation14 + $0x140] sm:$0xff]
    %v3479 = vld [vmem:[#allocation14 + $0x148] sm:$0xff]
    %v3480 = vld [vmem:[#allocation14 + $0x150] sm:$0xff]
    %v3481 = vld [vmem:[#allocation14 + $0x158] sm:$0xff]
    %v3482 = vld [vmem:[#allocation14 + $0x160] sm:$0xff]
    %v3483 = vld [vmem:[#allocation14 + $0x168] sm:$0xff]
    %v3484 = vld [vmem:[#allocation14 + $0x170] sm:$0xff]
    %v3485 = vld [vmem:[#allocation14 + $0x178] sm:$0xff]
    %v3486 = vld [vmem:[#allocation14 + $0x180] sm:$0xff]
    %v3487 = vld [vmem:[#allocation14 + $0x188] sm:$0xff]
    %v3488 = vld [vmem:[#allocation14 + $0x190] sm:$0xff]
    %v3489 = vld [vmem:[#allocation14 + $0x198] sm:$0xff]
    %v3490 = vld [vmem:[#allocation14 + $0x1a0] sm:$0xff]
    %v3491 = vld [vmem:[#allocation14 + $0x1a8] sm:$0xff]
    %v3492 = vld [vmem:[#allocation14 + $0x1b0] sm:$0xff]
    %v3493 = vld [vmem:[#allocation14 + $0x1b8] sm:$0xff]
    %v3494 = vld [vmem:[#allocation14 + $0x1c0] sm:$0xff]
    %v3495 = vld [vmem:[#allocation14 + $0x1c8] sm:$0xff]
    %v3496 = vld [vmem:[#allocation14 + $0x1d0] sm:$0xff]
    %v3497 = vld [vmem:[#allocation14 + $0x1d8] sm:$0xff]
    %v3498 = vld [vmem:[#allocation14 + $0x1e0] sm:$0xff]
    %v3499 = vld [vmem:[#allocation14 + $0x1e8] sm:$0xff]
    %v3500 = vld [vmem:[#allocation14 + $0x1f0] sm:$0xff]
    %v3501 = vld [vmem:[#allocation14 + $0x1f8] sm:$0xff]
    %v3502 = vld [vmem:[#allocation14 + $0x200] sm:$0xff]
    %v3503 = vld [vmem:[#allocation14 + $0x208] sm:$0xff]
    %v3504 = vld [vmem:[#allocation14 + $0x210] sm:$0xff]
    %v3505 = vld [vmem:[#allocation14 + $0x218] sm:$0xff]
    %v3506 = vld [vmem:[#allocation14 + $0x220] sm:$0xff]
    %v3507 = vld [vmem:[#allocation14 + $0x228] sm:$0xff]
    %v3508 = vld [vmem:[#allocation14 + $0x230] sm:$0xff]
    %v3509 = vld [vmem:[#allocation14 + $0x238] sm:$0xff]
    %v3510 = vld [vmem:[#allocation14 + $0x240] sm:$0xff]
    %v3511 = vld [vmem:[#allocation14 + $0x248] sm:$0xff]
    %v3512 = vld [vmem:[#allocation14 + $0x250] sm:$0xff]
    %v3513 = vld [vmem:[#allocation14 + $0x258] sm:$0xff]
    %v3514 = vld [vmem:[#allocation14 + $0x260] sm:$0xff]
    %v3515 = vld [vmem:[#allocation14 + $0x268] sm:$0xff]
    %v3516 = vld [vmem:[#allocation14 + $0x270] sm:$0xff]
    %v3517 = vld [vmem:[#allocation14 + $0x278] sm:$0xff]
    %v3518 = vld [vmem:[#allocation14 + $0x280] sm:$0xff]
    %v3519 = vld [vmem:[#allocation14 + $0x288] sm:$0xff]
    %v3520 = vld [vmem:[#allocation14 + $0x290] sm:$0xff]
    %v3521 = vld [vmem:[#allocation14 + $0x298] sm:$0xff]
    %v3522 = vld [vmem:[#allocation14 + $0x2a0] sm:$0xff]
    %v3523 = vld [vmem:[#allocation14 + $0x2a8] sm:$0xff]
    %v3524 = vld [vmem:[#allocation14 + $0x2b0] sm:$0xff]
    %v3525 = vld [vmem:[#allocation14 + $0x2b8] sm:$0xff]
    %v3526 = vld [vmem:[#allocation14 + $0x2c0] sm:$0xff]
    %v3527 = vld [vmem:[#allocation14 + $0x2c8] sm:$0xff]
    %v3528 = vld [vmem:[#allocation14 + $0x2d0] sm:$0xff]
    %v3529 = vld [vmem:[#allocation14 + $0x2d8] sm:$0xff]
    %v3530 = vld [vmem:[#allocation14 + $0x2e0] sm:$0xff]
    %v3531 = vld [vmem:[#allocation14 + $0x2e8] sm:$0xff]
    %v3532 = vld [vmem:[#allocation14 + $0x2f0] sm:$0xff]
    %v3533 = vld [vmem:[#allocation14 + $0x2f8] sm:$0xff]
    %v3534 = vld [vmem:[#allocation14 + $0x300] sm:$0xff]
    %v3535 = vld [vmem:[#allocation14 + $0x308] sm:$0xff]
    %v3536 = vld [vmem:[#allocation14 + $0x310] sm:$0xff]
    %v3537 = vld [vmem:[#allocation14 + $0x318] sm:$0xff]
    %v3538 = vld [vmem:[#allocation14 + $0x320] sm:$0xff]
    %v3539 = vld [vmem:[#allocation14 + $0x328] sm:$0xff]
    %v3540 = vld [vmem:[#allocation14 + $0x330] sm:$0xff]
    %v3541 = vld [vmem:[#allocation14 + $0x338] sm:$0xff]
    %v3542 = vld [vmem:[#allocation14 + $0x340] sm:$0xff]
    %v3543 = vld [vmem:[#allocation14 + $0x348] sm:$0xff]
    %v3544 = vld [vmem:[#allocation14 + $0x350] sm:$0xff]
    %v3545 = vld [vmem:[#allocation14 + $0x358] sm:$0xff]
    %v3546 = vld [vmem:[#allocation14 + $0x360] sm:$0xff]
    %v3547 = vld [vmem:[#allocation14 + $0x368] sm:$0xff]
    %v3548 = vld [vmem:[#allocation14 + $0x370] sm:$0xff]
    %v3549 = vld [vmem:[#allocation14 + $0x378] sm:$0xff]
    %v3550 = vld [vmem:[#allocation14 + $0x380] sm:$0xff]
    %v3551 = vld [vmem:[#allocation14 + $0x388] sm:$0xff]
    %v3552 = vld [vmem:[#allocation14 + $0x390] sm:$0xff]
    %v3553 = vld [vmem:[#allocation14 + $0x398] sm:$0xff]
    %v3554 = vld [vmem:[#allocation14 + $0x3a0] sm:$0xff]
    %v3555 = vld [vmem:[#allocation14 + $0x3a8] sm:$0xff]
    %v3556 = vld [vmem:[#allocation14 + $0x3b0] sm:$0xff]
    %v3557 = vld [vmem:[#allocation14 + $0x3b8] sm:$0xff]
    %v3558 = vld [vmem:[#allocation14 + $0x3c0] sm:$0xff]
    %v3559 = vld [vmem:[#allocation14 + $0x3c8] sm:$0xff]
    %v3560 = vld [vmem:[#allocation14 + $0x3d0] sm:$0xff]
    %v3561 = vld [vmem:[#allocation14 + $0x3d8] sm:$0xff]
    %v3562 = vld [vmem:[#allocation14 + $0x3e0] sm:$0xff]
    %v3563 = vld [vmem:[#allocation14 + $0x3e8] sm:$0xff]
    %v3564 = vld [vmem:[#allocation14 + $0x3f0] sm:$0xff]
    %v3565 = vld [vmem:[#allocation14 + $0x3f8] sm:$0xff]
    %v3566 = vld [vmem:[#allocation14 + $0x400] sm:$0xff]
    %v3567 = vld [vmem:[#allocation14 + $0x408] sm:$0xff]
    %v3568 = vld [vmem:[#allocation14 + $0x410] sm:$0xff]
    %v3569 = vld [vmem:[#allocation14 + $0x418] sm:$0xff]
    %v3570 = vld [vmem:[#allocation14 + $0x420] sm:$0xff]
    %v3571 = vld [vmem:[#allocation14 + $0x428] sm:$0xff]
    %v3572 = vld [vmem:[#allocation14 + $0x430] sm:$0xff]
    %v3573 = vld [vmem:[#allocation14 + $0x438] sm:$0xff]
    %v3574 = vld [vmem:[#allocation14 + $0x440] sm:$0xff]
    %v3575 = vld [vmem:[#allocation14 + $0x448] sm:$0xff]
    %v3576 = vld [vmem:[#allocation14 + $0x450] sm:$0xff]
    %v3577 = vld [vmem:[#allocation14 + $0x458] sm:$0xff]
    %v3578 = vld [vmem:[#allocation14 + $0x460] sm:$0xff]
    %v3579 = vld [vmem:[#allocation14 + $0x468] sm:$0xff]
    %v3580 = vld [vmem:[#allocation14 + $0x470] sm:$0xff]
    %v3581 = vld [vmem:[#allocation14 + $0x478] sm:$0xff]
    %v3582 = vld [vmem:[#allocation14 + $0x480] sm:$0xff]
    %v3583 = vld [vmem:[#allocation14 + $0x488] sm:$0xff]
    %v3584 = vld [vmem:[#allocation14 + $0x490] sm:$0xff]
    %v3585 = vld [vmem:[#allocation14 + $0x498] sm:$0xff]
    %v3586 = vld [vmem:[#allocation14 + $0x4a0] sm:$0xff]
    %v3587 = vld [vmem:[#allocation14 + $0x4a8] sm:$0xff]
    %v3588 = vld [vmem:[#allocation14 + $0x4b0] sm:$0xff]
    %v3589 = vld [vmem:[#allocation14 + $0x4b8] sm:$0xff]
    %v3590 = vld [vmem:[#allocation14 + $0x4c0] sm:$0xff]
    %v3591 = vld [vmem:[#allocation14 + $0x4c8] sm:$0xff]
    %v3592 = vld [vmem:[#allocation14 + $0x4d0] sm:$0xff]
    %v3593 = vld [vmem:[#allocation14 + $0x4d8] sm:$0xff]
    %v3594 = vld [vmem:[#allocation14 + $0x4e0] sm:$0xff]
    %v3595 = vld [vmem:[#allocation14 + $0x4e8] sm:$0xff]
    %v3596 = vld [vmem:[#allocation14 + $0x4f0] sm:$0xff]
    %v3597 = vld [vmem:[#allocation14 + $0x4f8] sm:$0xff]
    %v3598 = vld [vmem:[#allocation14 + $0x500] sm:$0xff]
    %v3599 = vld [vmem:[#allocation14 + $0x508] sm:$0xff]
    %v3600 = vld [vmem:[#allocation14 + $0x510] sm:$0xff]
    %v3601 = vld [vmem:[#allocation14 + $0x518] sm:$0xff]
    %v3602 = vld [vmem:[#allocation14 + $0x520] sm:$0xff]
    %v3603 = vld [vmem:[#allocation14 + $0x528] sm:$0xff]
    %v3604 = vld [vmem:[#allocation14 + $0x530] sm:$0xff]
    %v3605 = vld [vmem:[#allocation14 + $0x538] sm:$0xff]
    %v3606 = vld [vmem:[#allocation14 + $0x540] sm:$0xff]
    %v3607 = vld [vmem:[#allocation14 + $0x548] sm:$0xff]
    %v3608 = vld [vmem:[#allocation14 + $0x550] sm:$0xff]
    %v3609 = vld [vmem:[#allocation14 + $0x558] sm:$0xff]
    %v3610 = vld [vmem:[#allocation14 + $0x560] sm:$0xff]
    %v3611 = vld [vmem:[#allocation14 + $0x568] sm:$0xff]
    %v3612 = vld [vmem:[#allocation14 + $0x570] sm:$0xff]
    %v3613 = vld [vmem:[#allocation14 + $0x578] sm:$0xff]
    %v3614 = vld [vmem:[#allocation14 + $0x580] sm:$0xff]
    %v3615 = vld [vmem:[#allocation14 + $0x588] sm:$0xff]
    %v3616 = vld [vmem:[#allocation14 + $0x590] sm:$0xff]
    %v3617 = vld [vmem:[#allocation14 + $0x598] sm:$0xff]
    %v3618 = vld [vmem:[#allocation14 + $0x5a0] sm:$0xff]
    %v3619 = vld [vmem:[#allocation14 + $0x5a8] sm:$0xff]
    %v3620 = vld [vmem:[#allocation14 + $0x5b0] sm:$0xff]
    %v3621 = vld [vmem:[#allocation14 + $0x5b8] sm:$0xff]
    %v3622 = vld [vmem:[#allocation14 + $0x5c0] sm:$0xff]
    %v3623 = vld [vmem:[#allocation14 + $0x5c8] sm:$0xff]
    %v3624 = vld [vmem:[#allocation14 + $0x5d0] sm:$0xff]
    %v3625 = vld [vmem:[#allocation14 + $0x5d8] sm:$0xff]
    %v3626 = vld [vmem:[#allocation14 + $0x5e0] sm:$0xff]
    %v3627 = vld [vmem:[#allocation14 + $0x5e8] sm:$0xff]
    %v3628 = vld [vmem:[#allocation14 + $0x5f0] sm:$0xff]
    %v3629 = vld [vmem:[#allocation14 + $0x5f8] sm:$0xff]
    %v3630 = vld [vmem:[#allocation14 + $0x600] sm:$0xff]
    %v3631 = vld [vmem:[#allocation14 + $0x608] sm:$0xff]
    %v3632 = vld [vmem:[#allocation14 + $0x610] sm:$0xff]
    %v3633 = vld [vmem:[#allocation14 + $0x618] sm:$0xff]
    %v3634 = vld [vmem:[#allocation14 + $0x620] sm:$0xff]
    %v3635 = vld [vmem:[#allocation14 + $0x628] sm:$0xff]
    %v3636 = vld [vmem:[#allocation14 + $0x630] sm:$0xff]
    %v3637 = vld [vmem:[#allocation14 + $0x638] sm:$0xff]
    %v3638 = vld [vmem:[#allocation14 + $0x640] sm:$0xff]
    %v3639 = vld [vmem:[#allocation14 + $0x648] sm:$0xff]
    %v3640 = vld [vmem:[#allocation14 + $0x650] sm:$0xff]
    %v3641 = vld [vmem:[#allocation14 + $0x658] sm:$0xff]
    %v3642 = vld [vmem:[#allocation14 + $0x660] sm:$0xff]
    %v3643 = vld [vmem:[#allocation14 + $0x668] sm:$0xff]
    %v3644 = vld [vmem:[#allocation14 + $0x670] sm:$0xff]
    %v3645 = vld [vmem:[#allocation14 + $0x678] sm:$0xff]
    %v3646 = vld [vmem:[#allocation14 + $0x680] sm:$0xff]
    %v3647 = vld [vmem:[#allocation14 + $0x688] sm:$0xff]
    %v3648 = vld [vmem:[#allocation14 + $0x690] sm:$0xff]
    %v3649 = vld [vmem:[#allocation14 + $0x698] sm:$0xff]
    %v3650 = vld [vmem:[#allocation14 + $0x6a0] sm:$0xff]
    %v3651 = vld [vmem:[#allocation14 + $0x6a8] sm:$0xff]
    %v3652 = vld [vmem:[#allocation14 + $0x6b0] sm:$0xff]
    %v3653 = vld [vmem:[#allocation14 + $0x6b8] sm:$0xff]
    %v3654 = vld [vmem:[#allocation14 + $0x6c0] sm:$0xff]
    %v3655 = vld [vmem:[#allocation14 + $0x6c8] sm:$0xff]
    %v3656 = vld [vmem:[#allocation14 + $0x6d0] sm:$0xff]
    %v3657 = vld [vmem:[#allocation14 + $0x6d8] sm:$0xff]
    %v3658 = vld [vmem:[#allocation14 + $0x6e0] sm:$0xff]
    %v3659 = vld [vmem:[#allocation14 + $0x6e8] sm:$0xff]
    %v3660 = vld [vmem:[#allocation14 + $0x6f0] sm:$0xff]
    %v3661 = vld [vmem:[#allocation14 + $0x6f8] sm:$0xff]
    %v3662 = vld [vmem:[#allocation14 + $0x700] sm:$0xff]
    %v3663 = vld [vmem:[#allocation14 + $0x708] sm:$0xff]
    %v3664 = vld [vmem:[#allocation14 + $0x710] sm:$0xff]
    %v3665 = vld [vmem:[#allocation14 + $0x718] sm:$0xff]
    %v3666 = vld [vmem:[#allocation14 + $0x720] sm:$0xff]
    %v3667 = vld [vmem:[#allocation14 + $0x728] sm:$0xff]
    %v3668 = vld [vmem:[#allocation14 + $0x730] sm:$0xff]
    %v3669 = vld [vmem:[#allocation14 + $0x738] sm:$0xff]
    %v3670 = vld [vmem:[#allocation14 + $0x740] sm:$0xff]
    %v3671 = vld [vmem:[#allocation14 + $0x748] sm:$0xff]
    %v3672 = vld [vmem:[#allocation14 + $0x750] sm:$0xff]
    %v3673 = vld [vmem:[#allocation14 + $0x758] sm:$0xff]
    %v3674 = vld [vmem:[#allocation14 + $0x760] sm:$0xff]
    %v3675 = vld [vmem:[#allocation14 + $0x768] sm:$0xff]
    %v3676 = vld [vmem:[#allocation14 + $0x770] sm:$0xff]
    %v3677 = vld [vmem:[#allocation14 + $0x778] sm:$0xff]
    %v3678 = vld [vmem:[#allocation14 + $0x780] sm:$0xff]
    %v3679 = vld [vmem:[#allocation14 + $0x788] sm:$0xff]
    %v3680 = vld [vmem:[#allocation14 + $0x790] sm:$0xff]
    %v3681 = vld [vmem:[#allocation14 + $0x798] sm:$0xff]
    %v3682 = vld [vmem:[#allocation14 + $0x7a0] sm:$0xff]
    %v3683 = vld [vmem:[#allocation14 + $0x7a8] sm:$0xff]
    %v3684 = vld [vmem:[#allocation14 + $0x7b0] sm:$0xff]
    %v3685 = vld [vmem:[#allocation14 + $0x7b8] sm:$0xff]
    %v3686 = vld [vmem:[#allocation14 + $0x7c0] sm:$0xff]
    %v3687 = vld [vmem:[#allocation14 + $0x7c8] sm:$0xff]
    %v3688 = vld [vmem:[#allocation14 + $0x7d0] sm:$0xff]
    %v3689 = vld [vmem:[#allocation14 + $0x7d8] sm:$0xff]
    %v3690 = vld [vmem:[#allocation14 + $0x7e0] sm:$0xff]
    %v3691 = vld [vmem:[#allocation14 + $0x7e8] sm:$0xff]
    %v3692 = vld [vmem:[#allocation14 + $0x7f0] sm:$0xff]
    %v3693 = vld [vmem:[#allocation14 + $0x7f8] sm:$0xff]
    %v3694 = vld [vmem:[#allocation14 + $0x800] sm:$0xff]
    %v3695 = vld [vmem:[#allocation14 + $0x808] sm:$0xff]
    %v3696 = vld [vmem:[#allocation14 + $0x810] sm:$0xff]
    %v3697 = vld [vmem:[#allocation14 + $0x818] sm:$0xff]
    %v3698 = vld [vmem:[#allocation14 + $0x820] sm:$0xff]
    %v3699 = vld [vmem:[#allocation14 + $0x828] sm:$0xff]
    %v3700 = vld [vmem:[#allocation14 + $0x830] sm:$0xff]
    %v3701 = vld [vmem:[#allocation14 + $0x838] sm:$0xff]
    %v3702 = vld [vmem:[#allocation14 + $0x840] sm:$0xff]
    %v3703 = vld [vmem:[#allocation14 + $0x848] sm:$0xff]
    %v3704 = vld [vmem:[#allocation14 + $0x850] sm:$0xff]
    %v3705 = vld [vmem:[#allocation14 + $0x858] sm:$0xff]
    %v3706 = vld [vmem:[#allocation14 + $0x860] sm:$0xff]
    %v3707 = vld [vmem:[#allocation14 + $0x868] sm:$0xff]
    %v3708 = vld [vmem:[#allocation14 + $0x870] sm:$0xff]
    %v3709 = vld [vmem:[#allocation14 + $0x878] sm:$0xff]
    %v3710 = vld [vmem:[#allocation14 + $0x880] sm:$0xff]
    %v3711 = vld [vmem:[#allocation14 + $0x888] sm:$0xff]
    %v3712 = vld [vmem:[#allocation14 + $0x890] sm:$0xff]
    %v3713 = vld [vmem:[#allocation14 + $0x898] sm:$0xff]
    %v3714 = vld [vmem:[#allocation14 + $0x8a0] sm:$0xff]
    %v3715 = vld [vmem:[#allocation14 + $0x8a8] sm:$0xff]
    %v3716 = vld [vmem:[#allocation14 + $0x8b0] sm:$0xff]
    %v3717 = vld [vmem:[#allocation14 + $0x8b8] sm:$0xff]
    %v3718 = vld [vmem:[#allocation14 + $0x8c0] sm:$0xff]
    %v3719 = vld [vmem:[#allocation14 + $0x8c8] sm:$0xff]
    %v3720 = vld [vmem:[#allocation14 + $0x8d0] sm:$0xff]
    %v3721 = vld [vmem:[#allocation14 + $0x8d8] sm:$0xff]
    %v3722 = vld [vmem:[#allocation14 + $0x8e0] sm:$0xff]
    %v3723 = vld [vmem:[#allocation14 + $0x8e8] sm:$0xff]
    %v3724 = vld [vmem:[#allocation14 + $0x8f0] sm:$0xff]
    %v3725 = vld [vmem:[#allocation14 + $0x8f8] sm:$0xff]
    %v3726 = vld [vmem:[#allocation14 + $0x900] sm:$0xff]
    %v3727 = vld [vmem:[#allocation14 + $0x908] sm:$0xff]
    %v3728 = vld [vmem:[#allocation14 + $0x910] sm:$0xff]
    %v3729 = vld [vmem:[#allocation14 + $0x918] sm:$0xff]
    %v3730 = vld [vmem:[#allocation14 + $0x920] sm:$0xff]
    %v3731 = vld [vmem:[#allocation14 + $0x928] sm:$0xff]
    %v3732 = vld [vmem:[#allocation14 + $0x930] sm:$0xff]
    %v3733 = vld [vmem:[#allocation14 + $0x938] sm:$0xff]
    %v3734 = vld [vmem:[#allocation14 + $0x940] sm:$0xff]
    %v3735 = vld [vmem:[#allocation14 + $0x948] sm:$0xff]
    %v3736 = vld [vmem:[#allocation14 + $0x950] sm:$0xff]
    %v3737 = vld [vmem:[#allocation14 + $0x958] sm:$0xff]
    %v3738 = vld [vmem:[#allocation14 + $0x960] sm:$0xff]
    %v3739 = vld [vmem:[#allocation14 + $0x968] sm:$0xff]
    %v3740 = vld [vmem:[#allocation14 + $0x970] sm:$0xff]
    %v3741 = vld [vmem:[#allocation14 + $0x978] sm:$0xff]
    %v3742 = vld [vmem:[#allocation14 + $0x980] sm:$0xff]
    %v3743 = vld [vmem:[#allocation14 + $0x988] sm:$0xff]
    %v3744 = vld [vmem:[#allocation14 + $0x990] sm:$0xff]
    %v3745 = vld [vmem:[#allocation14 + $0x998] sm:$0xff]
    %v3746 = vld [vmem:[#allocation14 + $0x9a0] sm:$0xff]
    %v3747 = vld [vmem:[#allocation14 + $0x9a8] sm:$0xff]
    %v3748 = vld [vmem:[#allocation14 + $0x9b0] sm:$0xff]
    %v3749 = vld [vmem:[#allocation14 + $0x9b8] sm:$0xff]
    %v3750 = vld [vmem:[#allocation14 + $0x9c0] sm:$0xff]
    %v3751 = vld [vmem:[#allocation14 + $0x9c8] sm:$0xff]
    %v3752 = vld [vmem:[#allocation14 + $0x9d0] sm:$0xff]
    %v3753 = vld [vmem:[#allocation14 + $0x9d8] sm:$0xff]
    %v3754 = vld [vmem:[#allocation14 + $0x9e0] sm:$0xff]
    %v3755 = vld [vmem:[#allocation14 + $0x9e8] sm:$0xff]
    %v3756 = vld [vmem:[#allocation14 + $0x9f0] sm:$0xff]
    %v3757 = vld [vmem:[#allocation14 + $0x9f8] sm:$0xff]
    %v3758 = vld [vmem:[#allocation14 + $0xa00] sm:$0xff]
    %v3759 = vld [vmem:[#allocation14 + $0xa08] sm:$0xff]
    %v3760 = vld [vmem:[#allocation14 + $0xa10] sm:$0xff]
    %v3761 = vld [vmem:[#allocation14 + $0xa18] sm:$0xff]
    %v3762 = vld [vmem:[#allocation14 + $0xa20] sm:$0xff]
    %v3763 = vld [vmem:[#allocation14 + $0xa28] sm:$0xff]
    %v3764 = vld [vmem:[#allocation14 + $0xa30] sm:$0xff]
    %v3765 = vld [vmem:[#allocation14 + $0xa38] sm:$0xff]
    %v3766 = vld [vmem:[#allocation14 + $0xa40] sm:$0xff]
    %v3767 = vld [vmem:[#allocation14 + $0xa48] sm:$0xff]
    %v3768 = vld [vmem:[#allocation14 + $0xa50] sm:$0xff]
    %v3769 = vld [vmem:[#allocation14 + $0xa58] sm:$0xff]
    %v3770 = vld [vmem:[#allocation14 + $0xa60] sm:$0xff]
    %v3771 = vld [vmem:[#allocation14 + $0xa68] sm:$0xff]
    %v3772 = vld [vmem:[#allocation14 + $0xa70] sm:$0xff]
    %v3773 = vld [vmem:[#allocation14 + $0xa78] sm:$0xff]
    %v3774 = vld [vmem:[#allocation14 + $0xa80] sm:$0xff]
    %v3775 = vld [vmem:[#allocation14 + $0xa88] sm:$0xff]
    %v3776 = vld [vmem:[#allocation14 + $0xa90] sm:$0xff]
    %v3777 = vld [vmem:[#allocation14 + $0xa98] sm:$0xff]
    %v3778 = vld [vmem:[#allocation14 + $0xaa0] sm:$0xff]
    %v3779 = vld [vmem:[#allocation14 + $0xaa8] sm:$0xff]
    %v3780 = vld [vmem:[#allocation14 + $0xab0] sm:$0xff]
    %v3781 = vld [vmem:[#allocation14 + $0xab8] sm:$0xff]
    %v3782 = vld [vmem:[#allocation14 + $0xac0] sm:$0xff]
    %v3783 = vld [vmem:[#allocation14 + $0xac8] sm:$0xff]
    %v3784 = vld [vmem:[#allocation14 + $0xad0] sm:$0xff]
    %v3785 = vld [vmem:[#allocation14 + $0xad8] sm:$0xff]
    %v3786 = vld [vmem:[#allocation14 + $0xae0] sm:$0xff]
    %v3787 = vld [vmem:[#allocation14 + $0xae8] sm:$0xff]
    %v3788 = vld [vmem:[#allocation14 + $0xaf0] sm:$0xff]
    %v3789 = vld [vmem:[#allocation14 + $0xaf8] sm:$0xff]
    %v3790 = vld [vmem:[#allocation14 + $0xb00] sm:$0xff]
    %v3791 = vld [vmem:[#allocation14 + $0xb08] sm:$0xff]
    %v3792 = vld [vmem:[#allocation14 + $0xb10] sm:$0xff]
    %v3793 = vld [vmem:[#allocation14 + $0xb18] sm:$0xff]
    %v3794 = vld [vmem:[#allocation14 + $0xb20] sm:$0xff]
    %v3795 = vld [vmem:[#allocation14 + $0xb28] sm:$0xff]
    %v3796 = vld [vmem:[#allocation14 + $0xb30] sm:$0xff]
    %v3797 = vld [vmem:[#allocation14 + $0xb38] sm:$0xff]
    %v3798 = vld [vmem:[#allocation14 + $0xb40] sm:$0xff]
    %v3799 = vld [vmem:[#allocation14 + $0xb48] sm:$0xff]
    %v3800 = vld [vmem:[#allocation14 + $0xb50] sm:$0xff]
    %v3801 = vld [vmem:[#allocation14 + $0xb58] sm:$0xff]
    %v3802 = vld [vmem:[#allocation14 + $0xb60] sm:$0xff]
    %v3803 = vld [vmem:[#allocation14 + $0xb68] sm:$0xff]
    %v3804 = vld [vmem:[#allocation14 + $0xb70] sm:$0xff]
    %v3805 = vld [vmem:[#allocation14 + $0xb78] sm:$0xff]
    %v3806 = vld [vmem:[#allocation14 + $0xb80] sm:$0xff]
    %v3807 = vld [vmem:[#allocation14 + $0xb88] sm:$0xff]
    %v3808 = vld [vmem:[#allocation14 + $0xb90] sm:$0xff]
    %v3809 = vld [vmem:[#allocation14 + $0xb98] sm:$0xff]
    %v3810 = vld [vmem:[#allocation14 + $0xba0] sm:$0xff]
    %v3811 = vld [vmem:[#allocation14 + $0xba8] sm:$0xff]
    %v3812 = vld [vmem:[#allocation14 + $0xbb0] sm:$0xff]
    %v3813 = vld [vmem:[#allocation14 + $0xbb8] sm:$0xff]
    %v3814 = vld [vmem:[#allocation14 + $0xbc0] sm:$0xff]
    %v3815 = vld [vmem:[#allocation14 + $0xbc8] sm:$0xff]
    %v3816 = vld [vmem:[#allocation14 + $0xbd0] sm:$0xff]
    %v3817 = vld [vmem:[#allocation14 + $0xbd8] sm:$0xff]
    %v3818 = vld [vmem:[#allocation14 + $0xbe0] sm:$0xff]
    %v3819 = vld [vmem:[#allocation14 + $0xbe8] sm:$0xff]
    %v3820 = vld [vmem:[#allocation14 + $0xbf0] sm:$0xff]
    %v3821 = vld [vmem:[#allocation14 + $0xbf8] sm:$0xff]
    %v3822 = vld [vmem:[#allocation14 + $0xc00] sm:$0xff]
    %v3823 = vld [vmem:[#allocation14 + $0xc08] sm:$0xff]
    %v3824 = vld [vmem:[#allocation14 + $0xc10] sm:$0xff]
    %v3825 = vld [vmem:[#allocation14 + $0xc18] sm:$0xff]
    %v3826 = vld [vmem:[#allocation14 + $0xc20] sm:$0xff]
    %v3827 = vld [vmem:[#allocation14 + $0xc28] sm:$0xff]
    %v3828 = vld [vmem:[#allocation14 + $0xc30] sm:$0xff]
    %v3829 = vld [vmem:[#allocation14 + $0xc38] sm:$0xff]
    %v3830 = vld [vmem:[#allocation14 + $0xc40] sm:$0xff]
    %v3831 = vld [vmem:[#allocation14 + $0xc48] sm:$0xff]
    %v3832 = vld [vmem:[#allocation14 + $0xc50] sm:$0xff]
    %v3833 = vld [vmem:[#allocation14 + $0xc58] sm:$0xff]
    %v3834 = vld [vmem:[#allocation14 + $0xc60] sm:$0xff]
    %v3835 = vld [vmem:[#allocation14 + $0xc68] sm:$0xff]
    %v3836 = vld [vmem:[#allocation14 + $0xc70] sm:$0xff]
    %v3837 = vld [vmem:[#allocation14 + $0xc78] sm:$0xff]
    %v3838 = vld [vmem:[#allocation14 + $0xc80] sm:$0xff]
    %v3839 = vld [vmem:[#allocation14 + $0xc88] sm:$0xff]
    %v3840 = vld [vmem:[#allocation14 + $0xc90] sm:$0xff]
    %v3841 = vld [vmem:[#allocation14 + $0xc98] sm:$0xff]
    %v3842 = vld [vmem:[#allocation14 + $0xca0] sm:$0xff]
    %v3843 = vld [vmem:[#allocation14 + $0xca8] sm:$0xff]
    %v3844 = vld [vmem:[#allocation14 + $0xcb0] sm:$0xff]
    %v3845 = vld [vmem:[#allocation14 + $0xcb8] sm:$0xff]
    %v3846 = vld [vmem:[#allocation14 + $0xcc0] sm:$0xff]
    %v3847 = vld [vmem:[#allocation14 + $0xcc8] sm:$0xff]
    %v3848 = vld [vmem:[#allocation14 + $0xcd0] sm:$0xff]
    %v3849 = vld [vmem:[#allocation14 + $0xcd8] sm:$0xff]
    %v3850 = vld [vmem:[#allocation14 + $0xce0] sm:$0xff]
    %v3851 = vld [vmem:[#allocation14 + $0xce8] sm:$0xff]
    %v3852 = vld [vmem:[#allocation14 + $0xcf0] sm:$0xff]
    %v3853 = vld [vmem:[#allocation14 + $0xcf8] sm:$0xff]
    %v3854 = vld [vmem:[#allocation14 + $0xd00] sm:$0xff]
    %v3855 = vld [vmem:[#allocation14 + $0xd08] sm:$0xff]
    %v3856 = vld [vmem:[#allocation14 + $0xd10] sm:$0xff]
    %v3857 = vld [vmem:[#allocation14 + $0xd18] sm:$0xff]
    %v3858 = vld [vmem:[#allocation14 + $0xd20] sm:$0xff]
    %v3859 = vld [vmem:[#allocation14 + $0xd28] sm:$0xff]
    %v3860 = vld [vmem:[#allocation14 + $0xd30] sm:$0xff]
    %v3861 = vld [vmem:[#allocation14 + $0xd38] sm:$0xff]
    %v3862 = vld [vmem:[#allocation14 + $0xd40] sm:$0xff]
    %v3863 = vld [vmem:[#allocation14 + $0xd48] sm:$0xff]
    %v3864 = vld [vmem:[#allocation14 + $0xd50] sm:$0xff]
    %v3865 = vld [vmem:[#allocation14 + $0xd58] sm:$0xff]
    %v3866 = vld [vmem:[#allocation14 + $0xd60] sm:$0xff]
    %v3867 = vld [vmem:[#allocation14 + $0xd68] sm:$0xff]
    %v3868 = vld [vmem:[#allocation14 + $0xd70] sm:$0xff]
    %v3869 = vld [vmem:[#allocation14 + $0xd78] sm:$0xff]
    %v3870 = vld [vmem:[#allocation14 + $0xd80] sm:$0xff]
    %v3871 = vld [vmem:[#allocation14 + $0xd88] sm:$0xff]
    %v3872 = vld [vmem:[#allocation14 + $0xd90] sm:$0xff]
    %v3873 = vld [vmem:[#allocation14 + $0xd98] sm:$0xff]
    %v3874 = vld [vmem:[#allocation14 + $0xda0] sm:$0xff]
    %v3875 = vld [vmem:[#allocation14 + $0xda8] sm:$0xff]
    %v3876 = vld [vmem:[#allocation14 + $0xdb0] sm:$0xff]
    %v3877 = vld [vmem:[#allocation14 + $0xdb8] sm:$0xff]
    %v3878 = vld [vmem:[#allocation14 + $0xdc0] sm:$0xff]
    %v3879 = vld [vmem:[#allocation14 + $0xdc8] sm:$0xff]
    %v3880 = vld [vmem:[#allocation14 + $0xdd0] sm:$0xff]
    %v3881 = vld [vmem:[#allocation14 + $0xdd8] sm:$0xff]
    %v3882 = vld [vmem:[#allocation14 + $0xde0] sm:$0xff]
    %v3883 = vld [vmem:[#allocation14 + $0xde8] sm:$0xff]
    %v3884 = vld [vmem:[#allocation14 + $0xdf0] sm:$0xff]
    %v3885 = vld [vmem:[#allocation14 + $0xdf8] sm:$0xff]
    %v3886 = vld [vmem:[#allocation14 + $0xe00] sm:$0xff]
    %v3887 = vld [vmem:[#allocation14 + $0xe08] sm:$0xff]
    %v3888 = vld [vmem:[#allocation14 + $0xe10] sm:$0xff]
    %v3889 = vld [vmem:[#allocation14 + $0xe18] sm:$0xff]
    %v3890 = vld [vmem:[#allocation14 + $0xe20] sm:$0xff]
    %v3891 = vld [vmem:[#allocation14 + $0xe28] sm:$0xff]
    %v3892 = vld [vmem:[#allocation14 + $0xe30] sm:$0xff]
    %v3893 = vld [vmem:[#allocation14 + $0xe38] sm:$0xff]
    %v3894 = vld [vmem:[#allocation14 + $0xe40] sm:$0xff]
    %v3895 = vld [vmem:[#allocation14 + $0xe48] sm:$0xff]
    %v3896 = vld [vmem:[#allocation14 + $0xe50] sm:$0xff]
    %v3897 = vld [vmem:[#allocation14 + $0xe58] sm:$0xff]
    %v3898 = vld [vmem:[#allocation14 + $0xe60] sm:$0xff]
    %v3899 = vld [vmem:[#allocation14 + $0xe68] sm:$0xff]
    %v3900 = vld [vmem:[#allocation14 + $0xe70] sm:$0xff]
    %v3901 = vld [vmem:[#allocation14 + $0xe78] sm:$0xff]
    %v3902 = vld [vmem:[#allocation14 + $0xe80] sm:$0xff]
    %v3903 = vld [vmem:[#allocation14 + $0xe88] sm:$0xff]
    %v3904 = vld [vmem:[#allocation14 + $0xe90] sm:$0xff]
    %v3905 = vld [vmem:[#allocation14 + $0xe98] sm:$0xff]
    %v3906 = vld [vmem:[#allocation14 + $0xea0] sm:$0xff]
    %v3907 = vld [vmem:[#allocation14 + $0xea8] sm:$0xff]
    %v3908 = vld [vmem:[#allocation14 + $0xeb0] sm:$0xff]
    %v3909 = vld [vmem:[#allocation14 + $0xeb8] sm:$0xff]
    %v3910 = vld [vmem:[#allocation14 + $0xec0] sm:$0xff]
    %v3911 = vld [vmem:[#allocation14 + $0xec8] sm:$0xff]
    %v3912 = vld [vmem:[#allocation14 + $0xed0] sm:$0xff]
    %v3913 = vld [vmem:[#allocation14 + $0xed8] sm:$0xff]
    %v3914 = vld [vmem:[#allocation14 + $0xee0] sm:$0xff]
    %v3915 = vld [vmem:[#allocation14 + $0xee8] sm:$0xff]
    %v3916 = vld [vmem:[#allocation14 + $0xef0] sm:$0xff]
    %v3917 = vld [vmem:[#allocation14 + $0xef8] sm:$0xff]
    %v3918 = vld [vmem:[#allocation14 + $0xf00] sm:$0xff]
    %v3919 = vld [vmem:[#allocation14 + $0xf08] sm:$0xff]
    %v3920 = vld [vmem:[#allocation14 + $0xf10] sm:$0xff]
    %v3921 = vld [vmem:[#allocation14 + $0xf18] sm:$0xff]
    %v3922 = vld [vmem:[#allocation14 + $0xf20] sm:$0xff]
    %v3923 = vld [vmem:[#allocation14 + $0xf28] sm:$0xff]
    %v3924 = vld [vmem:[#allocation14 + $0xf30] sm:$0xff]
    %v3925 = vld [vmem:[#allocation14 + $0xf38] sm:$0xff]
    %v3926 = vld [vmem:[#allocation14 + $0xf40] sm:$0xff]
    %v3927 = vld [vmem:[#allocation14 + $0xf48] sm:$0xff]
    %v3928 = vld [vmem:[#allocation14 + $0xf50] sm:$0xff]
    %v3929 = vld [vmem:[#allocation14 + $0xf58] sm:$0xff]
    %v3930 = vld [vmem:[#allocation14 + $0xf60] sm:$0xff]
    %v3931 = vld [vmem:[#allocation14 + $0xf68] sm:$0xff]
    %v3932 = vld [vmem:[#allocation14 + $0xf70] sm:$0xff]
    %v3933 = vld [vmem:[#allocation14 + $0xf78] sm:$0xff]
    %v3934 = vld [vmem:[#allocation14 + $0xf80] sm:$0xff]
    %v3935 = vld [vmem:[#allocation14 + $0xf88] sm:$0xff]
    %v3936 = vld [vmem:[#allocation14 + $0xf90] sm:$0xff]
    %v3937 = vld [vmem:[#allocation14 + $0xf98] sm:$0xff]
    %v3938 = vld [vmem:[#allocation14 + $0xfa0] sm:$0xff]
    %v3939 = vld [vmem:[#allocation14 + $0xfa8] sm:$0xff]
    %v3940 = vld [vmem:[#allocation14 + $0xfb0] sm:$0xff]
    %v3941 = vld [vmem:[#allocation14 + $0xfb8] sm:$0xff]
    %v3942 = vld [vmem:[#allocation14 + $0xfc0] sm:$0xff]
    %v3943 = vld [vmem:[#allocation14 + $0xfc8] sm:$0xff]
    %v3944 = vld [vmem:[#allocation14 + $0xfd0] sm:$0xff]
    %v3945 = vld [vmem:[#allocation14 + $0xfd8] sm:$0xff]
    %v3946 = vld [vmem:[#allocation14 + $0xfe0] sm:$0xff]
    %v3947 = vld [vmem:[#allocation14 + $0xfe8] sm:$0xff]
    %v3948 = vld [vmem:[#allocation14 + $0xff0] sm:$0xff]
    %v3949 = vld [vmem:[#allocation14 + $0xff8] sm:$0xff]
    %v3950 = vld [vmem:[#allocation16] sm:$0xf]
    %v3952 = vperm.slane %v3950, 0
    %v3953 = vperm.slane %v3950, 1
    %v3954 = vperm.slane %v3950, 2
    %v3955 = vperm.slane %v3950, 3
    %3960 = vmatpush.msra.mxu0 %v3498
    %3961 = vmatpush.msra.mxu0 %v3494
    %3962 = vmatpush.msra.mxu0 %v3490
    %3963 = vmatpush.msra.mxu0 %v3486
    %3964 = vmatpush.msra.mxu0 %v3482
    %3965 = vmatpush.msra.mxu0 %v3478
    %3966 = vmatpush.msra.mxu0 %v3474
    %3967 = vmatpush.msra.mxu0 %v3470
    %3968 = vmatpush.msra.mxu0 %v3466
    %3969 = vmatpush.msra.mxu0 %v3462
    %3970 = vmatpush.msra.mxu0 %v3458
    %3971 = vmatpush.msra.mxu0 %v3454
    %3972 = vmatpush.msra.mxu0 %v3450
    %3973 = vmatpush.msra.mxu0 %v3446
    %3974 = vmatpush.msra.mxu0 %v3442
    %3975 = vmatpush.msra.mxu0 %v3438
    %3976 = vmatmul.f32.gmra.mxu0 %v3430
    %v3977 = vpop.f32.mrf.mxu0
    %v3978 = vadd.f32 %v3952, %v3977
    %3979 = vdwg.mxu0
    %3980 = vmatpush.msra.mxu0 %v3562
    %3981 = vmatpush.msra.mxu0 %v3558
    %3982 = vmatpush.msra.mxu0 %v3554
    %3983 = vmatpush.msra.mxu0 %v3550
    %3984 = vmatpush.msra.mxu0 %v3546
    %3985 = vmatpush.msra.mxu0 %v3542
    %3986 = vmatpush.msra.mxu0 %v3538
    %3987 = vmatpush.msra.mxu0 %v3534
    %3988 = vmatpush.msra.mxu0 %v3530
    %3989 = vmatpush.msra.mxu0 %v3526
    %3990 = vmatpush.msra.mxu0 %v3522
    %3991 = vmatpush.msra.mxu0 %v3518
    %3992 = vmatpush.msra.mxu0 %v3514
    %3993 = vmatpush.msra.mxu0 %v3510
    %3994 = vmatpush.msra.mxu0 %v3506
    %3995 = vmatpush.msra.mxu0 %v3502
    %3996 = vmatmul.f32.gmra.mxu0 %v3431
    %v3997 = vpop.f32.mrf.mxu0
    %v3998 = vadd.f32 %v3978, %v3997
    %3999 = vdwg.mxu0
    %4000 = vmatpush.msra.mxu0 %v3626
    %4001 = vmatpush.msra.mxu0 %v3622
    %4002 = vmatpush.msra.mxu0 %v3618
    %4003 = vmatpush.msra.mxu0 %v3614
    %4004 = vmatpush.msra.mxu0 %v3610
    %4005 = vmatpush.msra.mxu0 %v3606
    %4006 = vmatpush.msra.mxu0 %v3602
    %4007 = vmatpush.msra.mxu0 %v3598
    %4008 = vmatpush.msra.mxu0 %v3594
    %4009 = vmatpush.msra.mxu0 %v3590
    %4010 = vmatpush.msra.mxu0 %v3586
    %4011 = vmatpush.msra.mxu0 %v3582
    %4012 = vmatpush.msra.mxu0 %v3578
    %4013 = vmatpush.msra.mxu0 %v3574
    %4014 = vmatpush.msra.mxu0 %v3570
    %4015 = vmatpush.msra.mxu0 %v3566
    %4016 = vmatmul.f32.gmra.mxu0 %v3432
    %v4017 = vpop.f32.mrf.mxu0
    %v4018 = vadd.f32 %v3998, %v4017
    %4019 = vdwg.mxu0
    %4020 = vmatpush.msra.mxu0 %v3690
    %4021 = vmatpush.msra.mxu0 %v3686
    %4022 = vmatpush.msra.mxu0 %v3682
    %4023 = vmatpush.msra.mxu0 %v3678
    %4024 = vmatpush.msra.mxu0 %v3674
    %4025 = vmatpush.msra.mxu0 %v3670
    %4026 = vmatpush.msra.mxu0 %v3666
    %4027 = vmatpush.msra.mxu0 %v3662
    %4028 = vmatpush.msra.mxu0 %v3658
    %4029 = vmatpush.msra.mxu0 %v3654
    %4030 = vmatpush.msra.mxu0 %v3650
    %4031 = vmatpush.msra.mxu0 %v3646
    %4032 = vmatpush.msra.mxu0 %v3642
    %4033 = vmatpush.msra.mxu0 %v3638
    %4034 = vmatpush.msra.mxu0 %v3634
    %4035 = vmatpush.msra.mxu0 %v3630
    %4036 = vmatmul.f32.gmra.mxu0 %v3433
    %v4037 = vpop.f32.mrf.mxu0
    %v4038 = vadd.f32 %v4018, %v4037
    %4039 = vdwg.mxu0
    %4040 = vmatpush.msra.mxu0 %v3754
    %4041 = vmatpush.msra.mxu0 %v3750
    %4042 = vmatpush.msra.mxu0 %v3746
    %4043 = vmatpush.msra.mxu0 %v3742
    %4044 = vmatpush.msra.mxu0 %v3738
    %4045 = vmatpush.msra.mxu0 %v3734
    %4046 = vmatpush.msra.mxu0 %v3730
    %4047 = vmatpush.msra.mxu0 %v3726
    %4048 = vmatpush.msra.mxu0 %v3722
    %4049 = vmatpush.msra.mxu0 %v3718
    %4050 = vmatpush.msra.mxu0 %v3714
    %4051 = vmatpush.msra.mxu0 %v3710
    %4052 = vmatpush.msra.mxu0 %v3706
    %4053 = vmatpush.msra.mxu0 %v3702
    %4054 = vmatpush.msra.mxu0 %v3698
    %4055 = vmatpush.msra.mxu0 %v3694
    %4056 = vmatmul.f32.gmra.mxu0 %v3434
    %v4057 = vpop.f32.mrf.mxu0
    %v4058 = vadd.f32 %v4038, %v4057
    %4059 = vdwg.mxu0
    %4060 = vmatpush.msra.mxu0 %v3818
    %4061 = vmatpush.msra.mxu0 %v3814
    %4062 = vmatpush.msra.mxu0 %v3810
    %4063 = vmatpush.msra.mxu0 %v3806
    %4064 = vmatpush.msra.mxu0 %v3802
    %4065 = vmatpush.msra.mxu0 %v3798
    %4066 = vmatpush.msra.mxu0 %v3794
    %4067 = vmatpush.msra.mxu0 %v3790
    %4068 = vmatpush.msra.mxu0 %v3786
    %4069 = vmatpush.msra.mxu0 %v3782
    %4070 = vmatpush.msra.mxu0 %v3778
    %4071 = vmatpush.msra.mxu0 %v3774
    %4072 = vmatpush.msra.mxu0 %v3770
    %4073 = vmatpush.msra.mxu0 %v3766
    %4074 = vmatpush.msra.mxu0 %v3762
    %4075 = vmatpush.msra.mxu0 %v3758
    %4076 = vmatmul.f32.gmra.mxu0 %v3435
    %v4077 = vpop.f32.mrf.mxu0
    %v4078 = vadd.f32 %v4058, %v4077
    %4079 = vdwg.mxu0
    %4080 = vmatpush.msra.mxu0 %v3882
    %4081 = vmatpush.msra.mxu0 %v3878
    %4082 = vmatpush.msra.mxu0 %v3874
    %4083 = vmatpush.msra.mxu0 %v3870
    %4084 = vmatpush.msra.mxu0 %v3866
    %4085 = vmatpush.msra.mxu0 %v3862
    %4086 = vmatpush.msra.mxu0 %v3858
    %4087 = vmatpush.msra.mxu0 %v3854
    %4088 = vmatpush.msra.mxu0 %v3850
    %4089 = vmatpush.msra.mxu0 %v3846
    %4090 = vmatpush.msra.mxu0 %v3842
    %4091 = vmatpush.msra.mxu0 %v3838
    %4092 = vmatpush.msra.mxu0 %v3834
    %4093 = vmatpush.msra.mxu0 %v3830
    %4094 = vmatpush.msra.mxu0 %v3826
    %4095 = vmatpush.msra.mxu0 %v3822
    %4096 = vmatmul.f32.gmra.mxu0 %v3436
    %v4097 = vpop.f32.mrf.mxu0
    %v4098 = vadd.f32 %v4078, %v4097
    %4099 = vdwg.mxu0
    %4100 = vmatpush.msra.mxu0 %v3946
    %4101 = vmatpush.msra.mxu0 %v3942
    %4102 = vmatpush.msra.mxu0 %v3938
    %4103 = vmatpush.msra.mxu0 %v3934
    %4104 = vmatpush.msra.mxu0 %v3930
    %4105 = vmatpush.msra.mxu0 %v3926
    %4106 = vmatpush.msra.mxu0 %v3922
    %4107 = vmatpush.msra.mxu0 %v3918
    %4108 = vmatpush.msra.mxu0 %v3914
    %4109 = vmatpush.msra.mxu0 %v3910
    %4110 = vmatpush.msra.mxu0 %v3906
    %4111 = vmatpush.msra.mxu0 %v3902
    %4112 = vmatpush.msra.mxu0 %v3898
    %4113 = vmatpush.msra.mxu0 %v3894
    %4114 = vmatpush.msra.mxu0 %v3890
    %4115 = vmatpush.msra.mxu0 %v3886
    %4116 = vmatmul.f32.gmra.mxu0 %v3437
    %v4117 = vpop.f32.mrf.mxu0
    %v4118 = vadd.f32 %v4098, %v4117
    %4119 = vdwg.mxu0
    %4120 = vmatpush.msra.mxu0 %v3499
    %4121 = vmatpush.msra.mxu0 %v3495
    %4122 = vmatpush.msra.mxu0 %v3491
    %4123 = vmatpush.msra.mxu0 %v3487
    %4124 = vmatpush.msra.mxu0 %v3483
    %4125 = vmatpush.msra.mxu0 %v3479
    %4126 = vmatpush.msra.mxu0 %v3475
    %4127 = vmatpush.msra.mxu0 %v3471
    %4128 = vmatpush.msra.mxu0 %v3467
    %4129 = vmatpush.msra.mxu0 %v3463
    %4130 = vmatpush.msra.mxu0 %v3459
    %4131 = vmatpush.msra.mxu0 %v3455
    %4132 = vmatpush.msra.mxu0 %v3451
    %4133 = vmatpush.msra.mxu0 %v3447
    %4134 = vmatpush.msra.mxu0 %v3443
    %4135 = vmatpush.msra.mxu0 %v3439
    %4136 = vmatmul.f32.gmra.mxu0 %v3430
    %v4137 = vpop.f32.mrf.mxu0
    %v4138 = vadd.f32 %v3953, %v4137
    %4139 = vdwg.mxu0
    %4140 = vmatpush.msra.mxu0 %v3563
    %4141 = vmatpush.msra.mxu0 %v3559
    %4142 = vmatpush.msra.mxu0 %v3555
    %4143 = vmatpush.msra.mxu0 %v3551
    %4144 = vmatpush.msra.mxu0 %v3547
    %4145 = vmatpush.msra.mxu0 %v3543
    %4146 = vmatpush.msra.mxu0 %v3539
    %4147 = vmatpush.msra.mxu0 %v3535
    %4148 = vmatpush.msra.mxu0 %v3531
    %4149 = vmatpush.msra.mxu0 %v3527
    %4150 = vmatpush.msra.mxu0 %v3523
    %4151 = vmatpush.msra.mxu0 %v3519
    %4152 = vmatpush.msra.mxu0 %v3515
    %4153 = vmatpush.msra.mxu0 %v3511
    %4154 = vmatpush.msra.mxu0 %v3507
    %4155 = vmatpush.msra.mxu0 %v3503
    %4156 = vmatmul.f32.gmra.mxu0 %v3431
    %v4157 = vpop.f32.mrf.mxu0
    %v4158 = vadd.f32 %v4138, %v4157
    %4159 = vdwg.mxu0
    %4160 = vmatpush.msra.mxu0 %v3627
    %4161 = vmatpush.msra.mxu0 %v3623
    %4162 = vmatpush.msra.mxu0 %v3619
    %4163 = vmatpush.msra.mxu0 %v3615
    %4164 = vmatpush.msra.mxu0 %v3611
    %4165 = vmatpush.msra.mxu0 %v3607
    %4166 = vmatpush.msra.mxu0 %v3603
    %4167 = vmatpush.msra.mxu0 %v3599
    %4168 = vmatpush.msra.mxu0 %v3595
    %4169 = vmatpush.msra.mxu0 %v3591
    %4170 = vmatpush.msra.mxu0 %v3587
    %4171 = vmatpush.msra.mxu0 %v3583
    %4172 = vmatpush.msra.mxu0 %v3579
    %4173 = vmatpush.msra.mxu0 %v3575
    %4174 = vmatpush.msra.mxu0 %v3571
    %4175 = vmatpush.msra.mxu0 %v3567
    %4176 = vmatmul.f32.gmra.mxu0 %v3432
    %v4177 = vpop.f32.mrf.mxu0
    %v4178 = vadd.f32 %v4158, %v4177
    %4179 = vdwg.mxu0
    %4180 = vmatpush.msra.mxu0 %v3691
    %4181 = vmatpush.msra.mxu0 %v3687
    %4182 = vmatpush.msra.mxu0 %v3683
    %4183 = vmatpush.msra.mxu0 %v3679
    %4184 = vmatpush.msra.mxu0 %v3675
    %4185 = vmatpush.msra.mxu0 %v3671
    %4186 = vmatpush.msra.mxu0 %v3667
    %4187 = vmatpush.msra.mxu0 %v3663
    %4188 = vmatpush.msra.mxu0 %v3659
    %4189 = vmatpush.msra.mxu0 %v3655
    %4190 = vmatpush.msra.mxu0 %v3651
    %4191 = vmatpush.msra.mxu0 %v3647
    %4192 = vmatpush.msra.mxu0 %v3643
    %4193 = vmatpush.msra.mxu0 %v3639
    %4194 = vmatpush.msra.mxu0 %v3635
    %4195 = vmatpush.msra.mxu0 %v3631
    %4196 = vmatmul.f32.gmra.mxu0 %v3433
    %v4197 = vpop.f32.mrf.mxu0
    %v4198 = vadd.f32 %v4178, %v4197
    %4199 = vdwg.mxu0
    %4200 = vmatpush.msra.mxu0 %v3755
    %4201 = vmatpush.msra.mxu0 %v3751
    %4202 = vmatpush.msra.mxu0 %v3747
    %4203 = vmatpush.msra.mxu0 %v3743
    %4204 = vmatpush.msra.mxu0 %v3739
    %4205 = vmatpush.msra.mxu0 %v3735
    %4206 = vmatpush.msra.mxu0 %v3731
    %4207 = vmatpush.msra.mxu0 %v3727
    %4208 = vmatpush.msra.mxu0 %v3723
    %4209 = vmatpush.msra.mxu0 %v3719
    %4210 = vmatpush.msra.mxu0 %v3715
    %4211 = vmatpush.msra.mxu0 %v3711
    %4212 = vmatpush.msra.mxu0 %v3707
    %4213 = vmatpush.msra.mxu0 %v3703
    %4214 = vmatpush.msra.mxu0 %v3699
    %4215 = vmatpush.msra.mxu0 %v3695
    %4216 = vmatmul.f32.gmra.mxu0 %v3434
    %v4217 = vpop.f32.mrf.mxu0
    %v4218 = vadd.f32 %v4198, %v4217
    %4219 = vdwg.mxu0
    %4220 = vmatpush.msra.mxu0 %v3819
    %4221 = vmatpush.msra.mxu0 %v3815
    %4222 = vmatpush.msra.mxu0 %v3811
    %4223 = vmatpush.msra.mxu0 %v3807
    %4224 = vmatpush.msra.mxu0 %v3803
    %4225 = vmatpush.msra.mxu0 %v3799
    %4226 = vmatpush.msra.mxu0 %v3795
    %4227 = vmatpush.msra.mxu0 %v3791
    %4228 = vmatpush.msra.mxu0 %v3787
    %4229 = vmatpush.msra.mxu0 %v3783
    %4230 = vmatpush.msra.mxu0 %v3779
    %4231 = vmatpush.msra.mxu0 %v3775
    %4232 = vmatpush.msra.mxu0 %v3771
    %4233 = vmatpush.msra.mxu0 %v3767
    %4234 = vmatpush.msra.mxu0 %v3763
    %4235 = vmatpush.msra.mxu0 %v3759
    %4236 = vmatmul.f32.gmra.mxu0 %v3435
    %v4237 = vpop.f32.mrf.mxu0
    %v4238 = vadd.f32 %v4218, %v4237
    %4239 = vdwg.mxu0
    %4240 = vmatpush.msra.mxu0 %v3883
    %4241 = vmatpush.msra.mxu0 %v3879
    %4242 = vmatpush.msra.mxu0 %v3875
    %4243 = vmatpush.msra.mxu0 %v3871
    %4244 = vmatpush.msra.mxu0 %v3867
    %4245 = vmatpush.msra.mxu0 %v3863
    %4246 = vmatpush.msra.mxu0 %v3859
    %4247 = vmatpush.msra.mxu0 %v3855
    %4248 = vmatpush.msra.mxu0 %v3851
    %4249 = vmatpush.msra.mxu0 %v3847
    %4250 = vmatpush.msra.mxu0 %v3843
    %4251 = vmatpush.msra.mxu0 %v3839
    %4252 = vmatpush.msra.mxu0 %v3835
    %4253 = vmatpush.msra.mxu0 %v3831
    %4254 = vmatpush.msra.mxu0 %v3827
    %4255 = vmatpush.msra.mxu0 %v3823
    %4256 = vmatmul.f32.gmra.mxu0 %v3436
    %v4257 = vpop.f32.mrf.mxu0
    %v4258 = vadd.f32 %v4238, %v4257
    %4259 = vdwg.mxu0
    %4260 = vmatpush.msra.mxu0 %v3947
    %4261 = vmatpush.msra.mxu0 %v3943
    %4262 = vmatpush.msra.mxu0 %v3939
    %4263 = vmatpush.msra.mxu0 %v3935
    %4264 = vmatpush.msra.mxu0 %v3931
    %4265 = vmatpush.msra.mxu0 %v3927
    %4266 = vmatpush.msra.mxu0 %v3923
    %4267 = vmatpush.msra.mxu0 %v3919
    %4268 = vmatpush.msra.mxu0 %v3915
    %4269 = vmatpush.msra.mxu0 %v3911
    %4270 = vmatpush.msra.mxu0 %v3907
    %4271 = vmatpush.msra.mxu0 %v3903
    %4272 = vmatpush.msra.mxu0 %v3899
    %4273 = vmatpush.msra.mxu0 %v3895
    %4274 = vmatpush.msra.mxu0 %v3891
    %4275 = vmatpush.msra.mxu0 %v3887
    %4276 = vmatmul.f32.gmra.mxu0 %v3437
    %v4277 = vpop.f32.mrf.mxu0
    %v4278 = vadd.f32 %v4258, %v4277
    %4279 = vdwg.mxu0
    %4280 = vmatpush.msra.mxu0 %v3500
    %4281 = vmatpush.msra.mxu0 %v3496
    %4282 = vmatpush.msra.mxu0 %v3492
    %4283 = vmatpush.msra.mxu0 %v3488
    %4284 = vmatpush.msra.mxu0 %v3484
    %4285 = vmatpush.msra.mxu0 %v3480
    %4286 = vmatpush.msra.mxu0 %v3476
    %4287 = vmatpush.msra.mxu0 %v3472
    %4288 = vmatpush.msra.mxu0 %v3468
    %4289 = vmatpush.msra.mxu0 %v3464
    %4290 = vmatpush.msra.mxu0 %v3460
    %4291 = vmatpush.msra.mxu0 %v3456
    %4292 = vmatpush.msra.mxu0 %v3452
    %4293 = vmatpush.msra.mxu0 %v3448
    %4294 = vmatpush.msra.mxu0 %v3444
    %4295 = vmatpush.msra.mxu0 %v3440
    %4296 = vmatmul.f32.gmra.mxu0 %v3430
    %v4297 = vpop.f32.mrf.mxu0
    %v4298 = vadd.f32 %v3954, %v4297
    %4299 = vdwg.mxu0
    %4300 = vmatpush.msra.mxu0 %v3564
    %4301 = vmatpush.msra.mxu0 %v3560
    %4302 = vmatpush.msra.mxu0 %v3556
    %4303 = vmatpush.msra.mxu0 %v3552
    %4304 = vmatpush.msra.mxu0 %v3548
    %4305 = vmatpush.msra.mxu0 %v3544
    %4306 = vmatpush.msra.mxu0 %v3540
    %4307 = vmatpush.msra.mxu0 %v3536
    %4308 = vmatpush.msra.mxu0 %v3532
    %4309 = vmatpush.msra.mxu0 %v3528
    %4310 = vmatpush.msra.mxu0 %v3524
    %4311 = vmatpush.msra.mxu0 %v3520
    %4312 = vmatpush.msra.mxu0 %v3516
    %4313 = vmatpush.msra.mxu0 %v3512
    %4314 = vmatpush.msra.mxu0 %v3508
    %4315 = vmatpush.msra.mxu0 %v3504
    %4316 = vmatmul.f32.gmra.mxu0 %v3431
    %v4317 = vpop.f32.mrf.mxu0
    %v4318 = vadd.f32 %v4298, %v4317
    %4319 = vdwg.mxu0
    %4320 = vmatpush.msra.mxu0 %v3628
    %4321 = vmatpush.msra.mxu0 %v3624
    %4322 = vmatpush.msra.mxu0 %v3620
    %4323 = vmatpush.msra.mxu0 %v3616
    %4324 = vmatpush.msra.mxu0 %v3612
    %4325 = vmatpush.msra.mxu0 %v3608
    %4326 = vmatpush.msra.mxu0 %v3604
    %4327 = vmatpush.msra.mxu0 %v3600
    %4328 = vmatpush.msra.mxu0 %v3596
    %4329 = vmatpush.msra.mxu0 %v3592
    %4330 = vmatpush.msra.mxu0 %v3588
    %4331 = vmatpush.msra.mxu0 %v3584
    %4332 = vmatpush.msra.mxu0 %v3580
    %4333 = vmatpush.msra.mxu0 %v3576
    %4334 = vmatpush.msra.mxu0 %v3572
    %4335 = vmatpush.msra.mxu0 %v3568
    %4336 = vmatmul.f32.gmra.mxu0 %v3432
    %v4337 = vpop.f32.mrf.mxu0
    %v4338 = vadd.f32 %v4318, %v4337
    %4339 = vdwg.mxu0
    %4340 = vmatpush.msra.mxu0 %v3692
    %4341 = vmatpush.msra.mxu0 %v3688
    %4342 = vmatpush.msra.mxu0 %v3684
    %4343 = vmatpush.msra.mxu0 %v3680
    %4344 = vmatpush.msra.mxu0 %v3676
    %4345 = vmatpush.msra.mxu0 %v3672
    %4346 = vmatpush.msra.mxu0 %v3668
    %4347 = vmatpush.msra.mxu0 %v3664
    %4348 = vmatpush.msra.mxu0 %v3660
    %4349 = vmatpush.msra.mxu0 %v3656
    %4350 = vmatpush.msra.mxu0 %v3652
    %4351 = vmatpush.msra.mxu0 %v3648
    %4352 = vmatpush.msra.mxu0 %v3644
    %4353 = vmatpush.msra.mxu0 %v3640
    %4354 = vmatpush.msra.mxu0 %v3636
    %4355 = vmatpush.msra.mxu0 %v3632
    %4356 = vmatmul.f32.gmra.mxu0 %v3433
    %v4357 = vpop.f32.mrf.mxu0
    %v4358 = vadd.f32 %v4338, %v4357
    %4359 = vdwg.mxu0
    %4360 = vmatpush.msra.mxu0 %v3756
    %4361 = vmatpush.msra.mxu0 %v3752
    %4362 = vmatpush.msra.mxu0 %v3748
    %4363 = vmatpush.msra.mxu0 %v3744
    %4364 = vmatpush.msra.mxu0 %v3740
    %4365 = vmatpush.msra.mxu0 %v3736
    %4366 = vmatpush.msra.mxu0 %v3732
    %4367 = vmatpush.msra.mxu0 %v3728
    %4368 = vmatpush.msra.mxu0 %v3724
    %4369 = vmatpush.msra.mxu0 %v3720
    %4370 = vmatpush.msra.mxu0 %v3716
    %4371 = vmatpush.msra.mxu0 %v3712
    %4372 = vmatpush.msra.mxu0 %v3708
    %4373 = vmatpush.msra.mxu0 %v3704
    %4374 = vmatpush.msra.mxu0 %v3700
    %4375 = vmatpush.msra.mxu0 %v3696
    %4376 = vmatmul.f32.gmra.mxu0 %v3434
    %v4377 = vpop.f32.mrf.mxu0
    %v4378 = vadd.f32 %v4358, %v4377
    %4379 = vdwg.mxu0
    %4380 = vmatpush.msra.mxu0 %v3820
    %4381 = vmatpush.msra.mxu0 %v3816
    %4382 = vmatpush.msra.mxu0 %v3812
    %4383 = vmatpush.msra.mxu0 %v3808
    %4384 = vmatpush.msra.mxu0 %v3804
    %4385 = vmatpush.msra.mxu0 %v3800
    %4386 = vmatpush.msra.mxu0 %v3796
    %4387 = vmatpush.msra.mxu0 %v3792
    %4388 = vmatpush.msra.mxu0 %v3788
    %4389 = vmatpush.msra.mxu0 %v3784
    %4390 = vmatpush.msra.mxu0 %v3780
    %4391 = vmatpush.msra.mxu0 %v3776
    %4392 = vmatpush.msra.mxu0 %v3772
    %4393 = vmatpush.msra.mxu0 %v3768
    %4394 = vmatpush.msra.mxu0 %v3764
    %4395 = vmatpush.msra.mxu0 %v3760
    %4396 = vmatmul.f32.gmra.mxu0 %v3435
    %v4397 = vpop.f32.mrf.mxu0
    %v4398 = vadd.f32 %v4378, %v4397
    %4399 = vdwg.mxu0
    %4400 = vmatpush.msra.mxu0 %v3884
    %4401 = vmatpush.msra.mxu0 %v3880
    %4402 = vmatpush.msra.mxu0 %v3876
    %4403 = vmatpush.msra.mxu0 %v3872
    %4404 = vmatpush.msra.mxu0 %v3868
    %4405 = vmatpush.msra.mxu0 %v3864
    %4406 = vmatpush.msra.mxu0 %v3860
    %4407 = vmatpush.msra.mxu0 %v3856
    %4408 = vmatpush.msra.mxu0 %v3852
    %4409 = vmatpush.msra.mxu0 %v3848
    %4410 = vmatpush.msra.mxu0 %v3844
    %4411 = vmatpush.msra.mxu0 %v3840
    %4412 = vmatpush.msra.mxu0 %v3836
    %4413 = vmatpush.msra.mxu0 %v3832
    %4414 = vmatpush.msra.mxu0 %v3828
    %4415 = vmatpush.msra.mxu0 %v3824
    %4416 = vmatmul.f32.gmra.mxu0 %v3436
    %v4417 = vpop.f32.mrf.mxu0
    %v4418 = vadd.f32 %v4398, %v4417
    %4419 = vdwg.mxu0
    %4420 = vmatpush.msra.mxu0 %v3948
    %4421 = vmatpush.msra.mxu0 %v3944
    %4422 = vmatpush.msra.mxu0 %v3940
    %4423 = vmatpush.msra.mxu0 %v3936
    %4424 = vmatpush.msra.mxu0 %v3932
    %4425 = vmatpush.msra.mxu0 %v3928
    %4426 = vmatpush.msra.mxu0 %v3924
    %4427 = vmatpush.msra.mxu0 %v3920
    %4428 = vmatpush.msra.mxu0 %v3916
    %4429 = vmatpush.msra.mxu0 %v3912
    %4430 = vmatpush.msra.mxu0 %v3908
    %4431 = vmatpush.msra.mxu0 %v3904
    %4432 = vmatpush.msra.mxu0 %v3900
    %4433 = vmatpush.msra.mxu0 %v3896
    %4434 = vmatpush.msra.mxu0 %v3892
    %4435 = vmatpush.msra.mxu0 %v3888
    %4436 = vmatmul.f32.gmra.mxu0 %v3437
    %v4437 = vpop.f32.mrf.mxu0
    %v4438 = vadd.f32 %v4418, %v4437
    %4439 = vdwg.mxu0
    %4440 = vmatpush.msra.mxu0 %v3501
    %4441 = vmatpush.msra.mxu0 %v3497
    %4442 = vmatpush.msra.mxu0 %v3493
    %4443 = vmatpush.msra.mxu0 %v3489
    %4444 = vmatpush.msra.mxu0 %v3485
    %4445 = vmatpush.msra.mxu0 %v3481
    %4446 = vmatpush.msra.mxu0 %v3477
    %4447 = vmatpush.msra.mxu0 %v3473
    %4448 = vmatpush.msra.mxu0 %v3469
    %4449 = vmatpush.msra.mxu0 %v3465
    %4450 = vmatpush.msra.mxu0 %v3461
    %4451 = vmatpush.msra.mxu0 %v3457
    %4452 = vmatpush.msra.mxu0 %v3453
    %4453 = vmatpush.msra.mxu0 %v3449
    %4454 = vmatpush.msra.mxu0 %v3445
    %4455 = vmatpush.msra.mxu0 %v3441
    %4456 = vmatmul.f32.gmra.mxu0 %v3430
    %v4457 = vpop.f32.mrf.mxu0
    %v4458 = vadd.f32 %v3955, %v4457
    %4459 = vdwg.mxu0
    %4460 = vmatpush.msra.mxu0 %v3565
    %4461 = vmatpush.msra.mxu0 %v3561
    %4462 = vmatpush.msra.mxu0 %v3557
    %4463 = vmatpush.msra.mxu0 %v3553
    %4464 = vmatpush.msra.mxu0 %v3549
    %4465 = vmatpush.msra.mxu0 %v3545
    %4466 = vmatpush.msra.mxu0 %v3541
    %4467 = vmatpush.msra.mxu0 %v3537
    %4468 = vmatpush.msra.mxu0 %v3533
    %4469 = vmatpush.msra.mxu0 %v3529
    %4470 = vmatpush.msra.mxu0 %v3525
    %4471 = vmatpush.msra.mxu0 %v3521
    %4472 = vmatpush.msra.mxu0 %v3517
    %4473 = vmatpush.msra.mxu0 %v3513
    %4474 = vmatpush.msra.mxu0 %v3509
    %4475 = vmatpush.msra.mxu0 %v3505
    %4476 = vmatmul.f32.gmra.mxu0 %v3431
    %v4477 = vpop.f32.mrf.mxu0
    %v4478 = vadd.f32 %v4458, %v4477
    %4479 = vdwg.mxu0
    %4480 = vmatpush.msra.mxu0 %v3629
    %4481 = vmatpush.msra.mxu0 %v3625
    %4482 = vmatpush.msra.mxu0 %v3621
    %4483 = vmatpush.msra.mxu0 %v3617
    %4484 = vmatpush.msra.mxu0 %v3613
    %4485 = vmatpush.msra.mxu0 %v3609
    %4486 = vmatpush.msra.mxu0 %v3605
    %4487 = vmatpush.msra.mxu0 %v3601
    %4488 = vmatpush.msra.mxu0 %v3597
    %4489 = vmatpush.msra.mxu0 %v3593
    %4490 = vmatpush.msra.mxu0 %v3589
    %4491 = vmatpush.msra.mxu0 %v3585
    %4492 = vmatpush.msra.mxu0 %v3581
    %4493 = vmatpush.msra.mxu0 %v3577
    %4494 = vmatpush.msra.mxu0 %v3573
    %4495 = vmatpush.msra.mxu0 %v3569
    %4496 = vmatmul.f32.gmra.mxu0 %v3432
    %v4497 = vpop.f32.mrf.mxu0
    %v4498 = vadd.f32 %v4478, %v4497
    %4499 = vdwg.mxu0
    %4500 = vmatpush.msra.mxu0 %v3693
    %4501 = vmatpush.msra.mxu0 %v3689
    %4502 = vmatpush.msra.mxu0 %v3685
    %4503 = vmatpush.msra.mxu0 %v3681
    %4504 = vmatpush.msra.mxu0 %v3677
    %4505 = vmatpush.msra.mxu0 %v3673
    %4506 = vmatpush.msra.mxu0 %v3669
    %4507 = vmatpush.msra.mxu0 %v3665
    %4508 = vmatpush.msra.mxu0 %v3661
    %4509 = vmatpush.msra.mxu0 %v3657
    %4510 = vmatpush.msra.mxu0 %v3653
    %4511 = vmatpush.msra.mxu0 %v3649
    %4512 = vmatpush.msra.mxu0 %v3645
    %4513 = vmatpush.msra.mxu0 %v3641
    %4514 = vmatpush.msra.mxu0 %v3637
    %4515 = vmatpush.msra.mxu0 %v3633
    %4516 = vmatmul.f32.gmra.mxu0 %v3433
    %v4517 = vpop.f32.mrf.mxu0
    %v4518 = vadd.f32 %v4498, %v4517
    %4519 = vdwg.mxu0
    %4520 = vmatpush.msra.mxu0 %v3757
    %4521 = vmatpush.msra.mxu0 %v3753
    %4522 = vmatpush.msra.mxu0 %v3749
    %4523 = vmatpush.msra.mxu0 %v3745
    %4524 = vmatpush.msra.mxu0 %v3741
    %4525 = vmatpush.msra.mxu0 %v3737
    %4526 = vmatpush.msra.mxu0 %v3733
    %4527 = vmatpush.msra.mxu0 %v3729
    %4528 = vmatpush.msra.mxu0 %v3725
    %4529 = vmatpush.msra.mxu0 %v3721
    %4530 = vmatpush.msra.mxu0 %v3717
    %4531 = vmatpush.msra.mxu0 %v3713
    %4532 = vmatpush.msra.mxu0 %v3709
    %4533 = vmatpush.msra.mxu0 %v3705
    %4534 = vmatpush.msra.mxu0 %v3701
    %4535 = vmatpush.msra.mxu0 %v3697
    %4536 = vmatmul.f32.gmra.mxu0 %v3434
    %v4537 = vpop.f32.mrf.mxu0
    %v4538 = vadd.f32 %v4518, %v4537
    %4539 = vdwg.mxu0
    %4540 = vmatpush.msra.mxu0 %v3821
    %4541 = vmatpush.msra.mxu0 %v3817
    %4542 = vmatpush.msra.mxu0 %v3813
    %4543 = vmatpush.msra.mxu0 %v3809
    %4544 = vmatpush.msra.mxu0 %v3805
    %4545 = vmatpush.msra.mxu0 %v3801
    %4546 = vmatpush.msra.mxu0 %v3797
    %4547 = vmatpush.msra.mxu0 %v3793
    %4548 = vmatpush.msra.mxu0 %v3789
    %4549 = vmatpush.msra.mxu0 %v3785
    %4550 = vmatpush.msra.mxu0 %v3781
    %4551 = vmatpush.msra.mxu0 %v3777
    %4552 = vmatpush.msra.mxu0 %v3773
    %4553 = vmatpush.msra.mxu0 %v3769
    %4554 = vmatpush.msra.mxu0 %v3765
    %4555 = vmatpush.msra.mxu0 %v3761
    %4556 = vmatmul.f32.gmra.mxu0 %v3435
    %v4557 = vpop.f32.mrf.mxu0
    %v4558 = vadd.f32 %v4538, %v4557
    %4559 = vdwg.mxu0
    %4560 = vmatpush.msra.mxu0 %v3885
    %4561 = vmatpush.msra.mxu0 %v3881
    %4562 = vmatpush.msra.mxu0 %v3877
    %4563 = vmatpush.msra.mxu0 %v3873
    %4564 = vmatpush.msra.mxu0 %v3869
    %4565 = vmatpush.msra.mxu0 %v3865
    %4566 = vmatpush.msra.mxu0 %v3861
    %4567 = vmatpush.msra.mxu0 %v3857
    %4568 = vmatpush.msra.mxu0 %v3853
    %4569 = vmatpush.msra.mxu0 %v3849
    %4570 = vmatpush.msra.mxu0 %v3845
    %4571 = vmatpush.msra.mxu0 %v3841
    %4572 = vmatpush.msra.mxu0 %v3837
    %4573 = vmatpush.msra.mxu0 %v3833
    %4574 = vmatpush.msra.mxu0 %v3829
    %4575 = vmatpush.msra.mxu0 %v3825
    %4576 = vmatmul.f32.gmra.mxu0 %v3436
    %v4577 = vpop.f32.mrf.mxu0
    %v4578 = vadd.f32 %v4558, %v4577
    %4579 = vdwg.mxu0
    %4580 = vmatpush.msra.mxu0 %v3949
    %4581 = vmatpush.msra.mxu0 %v3945
    %4582 = vmatpush.msra.mxu0 %v3941
    %4583 = vmatpush.msra.mxu0 %v3937
    %4584 = vmatpush.msra.mxu0 %v3933
    %4585 = vmatpush.msra.mxu0 %v3929
    %4586 = vmatpush.msra.mxu0 %v3925
    %4587 = vmatpush.msra.mxu0 %v3921
    %4588 = vmatpush.msra.mxu0 %v3917
    %4589 = vmatpush.msra.mxu0 %v3913
    %4590 = vmatpush.msra.mxu0 %v3909
    %4591 = vmatpush.msra.mxu0 %v3905
    %4592 = vmatpush.msra.mxu0 %v3901
    %4593 = vmatpush.msra.mxu0 %v3897
    %4594 = vmatpush.msra.mxu0 %v3893
    %4595 = vmatpush.msra.mxu0 %v3889
    %4596 = vmatmul.f32.gmra.mxu0 %v3437
    %v4597 = vpop.f32.mrf.mxu0
    %v4598 = vadd.f32 %v4578, %v4597
    %4599 = vdwg.mxu0
    %v4600 = vmax.f32 %v4118, 0.0
    %v4601 = vmax.f32 %v4278, 0.0
    %v4602 = vmax.f32 %v4438, 0.0
    %v4603 = vmax.f32 %v4598, 0.0
    %v4604 = vld [vmem:[#allocation17] sm:$0xff]
    %v4605 = vld [vmem:[#allocation17 + $0x8] sm:$0xff]
    %v4606 = vld [vmem:[#allocation17 + $0x10] sm:$0xff]
    %v4607 = vld [vmem:[#allocation17 + $0x18] sm:$0xff]
    %v4608 = vld [vmem:[#allocation17 + $0x20] sm:$0xff]
    %v4609 = vld [vmem:[#allocation17 + $0x28] sm:$0xff]
    %v4610 = vld [vmem:[#allocation17 + $0x30] sm:$0xff]
    %v4611 = vld [vmem:[#allocation17 + $0x38] sm:$0xff]
    %v4612 = vld [vmem:[#allocation17 + $0x40] sm:$0xff]
    %v4613 = vld [vmem:[#allocation17 + $0x48] sm:$0xff]
    %v4614 = vld [vmem:[#allocation17 + $0x50] sm:$0xff]
    %v4615 = vld [vmem:[#allocation17 + $0x58] sm:$0xff]
    %v4616 = vld [vmem:[#allocation17 + $0x60] sm:$0xff]
    %v4617 = vld [vmem:[#allocation17 + $0x68] sm:$0xff]
    %v4618 = vld [vmem:[#allocation17 + $0x70] sm:$0xff]
    %v4619 = vld [vmem:[#allocation17 + $0x78] sm:$0xff]
    %v4620 = vld [vmem:[#allocation17 + $0x80] sm:$0xff]
    %v4621 = vld [vmem:[#allocation17 + $0x88] sm:$0xff]
    %v4622 = vld [vmem:[#allocation17 + $0x90] sm:$0xff]
    %v4623 = vld [vmem:[#allocation17 + $0x98] sm:$0xff]
    %v4624 = vld [vmem:[#allocation17 + $0xa0] sm:$0xff]
    %v4625 = vld [vmem:[#allocation17 + $0xa8] sm:$0xff]
    %v4626 = vld [vmem:[#allocation17 + $0xb0] sm:$0xff]
    %v4627 = vld [vmem:[#allocation17 + $0xb8] sm:$0xff]
    %v4628 = vld [vmem:[#allocation17 + $0xc0] sm:$0xff]
    %v4629 = vld [vmem:[#allocation17 + $0xc8] sm:$0xff]
    %v4630 = vld [vmem:[#allocation17 + $0xd0] sm:$0xff]
    %v4631 = vld [vmem:[#allocation17 + $0xd8] sm:$0xff]
    %v4632 = vld [vmem:[#allocation17 + $0xe0] sm:$0xff]
    %v4633 = vld [vmem:[#allocation17 + $0xe8] sm:$0xff]
    %v4634 = vld [vmem:[#allocation17 + $0xf0] sm:$0xff]
    %v4635 = vld [vmem:[#allocation17 + $0xf8] sm:$0xff]
    %v4636 = vld [vmem:[#allocation17 + $0x100] sm:$0xff]
    %v4637 = vld [vmem:[#allocation17 + $0x108] sm:$0xff]
    %v4638 = vld [vmem:[#allocation17 + $0x110] sm:$0xff]
    %v4639 = vld [vmem:[#allocation17 + $0x118] sm:$0xff]
    %v4640 = vld [vmem:[#allocation17 + $0x120] sm:$0xff]
    %v4641 = vld [vmem:[#allocation17 + $0x128] sm:$0xff]
    %v4642 = vld [vmem:[#allocation17 + $0x130] sm:$0xff]
    %v4643 = vld [vmem:[#allocation17 + $0x138] sm:$0xff]
    %v4644 = vld [vmem:[#allocation17 + $0x140] sm:$0xff]
    %v4645 = vld [vmem:[#allocation17 + $0x148] sm:$0xff]
    %v4646 = vld [vmem:[#allocation17 + $0x150] sm:$0xff]
    %v4647 = vld [vmem:[#allocation17 + $0x158] sm:$0xff]
    %v4648 = vld [vmem:[#allocation17 + $0x160] sm:$0xff]
    %v4649 = vld [vmem:[#allocation17 + $0x168] sm:$0xff]
    %v4650 = vld [vmem:[#allocation17 + $0x170] sm:$0xff]
    %v4651 = vld [vmem:[#allocation17 + $0x178] sm:$0xff]
    %v4652 = vld [vmem:[#allocation17 + $0x180] sm:$0xff]
    %v4653 = vld [vmem:[#allocation17 + $0x188] sm:$0xff]
    %v4654 = vld [vmem:[#allocation17 + $0x190] sm:$0xff]
    %v4655 = vld [vmem:[#allocation17 + $0x198] sm:$0xff]
    %v4656 = vld [vmem:[#allocation17 + $0x1a0] sm:$0xff]
    %v4657 = vld [vmem:[#allocation17 + $0x1a8] sm:$0xff]
    %v4658 = vld [vmem:[#allocation17 + $0x1b0] sm:$0xff]
    %v4659 = vld [vmem:[#allocation17 + $0x1b8] sm:$0xff]
    %v4660 = vld [vmem:[#allocation17 + $0x1c0] sm:$0xff]
    %v4661 = vld [vmem:[#allocation17 + $0x1c8] sm:$0xff]
    %v4662 = vld [vmem:[#allocation17 + $0x1d0] sm:$0xff]
    %v4663 = vld [vmem:[#allocation17 + $0x1d8] sm:$0xff]
    %v4664 = vld [vmem:[#allocation17 + $0x1e0] sm:$0xff]
    %v4665 = vld [vmem:[#allocation17 + $0x1e8] sm:$0xff]
    %v4666 = vld [vmem:[#allocation17 + $0x1f0] sm:$0xff]
    %v4667 = vld [vmem:[#allocation17 + $0x1f8] sm:$0xff]
    %v4668 = vld [vmem:[#allocation19] sm:$0x1]
    %v4670 = vperm.slane %v4668, 0
    %4672 = vmatpush.msra.mxu0 %v4619
    %4673 = vmatpush.msra.mxu0 %v4618
    %4674 = vmatpush.msra.mxu0 %v4617
    %4675 = vmatpush.msra.mxu0 %v4616
    %4676 = vmatpush.msra.mxu0 %v4615
    %4677 = vmatpush.msra.mxu0 %v4614
    %4678 = vmatpush.msra.mxu0 %v4613
    %4679 = vmatpush.msra.mxu0 %v4612
    %4680 = vmatpush.msra.mxu0 %v4611
    %4681 = vmatpush.msra.mxu0 %v4610
    %4682 = vmatpush.msra.mxu0 %v4609
    %4683 = vmatpush.msra.mxu0 %v4608
    %4684 = vmatpush.msra.mxu0 %v4607
    %4685 = vmatpush.msra.mxu0 %v4606
    %4686 = vmatpush.msra.mxu0 %v4605
    %4687 = vmatpush.msra.mxu0 %v4604
    %4688 = vmatmul.f32.gmra.mxu0 %v4600
    %v4689 = vpop.f32.mrf.mxu0
    %v4690 = vadd.f32 %v4670, %v4689
    %4691 = vdwg.mxu0
    %4692 = vmatpush.msra.mxu0 %v4635
    %4693 = vmatpush.msra.mxu0 %v4634
    %4694 = vmatpush.msra.mxu0 %v4633
    %4695 = vmatpush.msra.mxu0 %v4632
    %4696 = vmatpush.msra.mxu0 %v4631
    %4697 = vmatpush.msra.mxu0 %v4630
    %4698 = vmatpush.msra.mxu0 %v4629
    %4699 = vmatpush.msra.mxu0 %v4628
    %4700 = vmatpush.msra.mxu0 %v4627
    %4701 = vmatpush.msra.mxu0 %v4626
    %4702 = vmatpush.msra.mxu0 %v4625
    %4703 = vmatpush.msra.mxu0 %v4624
    %4704 = vmatpush.msra.mxu0 %v4623
    %4705 = vmatpush.msra.mxu0 %v4622
    %4706 = vmatpush.msra.mxu0 %v4621
    %4707 = vmatpush.msra.mxu0 %v4620
    %4708 = vmatmul.f32.gmra.mxu0 %v4601
    %v4709 = vpop.f32.mrf.mxu0
    %v4710 = vadd.f32 %v4690, %v4709
    %4711 = vdwg.mxu0
    %4712 = vmatpush.msra.mxu0 %v4651
    %4713 = vmatpush.msra.mxu0 %v4650
    %4714 = vmatpush.msra.mxu0 %v4649
    %4715 = vmatpush.msra.mxu0 %v4648
    %4716 = vmatpush.msra.mxu0 %v4647
    %4717 = vmatpush.msra.mxu0 %v4646
    %4718 = vmatpush.msra.mxu0 %v4645
    %4719 = vmatpush.msra.mxu0 %v4644
    %4720 = vmatpush.msra.mxu0 %v4643
    %4721 = vmatpush.msra.mxu0 %v4642
    %4722 = vmatpush.msra.mxu0 %v4641
    %4723 = vmatpush.msra.mxu0 %v4640
    %4724 = vmatpush.msra.mxu0 %v4639
    %4725 = vmatpush.msra.mxu0 %v4638
    %4726 = vmatpush.msra.mxu0 %v4637
    %4727 = vmatpush.msra.mxu0 %v4636
    %4728 = vmatmul.f32.gmra.mxu0 %v4602
    %v4729 = vpop.f32.mrf.mxu0
    %v4730 = vadd.f32 %v4710, %v4729
    %4731 = vdwg.mxu0
    %4732 = vmatpush.msra.mxu0 %v4667
    %4733 = vmatpush.msra.mxu0 %v4666
    %4734 = vmatpush.msra.mxu0 %v4665
    %4735 = vmatpush.msra.mxu0 %v4664
    %4736 = vmatpush.msra.mxu0 %v4663
    %4737 = vmatpush.msra.mxu0 %v4662
    %4738 = vmatpush.msra.mxu0 %v4661
    %4739 = vmatpush.msra.mxu0 %v4660
    %4740 = vmatpush.msra.mxu0 %v4659
    %4741 = vmatpush.msra.mxu0 %v4658
    %4742 = vmatpush.msra.mxu0 %v4657
    %4743 = vmatpush.msra.mxu0 %v4656
    %4744 = vmatpush.msra.mxu0 %v4655
    %4745 = vmatpush.msra.mxu0 %v4654
    %4746 = vmatpush.msra.mxu0 %v4653
    %4747 = vmatpush.msra.mxu0 %v4652
    %4748 = vmatmul.f32.gmra.mxu0 %v4603
    %v4749 = vpop.f32.mrf.mxu0
    %v4750 = vadd.f32 %v4730, %v4749
    %4751 = vdwg.mxu0
    %v4752 = vmax.f32 %v4750, 0.0
    %4753 = vst [vmem:[#allocation20] sm:$0xff] %v4752
    // Predicated region
    $region90: #{tpu_custom_call.1} parent=1 // pred_check
      _
    $region91: #{tpu_custom_call.1} parent=1 // pred_check_branch
      %4755 = sbr.rel (0) target = $region93
    $region92: #{tpu_custom_call.1} parent=1 // pred_region
      %4757 = vsyncadd [#allocation4], 0
      %s4759 = sshll.u32 [#allocation20], 4
      %s4760 = int_to_ptr.vmem [resolvable:$true] %s4759
      %s4761 = sshll.u32 %s11, 4
      %s4762 = int_to_ptr.hbm [resolvable:$true] %s4761
      %4764 = dma.vmem_to_hbm [thread:$0]  %s4760, 128, %s4762, [#allocation4]
    $region93: #{tpu_custom_call.1} parent=1 // pred_fallthru
      _
    // Predicated region
    $region94: #{tpu_custom_call.1} parent=1 // pred_check
      _
    $region95: #{tpu_custom_call.1} parent=1 // pred_check_branch
      %4766 = sbr.rel (0) target = $region97
    $region96: #{tpu_custom_call.1} parent=1 // pred_region
      %4768 = dma.done [#allocation4], 128
    $region97: #{tpu_custom_call.1} parent=1 // pred_fallthru
      _
    %4769 = vsyncpa [#allocation3], 1
    %4770 = vsyncpa [#allocation6], 1
    %4771 = vsyncpa [#allocation9], 1
    %4772 = vsyncpa [#allocation12], 1
    %4773 = vsyncpa [#allocation15], 1
    %4774 = vsyncpa [#allocation18], 1
    %4775 = vsyncpa [#allocation4], 1

</llo_original>
